<compile_context>
chip_gen: v7x
topology: tpu7x:2x2x1
jax: 0.10.0
libtpu: 0.0.40
codegen_flags: <defaults>
</compile_context>

<pallas_src>
import functools
import math

import jax
import jax.numpy as jnp
from jax import lax
from jax.experimental import pallas as pl
from jax.experimental.pallas import tpu as pltpu

EPS = 1e-5
MASK_NEG = -1e9        # "masked" value inside a batch block (matches PyTorch usage)
CROSS_NEG = -1e30      # cross-batch fill of the block-diagonal mask


def _encoder_kernel(x_ref, mask_ref, wqkv_ref, bqkv_ref, wo_ref, bo_ref,
                    w1_ref, b1_ref, w2_ref, b2_ref, out_ref, *, A, H, hd):
    G = A * H
    x = x_ref[...]                                  # (N, D) with N = B*S

    def inorm(v):                                   # InstanceNorm1d, no affine
        mu = jnp.mean(v, axis=-1, keepdims=True)
        var = jnp.mean(jnp.square(v - mu), axis=-1, keepdims=True)
        return (v - mu) / jnp.sqrt(var + EPS)

    norm_x = inorm(x)

    # --- one wide QKV projection for all 3 attentions x H heads -------------
    # wqkv is (D, 3*G*hd) with per-g contiguous [q|k|v] column blocks and the
    # 1/sqrt(hd) score scale pre-folded into the q columns.
    qkv = jnp.dot(norm_x, wqkv_ref[...],
                  preferred_element_type=jnp.float32) + bqkv_ref[...]   # (N, 288)

    # Re-layout to head-major (G, N, 3*hd) via static lane slices + leading-dim
    # stack (Mosaic supports slicing / leading-dim concat; it does not support
    # a (1,0,2) transpose).
    per_g = 3 * hd
    qkv_g = jnp.stack([qkv[:, g * per_g:(g + 1) * per_g] for g in range(G)],
                      axis=0)                                           # (G, N, 3hd)
    q = qkv_g[:, :, 0 * hd:1 * hd]                                      # (G, N, hd)
    k = qkv_g[:, :, 1 * hd:2 * hd]
    v = qkv_g[:, :, 2 * hd:3 * hd]

    # --- scores, batched over g (contract last dims -> no explicit transpose)
    s = lax.dot_general(q, k, (((2,), (2,)), ((0,), (0,))),
                        preferred_element_type=jnp.float32)             # (G, N, N)

    # Additive mask is stored once per attention (A, N, N); broadcast over the
    # H heads in-kernel (de-duplicated HBM/VMEM copy).
    m = mask_ref[...]                                                   # (A, N, N)
    mask_g = jnp.concatenate(
        [jnp.broadcast_to(m[a][None], (H,) + m.shape[1:]) for a in range(A)],
        axis=0)                                                         # (G, N, N)
    s = s + mask_g
    s = s - jnp.max(s, axis=-1, keepdims=True)
    e = jnp.exp(s)
    p = e / jnp.sum(e, axis=-1, keepdims=True)      # exact divide (accuracy)

    # --- attention output, batched over g ------------------------------------
    o = lax.dot_general(p, v, (((2,), (1,)), ((0,), (0,))),
                        preferred_element_type=jnp.float32)             # (G, N, hd)

    # Flatten heads back onto the lane axis and do ONE (N, G*hd) @ (G*hd, D)
    # output projection; summing over the 3 attentions is implicit.
    o_cat = jnp.concatenate([o[g] for g in range(G)], axis=-1)          # (N, G*hd)
    attended = x + jnp.dot(o_cat, wo_ref[...],
                           preferred_element_type=jnp.float32) + bo_ref[...]

    # --- second norm + MLP (dropout == identity in eval mode) ----------------
    na = inorm(attended)
    h1 = jnp.maximum(
        jnp.dot(na, w1_ref[...], preferred_element_type=jnp.float32)
        + b1_ref[...], 0.0)
    mlp = jnp.dot(h1, w2_ref[...], preferred_element_type=jnp.float32) \
        + b2_ref[...]
    out_ref[...] = na + mlp


# ---------------------------------------------------------------------------
# One-time packing (hoisted out of the per-call path, per review item 7).
# ---------------------------------------------------------------------------
def pack_params(params, num_heads):
    """Re-layout the module weights once into the kernel's packed formats."""
    w_in_t = jnp.asarray(params["w_in_t"])          # (A, D, 3D), cols [q|k|v]
    A, D, _ = w_in_t.shape
    H = num_heads
    hd = D // H
    scale = 1.0 / math.sqrt(hd)

    # (A, D, 3, H, hd) -> (D, A, H, 3, hd) -> (D, 3*G*hd): per-g contiguous
    # [q|k|v] blocks of width 3*hd; fold 1/sqrt(hd) into the q columns.
    w5 = w_in_t.reshape(A, D, 3, H, hd).transpose(1, 0, 3, 2, 4)
    w5 = w5.at[..., 0, :].multiply(scale)
    wqkv = w5.reshape(D, A * H * 3 * hd)

    b5 = jnp.asarray(params["b_in"]).reshape(A, 1, 3, H, hd).transpose(1, 0, 3, 2, 4)
    b5 = b5.at[..., 0, :].multiply(scale)
    bqkv = b5.reshape(1, A * H * 3 * hd)

    # out_proj: rows already ordered (a, h, hd) -> flatten to (G*hd, D).
    wo = jnp.asarray(params["w_out_t"]).reshape(A * D, D)
    bo = jnp.sum(jnp.asarray(params["b_out"]), axis=0)                  # (1, D)

    return dict(wqkv=wqkv, bqkv=bqkv, wo=wo, bo=bo,
                w1=jnp.asarray(params["w1_t"]), b1=jnp.asarray(params["b1"]),
                w2=jnp.asarray(params["w2_t"]), b2=jnp.asarray(params["b2"]),
                A=A, H=H, hd=hd, D=D)


def pack_masks(self_mask, door_mask, gen_mask, batch):
    """Block-diagonal (per-attention) additive masks, built once: (A, B*S, B*S)."""
    m3 = jnp.stack([self_mask, door_mask, gen_mask]).astype(jnp.float32)  # (A, S, S)
    A, S, _ = m3.shape
    N = batch * S
    row_b = jnp.arange(N) // S
    blk = row_b[:, None] == row_b[None, :]                                # (N, N) bool
    tiled = jnp.tile(m3, (1, batch, batch))                               # (A, N, N)
    return jnp.where(blk[None], tiled, CROSS_NEG)


# ---------------------------------------------------------------------------
# Per-call wrapper: a single un-gridded pallas_call (batch folded into the
# sequence axis, kept separate by the block-diagonal mask).
# ---------------------------------------------------------------------------
def house_diff_encoder(x, packed_masks, p):
    B, S, D = x.shape
    N = B * S
    kernel = functools.partial(_encoder_kernel, A=p["A"], H=p["H"], hd=p["hd"])
    vmem = pl.BlockSpec(memory_space=pltpu.MemorySpace.VMEM)

    out2d = pl.pallas_call(
        kernel,
        out_shape=jax.ShapeDtypeStruct((N, D), jnp.float32),
        in_specs=[vmem] * 10,
        out_specs=vmem,
        compiler_params=pltpu.CompilerParams(vmem_limit_bytes=32 * 1024 * 1024),
    )(x.reshape(N, D), packed_masks,
      p["wqkv"], p["bqkv"], p["wo"], p["bo"],
      p["w1"], p["b1"], p["w2"], p["b2"])
    return out2d.reshape(B, S, D)


# ---------------------------------------------------------------------------
# Plain-JAX reference (same math as the PyTorch module in eval mode).
# ---------------------------------------------------------------------------
def reference(x, masks, p, num_heads):
    B, S, D = x.shape
    hd = D // num_heads

    def inorm(v):
        mu = v.mean(-1, keepdims=True)
        var = ((v - mu) ** 2).mean(-1, keepdims=True)
        return (v - mu) / jnp.sqrt(var + EPS)

    nx = inorm(x)

    def mha(i, mask):
        qkv = nx @ p["w_in_t"][i] + p["b_in"][i]            # (B, S, 3D)
        q, k, v = qkv[..., :D], qkv[..., D:2 * D], qkv[..., 2 * D:]
        q = q.reshape(B, S, num_heads, hd).transpose(0, 2, 1, 3)
        k = k.reshape(B, S, num_heads, hd).transpose(0, 2, 1, 3)
        v = v.reshape(B, S, num_heads, hd).transpose(0, 2, 1, 3)
        s = jnp.einsum("bhqd,bhkd->bhqk", q, k) / math.sqrt(hd) + mask
        a = jax.nn.softmax(s, axis=-1)
        o = jnp.einsum("bhqk,bhkd->bhqd", a, v).transpose(0, 2, 1, 3)
        o = o.reshape(B, S, D)
        return o @ p["w_out_t"][i] + p["b_out"][i]

    att = x + mha(0, masks[0]) + mha(1, masks[1]) + mha(2, masks[2])
    na = inorm(att)
    mlp = jnp.maximum(na @ p["w1_t"] + p["b1"], 0.0) @ p["w2_t"] + p["b2"]
    return na + mlp


if __name__ == "__main__":
    B, S, D, H = 2, 8, 32, 4                                # dim=32, heads=4

    key = jax.random.PRNGKey(0)
    kx, km1, km2, km3, kp = jax.random.split(key, 5)
    x = jax.random.normal(kx, (B, S, D), jnp.float32)

    def make_mask(k):
        keep = jax.random.bernoulli(k, 0.7, (S, S)) | jnp.eye(S, dtype=bool)
        return jnp.where(keep, 0.0, MASK_NEG).astype(jnp.float32)

    self_mask = make_mask(km1)
    door_mask = make_mask(km2)
    gen_mask = make_mask(km3)

    # Deterministic synthetic parameters (shapes from the module's __init__).
    wk = jax.random.split(kp, 8)

    def init(k, shape, fan_in):
        return jax.random.normal(k, shape, jnp.float32) / math.sqrt(fan_in)

    params = dict(
        w_in_t=init(wk[0], (3, D, 3 * D), D),     # 3 MHAs, in_proj W^T (D, 3D)
        b_in=init(wk[1], (3, 1, 3 * D), D),       # in_proj bias
        w_out_t=init(wk[2], (3, D, D), D),        # out_proj W^T
        b_out=init(wk[3], (3, 1, D), D),          # out_proj bias
        w1_t=init(wk[4], (D, 512), D),            # mlp Linear(dim, 512) W^T
        b1=init(wk[5], (1, 512), D),
        w2_t=init(wk[6], (512, D), 512),          # mlp Linear(512, dim) W^T
        b2=init(wk[7], (1, D), 512),
    )

    # One-time packing (NOT in the per-call path).
    packed = pack_params(params, H)
    packed_masks = pack_masks(self_mask, door_mask, gen_mask, B)
    jax.block_until_ready((packed["wqkv"], packed_masks))

    out = house_diff_encoder(x, packed_masks, packed)
    jax.block_until_ready(out)

    ref = reference(x, (self_mask, door_mask, gen_mask), params, H)
    assert out.shape == (B, S, D)
    # Full-f32 kernel with exact softmax divide: expected mismatch ~1e-5.
    assert jnp.allclose(out, ref, atol=2e-3, rtol=2e-3), \
        float(jnp.max(jnp.abs(out - ref)))
    print("KERNEL_OK")
</pallas_src>

<mosaic_0001>
module attributes {stable_mosaic.version = 11 : i64} {
  func.func @_encoder_kernel(%arg0: memref<16x32xf32, #tpu.memory_space<vmem>>, %arg1: memref<3x16x16xf32, #tpu.memory_space<vmem>>, %arg2: memref<32x288xf32, #tpu.memory_space<vmem>>, %arg3: memref<1x288xf32, #tpu.memory_space<vmem>>, %arg4: memref<96x32xf32, #tpu.memory_space<vmem>>, %arg5: memref<1x32xf32, #tpu.memory_space<vmem>>, %arg6: memref<32x512xf32, #tpu.memory_space<vmem>>, %arg7: memref<1x512xf32, #tpu.memory_space<vmem>>, %arg8: memref<512x32xf32, #tpu.memory_space<vmem>>, %arg9: memref<1x32xf32, #tpu.memory_space<vmem>>, %arg10: memref<16x32xf32, #tpu.memory_space<vmem>>) attributes {dimension_semantics = [], scalar_prefetch = 0 : i64, scratch_operands = 0 : i64, tpu.core_type = #tpu.core_type<tc>} {
    %c0 = arith.constant 0 : index
    %c0_0 = arith.constant 0 : index
    %0 = vector.load %arg0[%c0, %c0_0] : memref<16x32xf32, #tpu.memory_space<vmem>>, vector<16x32xf32>
    %cst = arith.constant dense<0.000000e+00> : vector<16xf32>
    %1 = vector.multi_reduction <add>, %0, %cst [1] : vector<16x32xf32> to vector<16xf32>
    %2 = vector.shape_cast %1 : vector<16xf32> to vector<16x1xf32>
    %cst_1 = arith.constant 3.200000e+01 : f32
    %3 = vector.broadcast %cst_1 : f32 to vector<16x1xf32>
    %4 = arith.divf %2, %3 : vector<16x1xf32>
    %5 = vector.broadcast %4 : vector<16x1xf32> to vector<16x32xf32>
    %6 = arith.subf %0, %5 : vector<16x32xf32>
    %7 = arith.mulf %6, %6 : vector<16x32xf32>
    %cst_2 = arith.constant dense<0.000000e+00> : vector<16xf32>
    %8 = vector.multi_reduction <add>, %7, %cst_2 [1] : vector<16x32xf32> to vector<16xf32>
    %9 = vector.shape_cast %8 : vector<16xf32> to vector<16x1xf32>
    %cst_3 = arith.constant 3.200000e+01 : f32
    %10 = vector.broadcast %cst_3 : f32 to vector<16x1xf32>
    %11 = arith.divf %9, %10 : vector<16x1xf32>
    %12 = vector.broadcast %4 : vector<16x1xf32> to vector<16x32xf32>
    %13 = arith.subf %0, %12 : vector<16x32xf32>
    %cst_4 = arith.constant 9.99999974E-6 : f32
    %14 = vector.broadcast %cst_4 : f32 to vector<16x1xf32>
    %15 = arith.addf %11, %14 : vector<16x1xf32>
    %16 = math.sqrt %15 : vector<16x1xf32>
    %17 = vector.broadcast %16 : vector<16x1xf32> to vector<16x32xf32>
    %18 = arith.divf %13, %17 : vector<16x32xf32>
    %c0_5 = arith.constant 0 : index
    %c0_6 = arith.constant 0 : index
    %19 = vector.load %arg2[%c0_5, %c0_6] : memref<32x288xf32, #tpu.memory_space<vmem>>, vector<32x288xf32>
    %cst_7 = arith.constant dense<0.000000e+00> : vector<16x288xf32>
    %20 = tpu.matmul %18, %19, %cst_7 {dimension_numbers = #tpu.dot_dimension_numbers<[1], [0], [0], [1], [0, 0, 1, 1], [], []>} : vector<16x32xf32>, vector<32x288xf32>, vector<16x288xf32> -> vector<16x288xf32>
    %c0_8 = arith.constant 0 : index
    %c0_9 = arith.constant 0 : index
    %21 = vector.load %arg3[%c0_8, %c0_9] : memref<1x288xf32, #tpu.memory_space<vmem>>, vector<1x288xf32>
    %22 = vector.broadcast %21 : vector<1x288xf32> to vector<16x288xf32>
    %23 = arith.addf %20, %22 : vector<16x288xf32>
    %24 = vector.extract_strided_slice %23 {offsets = [0, 0], sizes = [16, 24], strides = [1, 1]} : vector<16x288xf32> to vector<16x24xf32>
    %25 = vector.extract_strided_slice %23 {offsets = [0, 24], sizes = [16, 24], strides = [1, 1]} : vector<16x288xf32> to vector<16x24xf32>
    %26 = vector.extract_strided_slice %23 {offsets = [0, 48], sizes = [16, 24], strides = [1, 1]} : vector<16x288xf32> to vector<16x24xf32>
    %27 = vector.extract_strided_slice %23 {offsets = [0, 72], sizes = [16, 24], strides = [1, 1]} : vector<16x288xf32> to vector<16x24xf32>
    %28 = vector.extract_strided_slice %23 {offsets = [0, 96], sizes = [16, 24], strides = [1, 1]} : vector<16x288xf32> to vector<16x24xf32>
    %29 = vector.extract_strided_slice %23 {offsets = [0, 120], sizes = [16, 24], strides = [1, 1]} : vector<16x288xf32> to vector<16x24xf32>
    %30 = vector.extract_strided_slice %23 {offsets = [0, 144], sizes = [16, 24], strides = [1, 1]} : vector<16x288xf32> to vector<16x24xf32>
    %31 = vector.extract_strided_slice %23 {offsets = [0, 168], sizes = [16, 24], strides = [1, 1]} : vector<16x288xf32> to vector<16x24xf32>
    %32 = vector.extract_strided_slice %23 {offsets = [0, 192], sizes = [16, 24], strides = [1, 1]} : vector<16x288xf32> to vector<16x24xf32>
    %33 = vector.extract_strided_slice %23 {offsets = [0, 216], sizes = [16, 24], strides = [1, 1]} : vector<16x288xf32> to vector<16x24xf32>
    %34 = vector.extract_strided_slice %23 {offsets = [0, 240], sizes = [16, 24], strides = [1, 1]} : vector<16x288xf32> to vector<16x24xf32>
    %35 = vector.extract_strided_slice %23 {offsets = [0, 264], sizes = [16, 24], strides = [1, 1]} : vector<16x288xf32> to vector<16x24xf32>
    %36 = vector.shape_cast %24 : vector<16x24xf32> to vector<1x16x24xf32>
    %37 = vector.shape_cast %25 : vector<16x24xf32> to vector<1x16x24xf32>
    %38 = vector.shape_cast %26 : vector<16x24xf32> to vector<1x16x24xf32>
    %39 = vector.shape_cast %27 : vector<16x24xf32> to vector<1x16x24xf32>
    %40 = vector.shape_cast %28 : vector<16x24xf32> to vector<1x16x24xf32>
    %41 = vector.shape_cast %29 : vector<16x24xf32> to vector<1x16x24xf32>
    %42 = vector.shape_cast %30 : vector<16x24xf32> to vector<1x16x24xf32>
    %43 = vector.shape_cast %31 : vector<16x24xf32> to vector<1x16x24xf32>
    %44 = vector.shape_cast %32 : vector<16x24xf32> to vector<1x16x24xf32>
    %45 = vector.shape_cast %33 : vector<16x24xf32> to vector<1x16x24xf32>
    %46 = vector.shape_cast %34 : vector<16x24xf32> to vector<1x16x24xf32>
    %47 = vector.shape_cast %35 : vector<16x24xf32> to vector<1x16x24xf32>
    %48 = tpu.concatenate %36, %37, %38, %39, %40, %41, %42, %43, %44, %45, %46, %47 in 0 : vector<1x16x24xf32>, vector<1x16x24xf32>, vector<1x16x24xf32>, vector<1x16x24xf32>, vector<1x16x24xf32>, vector<1x16x24xf32>, vector<1x16x24xf32>, vector<1x16x24xf32>, vector<1x16x24xf32>, vector<1x16x24xf32>, vector<1x16x24xf32>, vector<1x16x24xf32> -> vector<12x16x24xf32>
    %49 = vector.extract_strided_slice %48 {offsets = [0, 0, 0], sizes = [12, 16, 8], strides = [1, 1, 1]} : vector<12x16x24xf32> to vector<12x16x8xf32>
    %50 = vector.extract_strided_slice %48 {offsets = [0, 0, 8], sizes = [12, 16, 8], strides = [1, 1, 1]} : vector<12x16x24xf32> to vector<12x16x8xf32>
    %51 = vector.extract_strided_slice %48 {offsets = [0, 0, 16], sizes = [12, 16, 8], strides = [1, 1, 1]} : vector<12x16x24xf32> to vector<12x16x8xf32>
    %cst_10 = arith.constant dense<0.000000e+00> : vector<12x16x16xf32>
    %52 = tpu.matmul %49, %50, %cst_10 {dimension_numbers = #tpu.dot_dimension_numbers<[2], [2], [1], [1], [0, 0, 0, 1, 1, 1], [0], [0]>} : vector<12x16x8xf32>, vector<12x16x8xf32>, vector<12x16x16xf32> -> vector<12x16x16xf32>
    %c0_11 = arith.constant 0 : index
    %c0_12 = arith.constant 0 : index
    %c0_13 = arith.constant 0 : index
    %53 = vector.load %arg1[%c0_11, %c0_12, %c0_13] : memref<3x16x16xf32, #tpu.memory_space<vmem>>, vector<3x16x16xf32>
    %54 = vector.extract_strided_slice %53 {offsets = [0, 0, 0], sizes = [1, 16, 16], strides = [1, 1, 1]} : vector<3x16x16xf32> to vector<1x16x16xf32>
    %55 = vector.shape_cast %54 : vector<1x16x16xf32> to vector<16x16xf32>
    %56 = vector.shape_cast %55 : vector<16x16xf32> to vector<1x16x16xf32>
    %57 = vector.shape_cast %56 : vector<1x16x16xf32> to vector<1x16x16xf32>
    %58 = vector.broadcast %57 : vector<1x16x16xf32> to vector<4x16x16xf32>
    %59 = vector.extract_strided_slice %53 {offsets = [1, 0, 0], sizes = [1, 16, 16], strides = [1, 1, 1]} : vector<3x16x16xf32> to vector<1x16x16xf32>
    %60 = vector.shape_cast %59 : vector<1x16x16xf32> to vector<16x16xf32>
    %61 = vector.shape_cast %60 : vector<16x16xf32> to vector<1x16x16xf32>
    %62 = vector.shape_cast %61 : vector<1x16x16xf32> to vector<1x16x16xf32>
    %63 = vector.broadcast %62 : vector<1x16x16xf32> to vector<4x16x16xf32>
    %64 = vector.extract_strided_slice %53 {offsets = [2, 0, 0], sizes = [1, 16, 16], strides = [1, 1, 1]} : vector<3x16x16xf32> to vector<1x16x16xf32>
    %65 = vector.shape_cast %64 : vector<1x16x16xf32> to vector<16x16xf32>
    %66 = vector.shape_cast %65 : vector<16x16xf32> to vector<1x16x16xf32>
    %67 = vector.shape_cast %66 : vector<1x16x16xf32> to vector<1x16x16xf32>
    %68 = vector.broadcast %67 : vector<1x16x16xf32> to vector<4x16x16xf32>
    %69 = tpu.concatenate %58, %63, %68 in 0 : vector<4x16x16xf32>, vector<4x16x16xf32>, vector<4x16x16xf32> -> vector<12x16x16xf32>
    %70 = arith.addf %52, %69 : vector<12x16x16xf32>
    %cst_14 = arith.constant dense<0xFF800000> : vector<12x16xf32>
    %71 = vector.multi_reduction <maximumf>, %70, %cst_14 [2] : vector<12x16x16xf32> to vector<12x16xf32>
    %72 = vector.shape_cast %71 : vector<12x16xf32> to vector<12x16x1xf32>
    %73 = vector.broadcast %72 : vector<12x16x1xf32> to vector<12x16x16xf32>
    %74 = arith.subf %70, %73 : vector<12x16x16xf32>
    %75 = math.exp %74 : vector<12x16x16xf32>
    %cst_15 = arith.constant dense<0.000000e+00> : vector<12x16xf32>
    %76 = vector.multi_reduction <add>, %75, %cst_15 [2] : vector<12x16x16xf32> to vector<12x16xf32>
    %77 = vector.shape_cast %76 : vector<12x16xf32> to vector<12x16x1xf32>
    %78 = vector.broadcast %77 : vector<12x16x1xf32> to vector<12x16x16xf32>
    %79 = arith.divf %75, %78 : vector<12x16x16xf32>
    %cst_16 = arith.constant dense<0.000000e+00> : vector<12x16x8xf32>
    %80 = tpu.matmul %79, %51, %cst_16 {dimension_numbers = #tpu.dot_dimension_numbers<[2], [1], [1], [2], [0, 0, 0, 1, 1, 2], [0], [0]>} : vector<12x16x16xf32>, vector<12x16x8xf32>, vector<12x16x8xf32> -> vector<12x16x8xf32>
    %81 = vector.extract_strided_slice %80 {offsets = [0, 0, 0], sizes = [1, 16, 8], strides = [1, 1, 1]} : vector<12x16x8xf32> to vector<1x16x8xf32>
    %82 = vector.shape_cast %81 : vector<1x16x8xf32> to vector<16x8xf32>
    %83 = vector.extract_strided_slice %80 {offsets = [1, 0, 0], sizes = [1, 16, 8], strides = [1, 1, 1]} : vector<12x16x8xf32> to vector<1x16x8xf32>
    %84 = vector.shape_cast %83 : vector<1x16x8xf32> to vector<16x8xf32>
    %85 = vector.extract_strided_slice %80 {offsets = [2, 0, 0], sizes = [1, 16, 8], strides = [1, 1, 1]} : vector<12x16x8xf32> to vector<1x16x8xf32>
    %86 = vector.shape_cast %85 : vector<1x16x8xf32> to vector<16x8xf32>
    %87 = vector.extract_strided_slice %80 {offsets = [3, 0, 0], sizes = [1, 16, 8], strides = [1, 1, 1]} : vector<12x16x8xf32> to vector<1x16x8xf32>
    %88 = vector.shape_cast %87 : vector<1x16x8xf32> to vector<16x8xf32>
    %89 = vector.extract_strided_slice %80 {offsets = [4, 0, 0], sizes = [1, 16, 8], strides = [1, 1, 1]} : vector<12x16x8xf32> to vector<1x16x8xf32>
    %90 = vector.shape_cast %89 : vector<1x16x8xf32> to vector<16x8xf32>
    %91 = vector.extract_strided_slice %80 {offsets = [5, 0, 0], sizes = [1, 16, 8], strides = [1, 1, 1]} : vector<12x16x8xf32> to vector<1x16x8xf32>
    %92 = vector.shape_cast %91 : vector<1x16x8xf32> to vector<16x8xf32>
    %93 = vector.extract_strided_slice %80 {offsets = [6, 0, 0], sizes = [1, 16, 8], strides = [1, 1, 1]} : vector<12x16x8xf32> to vector<1x16x8xf32>
    %94 = vector.shape_cast %93 : vector<1x16x8xf32> to vector<16x8xf32>
    %95 = vector.extract_strided_slice %80 {offsets = [7, 0, 0], sizes = [1, 16, 8], strides = [1, 1, 1]} : vector<12x16x8xf32> to vector<1x16x8xf32>
    %96 = vector.shape_cast %95 : vector<1x16x8xf32> to vector<16x8xf32>
    %97 = vector.extract_strided_slice %80 {offsets = [8, 0, 0], sizes = [1, 16, 8], strides = [1, 1, 1]} : vector<12x16x8xf32> to vector<1x16x8xf32>
    %98 = vector.shape_cast %97 : vector<1x16x8xf32> to vector<16x8xf32>
    %99 = vector.extract_strided_slice %80 {offsets = [9, 0, 0], sizes = [1, 16, 8], strides = [1, 1, 1]} : vector<12x16x8xf32> to vector<1x16x8xf32>
    %100 = vector.shape_cast %99 : vector<1x16x8xf32> to vector<16x8xf32>
    %101 = vector.extract_strided_slice %80 {offsets = [10, 0, 0], sizes = [1, 16, 8], strides = [1, 1, 1]} : vector<12x16x8xf32> to vector<1x16x8xf32>
    %102 = vector.shape_cast %101 : vector<1x16x8xf32> to vector<16x8xf32>
    %103 = vector.extract_strided_slice %80 {offsets = [11, 0, 0], sizes = [1, 16, 8], strides = [1, 1, 1]} : vector<12x16x8xf32> to vector<1x16x8xf32>
    %104 = vector.shape_cast %103 : vector<1x16x8xf32> to vector<16x8xf32>
    %105 = tpu.concatenate %82, %84, %86, %88, %90, %92, %94, %96, %98, %100, %102, %104 in 1 : vector<16x8xf32>, vector<16x8xf32>, vector<16x8xf32>, vector<16x8xf32>, vector<16x8xf32>, vector<16x8xf32>, vector<16x8xf32>, vector<16x8xf32>, vector<16x8xf32>, vector<16x8xf32>, vector<16x8xf32>, vector<16x8xf32> -> vector<16x96xf32>
    %c0_17 = arith.constant 0 : index
    %c0_18 = arith.constant 0 : index
    %106 = vector.load %arg4[%c0_17, %c0_18] : memref<96x32xf32, #tpu.memory_space<vmem>>, vector<96x32xf32>
    %cst_19 = arith.constant dense<0.000000e+00> : vector<16x32xf32>
    %107 = tpu.matmul %105, %106, %cst_19 {dimension_numbers = #tpu.dot_dimension_numbers<[1], [0], [0], [1], [0, 0, 1, 1], [], []>} : vector<16x96xf32>, vector<96x32xf32>, vector<16x32xf32> -> vector<16x32xf32>
    %108 = arith.addf %0, %107 : vector<16x32xf32>
    %c0_20 = arith.constant 0 : index
    %c0_21 = arith.constant 0 : index
    %109 = vector.load %arg5[%c0_20, %c0_21] : memref<1x32xf32, #tpu.memory_space<vmem>>, vector<1x32xf32>
    %110 = vector.broadcast %109 : vector<1x32xf32> to vector<16x32xf32>
    %111 = arith.addf %108, %110 : vector<16x32xf32>
    %cst_22 = arith.constant dense<0.000000e+00> : vector<16xf32>
    %112 = vector.multi_reduction <add>, %111, %cst_22 [1] : vector<16x32xf32> to vector<16xf32>
    %113 = vector.shape_cast %112 : vector<16xf32> to vector<16x1xf32>
    %cst_23 = arith.constant 3.200000e+01 : f32
    %114 = vector.broadcast %cst_23 : f32 to vector<16x1xf32>
    %115 = arith.divf %113, %114 : vector<16x1xf32>
    %116 = vector.broadcast %115 : vector<16x1xf32> to vector<16x32xf32>
    %117 = arith.subf %111, %116 : vector<16x32xf32>
    %118 = arith.mulf %117, %117 : vector<16x32xf32>
    %cst_24 = arith.constant dense<0.000000e+00> : vector<16xf32>
    %119 = vector.multi_reduction <add>, %118, %cst_24 [1] : vector<16x32xf32> to vector<16xf32>
    %120 = vector.shape_cast %119 : vector<16xf32> to vector<16x1xf32>
    %cst_25 = arith.constant 3.200000e+01 : f32
    %121 = vector.broadcast %cst_25 : f32 to vector<16x1xf32>
    %122 = arith.divf %120, %121 : vector<16x1xf32>
    %123 = vector.broadcast %115 : vector<16x1xf32> to vector<16x32xf32>
    %124 = arith.subf %111, %123 : vector<16x32xf32>
    %cst_26 = arith.constant 9.99999974E-6 : f32
    %125 = vector.broadcast %cst_26 : f32 to vector<16x1xf32>
    %126 = arith.addf %122, %125 : vector<16x1xf32>
    %127 = math.sqrt %126 : vector<16x1xf32>
    %128 = vector.broadcast %127 : vector<16x1xf32> to vector<16x32xf32>
    %129 = arith.divf %124, %128 : vector<16x32xf32>
    %c0_27 = arith.constant 0 : index
    %c0_28 = arith.constant 0 : index
    %130 = vector.load %arg6[%c0_27, %c0_28] : memref<32x512xf32, #tpu.memory_space<vmem>>, vector<32x512xf32>
    %cst_29 = arith.constant dense<0.000000e+00> : vector<16x512xf32>
    %131 = tpu.matmul %129, %130, %cst_29 {dimension_numbers = #tpu.dot_dimension_numbers<[1], [0], [0], [1], [0, 0, 1, 1], [], []>} : vector<16x32xf32>, vector<32x512xf32>, vector<16x512xf32> -> vector<16x512xf32>
    %c0_30 = arith.constant 0 : index
    %c0_31 = arith.constant 0 : index
    %132 = vector.load %arg7[%c0_30, %c0_31] : memref<1x512xf32, #tpu.memory_space<vmem>>, vector<1x512xf32>
    %133 = vector.broadcast %132 : vector<1x512xf32> to vector<16x512xf32>
    %134 = arith.addf %131, %133 : vector<16x512xf32>
    %cst_32 = arith.constant 0.000000e+00 : f32
    %135 = vector.broadcast %cst_32 : f32 to vector<16x512xf32>
    %136 = arith.maximumf %134, %135 : vector<16x512xf32>
    %c0_33 = arith.constant 0 : index
    %c0_34 = arith.constant 0 : index
    %137 = vector.load %arg8[%c0_33, %c0_34] : memref<512x32xf32, #tpu.memory_space<vmem>>, vector<512x32xf32>
    %cst_35 = arith.constant dense<0.000000e+00> : vector<16x32xf32>
    %138 = tpu.matmul %136, %137, %cst_35 {dimension_numbers = #tpu.dot_dimension_numbers<[1], [0], [0], [1], [0, 0, 1, 1], [], []>} : vector<16x512xf32>, vector<512x32xf32>, vector<16x32xf32> -> vector<16x32xf32>
    %c0_36 = arith.constant 0 : index
    %c0_37 = arith.constant 0 : index
    %139 = vector.load %arg9[%c0_36, %c0_37] : memref<1x32xf32, #tpu.memory_space<vmem>>, vector<1x32xf32>
    %140 = vector.broadcast %139 : vector<1x32xf32> to vector<16x32xf32>
    %141 = arith.addf %138, %140 : vector<16x32xf32>
    %142 = arith.addf %129, %141 : vector<16x32xf32>
    %c0_38 = arith.constant 0 : index
    %c0_39 = arith.constant 0 : index
    %143 = vector.load %arg10[%c0_38, %c0_39] : memref<16x32xf32, #tpu.memory_space<vmem>>, vector<16x32xf32>
    tpu.vector_store %arg10[%c0_38, %c0_39], %142 {strides = array<i32>} : memref<16x32xf32, #tpu.memory_space<vmem>>, vector<16x32xf32>,
    return
  }
}

</mosaic_0001>

<llo_original>
// kernel: tpu_custom_call.1
$region0: #{tpu_custom_call.1}
  #allocation0 [shape = 'u32[]', space=smem, size = 0x4, offset = 0x4, fixed_abs, tag = 'smem constant byte address 0x4 - core index']
  #allocation1 [shape = 'u32[144,128]{1,0:T(1,128)}', space=vmem, size = 0x12000, scoped, tag = 'internal scratch']
  %s0 = inlined_call_operand.vmem [shape: f32[16,32], index: 0, kind: input, shape index: {}]
  %s1 = inlined_call_operand.vmem [shape: f32[3,16,16], index: 1, kind: input, shape index: {}]
  %s2 = inlined_call_operand.vmem [shape: f32[32,288], index: 2, kind: input, shape index: {}]
  %s3 = inlined_call_operand.vmem [shape: f32[1,288], index: 3, kind: input, shape index: {}]
  %s4 = inlined_call_operand.vmem [shape: f32[96,32], index: 4, kind: input, shape index: {}]
  %s5 = inlined_call_operand.vmem [shape: f32[1,32], index: 5, kind: input, shape index: {}]
  %s6 = inlined_call_operand.vmem [shape: f32[32,512], index: 6, kind: input, shape index: {}]
  %s7 = inlined_call_operand.vmem [shape: f32[1,512], index: 7, kind: input, shape index: {}]
  %s8 = inlined_call_operand.vmem [shape: f32[512,32], index: 8, kind: input, shape index: {}]
  %s9 = inlined_call_operand.vmem [shape: f32[1,32], index: 9, kind: input, shape index: {}]
  %s10 = inlined_call_operand.hbm [shape: f32[16,32], index: 10, kind: output, shape index: {}]
  %s11 = sld [smem:[#allocation0]]
  $region50: #{tpu_custom_call.1} parent=0
    _
  %s13 = ssub.s32 1, %s11
  %s14 = scalar_select 0, %s13, %s11
  $region1: #{tpu_custom_call.1} parent=0
    #allocation2 [shape = 'u8[8192]{0}', space=vmem, size = 0x2000, scoped, tag = 'output window, operand 0, single buffered']
    #allocation3 [shape = 's32[1]{0}', space=sflag, size = 0x4, scoped, tag = 'scoped memory for tpu_custom_call.1']
    %15 = vsyncpa [#allocation3], 0
    // Predicated region
    $region2: #{tpu_custom_call.1} parent=1 // pred_check
      _
    $region3: #{tpu_custom_call.1} parent=1 // pred_check_branch
      %17 = sbr.rel (0) target = $region5
    $region4: #{tpu_custom_call.1} parent=1 // pred_region
      _
    $region5: #{tpu_custom_call.1} parent=1 // pred_fallthru
      _
    // Predicated region
    $region6: #{tpu_custom_call.1} parent=1 // pred_check
      _
    $region7: #{tpu_custom_call.1} parent=1 // pred_check_branch
      %19 = sbr.rel (0) target = $region9
    $region8: #{tpu_custom_call.1} parent=1 // pred_region
      _
    $region9: #{tpu_custom_call.1} parent=1 // pred_fallthru
      _
    // Predicated region
    $region10: #{tpu_custom_call.1} parent=1 // pred_check
      _
    $region11: #{tpu_custom_call.1} parent=1 // pred_check_branch
      %21 = sbr.rel (0) target = $region13
    $region12: #{tpu_custom_call.1} parent=1 // pred_region
      _
    $region13: #{tpu_custom_call.1} parent=1 // pred_fallthru
      _
    // Predicated region
    $region14: #{tpu_custom_call.1} parent=1 // pred_check
      _
    $region15: #{tpu_custom_call.1} parent=1 // pred_check_branch
      %23 = sbr.rel (0) target = $region17
    $region16: #{tpu_custom_call.1} parent=1 // pred_region
      _
    $region17: #{tpu_custom_call.1} parent=1 // pred_fallthru
      _
    // Predicated region
    $region18: #{tpu_custom_call.1} parent=1 // pred_check
      _
    $region19: #{tpu_custom_call.1} parent=1 // pred_check_branch
      %25 = sbr.rel (0) target = $region21
    $region20: #{tpu_custom_call.1} parent=1 // pred_region
      _
    $region21: #{tpu_custom_call.1} parent=1 // pred_fallthru
      _
    // Predicated region
    $region22: #{tpu_custom_call.1} parent=1 // pred_check
      _
    $region23: #{tpu_custom_call.1} parent=1 // pred_check_branch
      %27 = sbr.rel (0) target = $region25
    $region24: #{tpu_custom_call.1} parent=1 // pred_region
      _
    $region25: #{tpu_custom_call.1} parent=1 // pred_fallthru
      _
    // Predicated region
    $region26: #{tpu_custom_call.1} parent=1 // pred_check
      _
    $region27: #{tpu_custom_call.1} parent=1 // pred_check_branch
      %29 = sbr.rel (0) target = $region29
    $region28: #{tpu_custom_call.1} parent=1 // pred_region
      _
    $region29: #{tpu_custom_call.1} parent=1 // pred_fallthru
      _
    // Predicated region
    $region30: #{tpu_custom_call.1} parent=1 // pred_check
      _
    $region31: #{tpu_custom_call.1} parent=1 // pred_check_branch
      %31 = sbr.rel (0) target = $region33
    $region32: #{tpu_custom_call.1} parent=1 // pred_region
      _
    $region33: #{tpu_custom_call.1} parent=1 // pred_fallthru
      _
    // Predicated region
    $region34: #{tpu_custom_call.1} parent=1 // pred_check
      _
    $region35: #{tpu_custom_call.1} parent=1 // pred_check_branch
      %33 = sbr.rel (0) target = $region37
    $region36: #{tpu_custom_call.1} parent=1 // pred_region
      _
    $region37: #{tpu_custom_call.1} parent=1 // pred_fallthru
      _
    // Predicated region
    $region38: #{tpu_custom_call.1} parent=1 // pred_check
      _
    $region39: #{tpu_custom_call.1} parent=1 // pred_check_branch
      %35 = sbr.rel (0) target = $region41
    $region40: #{tpu_custom_call.1} parent=1 // pred_region
      _
    $region41: #{tpu_custom_call.1} parent=1 // pred_fallthru
      _
    %v36 = vld [vmem:[%s0] sm:$0xff]
    %v37 = vld [vmem:[%s0 + $0x8] sm:$0xff]
    %vm38 = vcmask 261120
    %v39 = vsel %vm38, %v36, 0.0
    %40 = vadd.xlane.f32.xlu0 %v39
    %v41 = vpop.xlane.xlu0 %40
    %v42 = vsel %vm38, %v37, 0.0
    %43 = vadd.xlane.f32.xlu0 %v42
    %v44 = vpop.xlane.xlu0 %43
    %v45 = vrcp.pop 32.0
    %v46 = vmul.f32 %v41, %v45
    %v47 = vmul.f32 %v44, %v45
    %v48 = vsub.f32 %v36, %v46
    %v49 = vsub.f32 %v37, %v47
    %v50 = vmul.f32 %v48, %v48
    %v51 = vmul.f32 %v49, %v49
    %v52 = vsel %vm38, %v50, 0.0
    %53 = vadd.xlane.f32.xlu0 %v52
    %v54 = vpop.xlane.xlu0 %53
    %v55 = vsel %vm38, %v51, 0.0
    %56 = vadd.xlane.f32.xlu0 %v55
    %v57 = vpop.xlane.xlu0 %56
    %v58 = vmul.f32 %v54, %v45
    %v59 = vmul.f32 %v57, %v45
    %v60 = vadd.f32 %v58, 1e-05
    %v61 = vadd.f32 %v59, 1e-05
    %v62 = vrsqrt.pop %v60
    %v63 = vmul.f32 %v60, %v62
    %vm64 = vcmp.eq.f32.partialorder %v60, inf
    %v65 = vsel %vm64, %v60, %v63
    %vm66 = vcmp.eq.f32.partialorder %v60, 0.0
    %v67 = vand.u32 %v60, 2147483648
    %v68 = vsel %vm66, %v67, %v65
    %v69 = vrsqrt.pop %v61
    %v70 = vmul.f32 %v61, %v69
    %vm71 = vcmp.eq.f32.partialorder %v61, inf
    %v72 = vsel %vm71, %v61, %v70
    %vm73 = vcmp.eq.f32.partialorder %v61, 0.0
    %v74 = vand.u32 %v61, 2147483648
    %v75 = vsel %vm73, %v74, %v72
    %v76 = vrcp.pop %v68
    %v77 = vmul.f32 %v48, %v76
    %v78 = vrcp.pop %v75
    %v79 = vmul.f32 %v49, %v78
    %v80 = vld [vmem:[%s2] sm:$0xff]
    %v81 = vld [vmem:[%s2 + $0x8] sm:$0xff]
    %v82 = vld [vmem:[%s2 + $0x10] sm:$0xff]
    %v83 = vld [vmem:[%s2 + $0x18] sm:$0xff]
    %v84 = vld [vmem:[%s2 + $0x20] sm:$0xff]
    %v85 = vld [vmem:[%s2 + $0x28] sm:$0xff]
    %v86 = vld [vmem:[%s2 + $0x30] sm:$0xff]
    %v87 = vld [vmem:[%s2 + $0x38] sm:$0xff]
    %v88 = vld [vmem:[%s2 + $0x40] sm:$0xff]
    %v89 = vld [vmem:[%s2 + $0x48] sm:$0xff]
    %v90 = vld [vmem:[%s2 + $0x50] sm:$0xff]
    %v91 = vld [vmem:[%s2 + $0x58] sm:$0xff]
    %v92 = vld [vmem:[%s3] sm:$0x7]
    %v94 = vlaneseq
    %v95 = vshrl.u32 %v94, 7
    %v96 = vsub.s32 0, %v95
    %v97 = vrot.slane %v92, %v96
    %v98 = vlaneseq
    %v99 = vshrl.u32 %v98, 7
    %v100 = vsub.s32 1, %v99
    %v101 = vrot.slane %v92, %v100
    %v102 = vlaneseq
    %v103 = vshrl.u32 %v102, 7
    %v104 = vsub.s32 2, %v103
    %v105 = vrot.slane %v92, %v104
    %v110 = vsel %vm38, %v77, 0
    %v113 = vsel %vm38, %v79, 0
    %115 = vmatprep.subr.mxu0 %v81
    %116 = vmatpush1.msra.mxu0 %v80
    %117 = vmatprep.subr.mxu0 %v84
    %118 = vmatpush1.msra.mxu0 %v83
    %119 = vmatprep.subr.mxu0 %v87
    %120 = vmatpush1.msra.mxu0 %v86
    %121 = vmatprep.subr.mxu0 %v90
    %122 = vmatpush1.msra.mxu0 %v89
    %123 = vmatprep.subr.mxu0 0.0
    %124 = vmatpush1.msra.mxu0 0.0
    %125 = vmatprep.subr.mxu0 0.0
    %126 = vmatpush1.msra.mxu0 0.0
    %127 = vmatprep.subr.mxu0 0.0
    %128 = vmatpush1.msra.mxu0 0.0
    %129 = vmatprep.subr.mxu0 0.0
    %130 = vmatpush1.msra.mxu0 0.0
    %131 = vmatprep.subr.mxu0 0.0
    %132 = vmatpush1.msra.mxu0 0.0
    %133 = vmatprep.subr.mxu0 0.0
    %134 = vmatpush1.msra.mxu0 0.0
    %135 = vmatprep.subr.mxu0 0.0
    %136 = vmatpush1.msra.mxu0 0.0
    %137 = vmatprep.subr.mxu0 0.0
    %138 = vmatpush1.msra.mxu0 0.0
    %139 = vmatprep.subr.mxu0 0.0
    %140 = vmatpush1.msra.mxu0 0.0
    %141 = vmatprep.subr.mxu0 0.0
    %142 = vmatpush1.msra.mxu0 0.0
    %143 = vmatprep.subr.mxu0 0.0
    %144 = vmatpush1.msra.mxu0 0.0
    %145 = vmatprep.subr.mxu0 0.0
    %146 = vmatpush1.msra.mxu0 0.0
    %147 = vmatprep.subr.mxu0 0.0
    %148 = vmatpush1.msra.mxu0 0.0
    %149 = vmatprep.subr.mxu0 0.0
    %150 = vmatpush1.msra.mxu0 0.0
    %151 = vmatprep.subr.mxu0 0.0
    %152 = vmatpush1.msra.mxu0 0.0
    %153 = vmatprep.subr.mxu0 0.0
    %154 = vmatpush1.msra.mxu0 0.0
    %155 = vmatprep.subr.mxu0 0.0
    %156 = vmatpush1.msra.mxu0 0.0
    %157 = vmatprep.subr.mxu0 0.0
    %158 = vmatpush1.msra.mxu0 0.0
    %159 = vmatprep.subr.mxu0 0.0
    %160 = vmatpush1.msra.mxu0 0.0
    %161 = vmatprep.subr.mxu0 0.0
    %162 = vmatpush1.msra.mxu0 0.0
    %163 = vmatprep.subr.mxu0 0.0
    %164 = vmatpush1.msra.mxu0 0.0
    %165 = vmatprep.subr.mxu0 0.0
    %166 = vmatpush1.msra.mxu0 0.0
    %167 = vmatprep.subr.mxu0 0.0
    %168 = vmatpush1.msra.mxu0 0.0
    %169 = vmatprep.subr.mxu0 0.0
    %170 = vmatpush1.msra.mxu0 0.0
    %171 = vmatprep.subr.mxu0 0.0
    %172 = vmatpush1.msra.mxu0 0.0
    %173 = vmatprep.subr.mxu0 0.0
    %174 = vmatpush1.msra.mxu0 0.0
    %175 = vmatprep.subr.mxu0 0.0
    %176 = vmatpush1.msra.mxu0 0.0
    %177 = vmatprep.subr.mxu0 0.0
    %178 = vmatpush1.msra.mxu0 0.0
    %179 = vmatprep.mubr.f32.mxu0 0.0
    %180 = vmatmul.mubr.f32.gmra.mrb[0].mxu0 %v110
    %v181 = vpop.f32.mrb[0].mxu0
    %v182 = vadd.f32 %v97, %v181
    %v183 = vpop.f32.mrb[0].mxu0
    %v184 = vadd.f32 %v101, %v183
    %185 = vmatprep.mubr.f32.mxu0 0.0
    %186 = vmatmul.mubr.f32.gmra.mrb[0].mxu0 %v113
    %v187 = vpop.f32.mrb[0].mxu0
    %v188 = vadd.f32 %v97, %v187
    %v189 = vpop.f32.mrb[0].mxu0
    %v190 = vadd.f32 %v101, %v189
    %191 = vdwg.mxu0
    %192 = vmatprep.subr.mxu0 0.0
    %193 = vmatpush1.msra.mxu0 %v82
    %194 = vmatprep.subr.mxu0 0.0
    %195 = vmatpush1.msra.mxu0 %v85
    %196 = vmatprep.subr.mxu0 0.0
    %197 = vmatpush1.msra.mxu0 %v88
    %198 = vmatprep.subr.mxu0 0.0
    %199 = vmatpush1.msra.mxu0 %v91
    %200 = vmatprep.subr.mxu0 0.0
    %201 = vmatpush1.msra.mxu0 0.0
    %202 = vmatprep.subr.mxu0 0.0
    %203 = vmatpush1.msra.mxu0 0.0
    %204 = vmatprep.subr.mxu0 0.0
    %205 = vmatpush1.msra.mxu0 0.0
    %206 = vmatprep.subr.mxu0 0.0
    %207 = vmatpush1.msra.mxu0 0.0
    %208 = vmatprep.subr.mxu0 0.0
    %209 = vmatpush1.msra.mxu0 0.0
    %210 = vmatprep.subr.mxu0 0.0
    %211 = vmatpush1.msra.mxu0 0.0
    %212 = vmatprep.subr.mxu0 0.0
    %213 = vmatpush1.msra.mxu0 0.0
    %214 = vmatprep.subr.mxu0 0.0
    %215 = vmatpush1.msra.mxu0 0.0
    %216 = vmatprep.subr.mxu0 0.0
    %217 = vmatpush1.msra.mxu0 0.0
    %218 = vmatprep.subr.mxu0 0.0
    %219 = vmatpush1.msra.mxu0 0.0
    %220 = vmatprep.subr.mxu0 0.0
    %221 = vmatpush1.msra.mxu0 0.0
    %222 = vmatprep.subr.mxu0 0.0
    %223 = vmatpush1.msra.mxu0 0.0
    %224 = vmatprep.subr.mxu0 0.0
    %225 = vmatpush1.msra.mxu0 0.0
    %226 = vmatprep.subr.mxu0 0.0
    %227 = vmatpush1.msra.mxu0 0.0
    %228 = vmatprep.subr.mxu0 0.0
    %229 = vmatpush1.msra.mxu0 0.0
    %230 = vmatprep.subr.mxu0 0.0
    %231 = vmatpush1.msra.mxu0 0.0
    %232 = vmatprep.subr.mxu0 0.0
    %233 = vmatpush1.msra.mxu0 0.0
    %234 = vmatprep.subr.mxu0 0.0
    %235 = vmatpush1.msra.mxu0 0.0
    %236 = vmatprep.subr.mxu0 0.0
    %237 = vmatpush1.msra.mxu0 0.0
    %238 = vmatprep.subr.mxu0 0.0
    %239 = vmatpush1.msra.mxu0 0.0
    %240 = vmatprep.subr.mxu0 0.0
    %241 = vmatpush1.msra.mxu0 0.0
    %242 = vmatprep.subr.mxu0 0.0
    %243 = vmatpush1.msra.mxu0 0.0
    %244 = vmatprep.subr.mxu0 0.0
    %245 = vmatpush1.msra.mxu0 0.0
    %246 = vmatprep.subr.mxu0 0.0
    %247 = vmatpush1.msra.mxu0 0.0
    %248 = vmatprep.subr.mxu0 0.0
    %249 = vmatpush1.msra.mxu0 0.0
    %250 = vmatprep.subr.mxu0 0.0
    %251 = vmatpush1.msra.mxu0 0.0
    %252 = vmatprep.subr.mxu0 0.0
    %253 = vmatpush1.msra.mxu0 0.0
    %254 = vmatprep.subr.mxu0 0.0
    %255 = vmatpush1.msra.mxu0 0.0
    %256 = vmatprep.mubr.f32.mxu0 0.0
    %257 = vmatmul.mubr.f32.gmra.mrb[0].mxu0 %v110
    %v258 = vpop.f32.mrb[0].mxu0
    %v259 = vadd.f32 %v105, %v258
    %v260 = vpop.f32.mrb[0].mxu0
    %261 = vmatprep.mubr.f32.mxu0 0.0
    %262 = vmatmul.mubr.f32.gmra.mrb[0].mxu0 %v113
    %v263 = vpop.f32.mrb[0].mxu0
    %v264 = vadd.f32 %v105, %v263
    %v265 = vpop.f32.mrb[0].mxu0
    %266 = vdwg.mxu0
    %269 = vrot.lane.b32.xlu0 %v182, 104
    %v270 = vpop.permute.xlu0 %269
    %271 = vrot.lane.b32.xlu0 %v188, 104
    %v272 = vpop.permute.xlu0 %271
    %273 = vrot.lane.b32.xlu0 %v182, 80
    %v274 = vpop.permute.xlu0 %273
    %275 = vrot.lane.b32.xlu0 %v188, 80
    %v276 = vpop.permute.xlu0 %275
    %277 = vrot.lane.b32.xlu0 %v182, 56
    %v278 = vpop.permute.xlu0 %277
    %279 = vrot.lane.b32.xlu0 %v188, 56
    %v280 = vpop.permute.xlu0 %279
    %281 = vrot.lane.b32.xlu0 %v182, 32
    %v282 = vpop.permute.xlu0 %281
    %283 = vrot.lane.b32.xlu0 %v188, 32
    %v284 = vpop.permute.xlu0 %283
    %287 = vrot.lane.b32.xlu0 %v182, 8
    %v288 = vpop.permute.xlu0 %287
    %289 = vrot.lane.b32.xlu0 %v184, 8
    %v290 = vpop.permute.xlu0 %289
    %291 = vrot.lane.b32.xlu0 %v188, 8
    %v292 = vpop.permute.xlu0 %291
    %293 = vrot.lane.b32.xlu0 %v190, 8
    %v294 = vpop.permute.xlu0 %293
    %vm295 = vcmask 64512
    %v296 = vsel %vm295, %v288, %v290
    %v297 = vsel %vm295, %v292, %v294
    %298 = vrot.lane.b32.xlu0 %v184, 112
    %v299 = vpop.permute.xlu0 %298
    %300 = vrot.lane.b32.xlu0 %v190, 112
    %v301 = vpop.permute.xlu0 %300
    %302 = vrot.lane.b32.xlu0 %v184, 88
    %v303 = vpop.permute.xlu0 %302
    %304 = vrot.lane.b32.xlu0 %v190, 88
    %v305 = vpop.permute.xlu0 %304
    %306 = vrot.lane.b32.xlu0 %v184, 64
    %v307 = vpop.permute.xlu0 %306
    %308 = vrot.lane.b32.xlu0 %v190, 64
    %v309 = vpop.permute.xlu0 %308
    %310 = vrot.lane.b32.xlu0 %v184, 40
    %v311 = vpop.permute.xlu0 %310
    %312 = vrot.lane.b32.xlu0 %v190, 40
    %v313 = vpop.permute.xlu0 %312
    %316 = vrot.lane.b32.xlu0 %v184, 16
    %v317 = vpop.permute.xlu0 %316
    %318 = vrot.lane.b32.xlu0 %v259, 16
    %v319 = vpop.permute.xlu0 %318
    %320 = vrot.lane.b32.xlu0 %v190, 16
    %v321 = vpop.permute.xlu0 %320
    %322 = vrot.lane.b32.xlu0 %v264, 16
    %v323 = vpop.permute.xlu0 %322
    %vm324 = vcmask 130048
    %v325 = vsel %vm324, %v317, %v319
    %v326 = vsel %vm324, %v321, %v323
    %327 = vrot.lane.b32.xlu0 %v259, 120
    %v328 = vpop.permute.xlu0 %327
    %329 = vrot.lane.b32.xlu0 %v264, 120
    %v330 = vpop.permute.xlu0 %329
    %v331 = vld [vmem:[%s1] sm:$0xff]
    %v332 = vld [vmem:[%s1 + $0x8] sm:$0xff]
    %v333 = vld [vmem:[%s1 + $0x10] sm:$0xff]
    %v334 = vld [vmem:[%s1 + $0x18] sm:$0xff]
    %v335 = vld [vmem:[%s1 + $0x20] sm:$0xff]
    %v336 = vld [vmem:[%s1 + $0x28] sm:$0xff]
    %337 = vrot.lane.b32.xlu0 %v182, 120
    %v338 = vpop.permute.xlu0 %337
    %339 = vrot.lane.b32.xlu0 %v188, 120
    %v340 = vpop.permute.xlu0 %339
    %v341 = vsel %vm295, %v182, 0
    %v343 = vsel %vm295, %v188, 0
    %v345 = vsel %vm295, %v338, 0
    %v347 = vsel %vm295, %v340, 0
    %349 = vmatprep.subr.mxu0 0.0
    %350 = vmatpush1.xpose.msra.mxu0 %v345
    %351 = vmatprep.subr.mxu0 0.0
    %352 = vmatpush1.xpose.msra.mxu0 %v347
    %353 = vmatprep.subr.mxu0 0.0
    %354 = vmatpush1.xpose.msra.mxu0 0.0
    %355 = vmatprep.subr.mxu0 0.0
    %356 = vmatpush1.xpose.msra.mxu0 0.0
    %357 = vmatprep.subr.mxu0 0.0
    %358 = vmatpush1.xpose.msra.mxu0 0.0
    %359 = vmatprep.subr.mxu0 0.0
    %360 = vmatpush1.xpose.msra.mxu0 0.0
    %361 = vmatprep.subr.mxu0 0.0
    %362 = vmatpush1.xpose.msra.mxu0 0.0
    %363 = vmatprep.subr.mxu0 0.0
    %364 = vmatpush1.xpose.msra.mxu0 0.0
    %365 = vmatprep.subr.mxu0 0.0
    %366 = vmatpush1.xpose.msra.mxu0 0.0
    %367 = vmatprep.subr.mxu0 0.0
    %368 = vmatpush1.xpose.msra.mxu0 0.0
    %369 = vmatprep.subr.mxu0 0.0
    %370 = vmatpush1.xpose.msra.mxu0 0.0
    %371 = vmatprep.subr.mxu0 0.0
    %372 = vmatpush1.xpose.msra.mxu0 0.0
    %373 = vmatprep.subr.mxu0 0.0
    %374 = vmatpush1.xpose.msra.mxu0 0.0
    %375 = vmatprep.subr.mxu0 0.0
    %376 = vmatpush1.xpose.msra.mxu0 0.0
    %377 = vmatprep.subr.mxu0 0.0
    %378 = vmatpush1.xpose.msra.mxu0 0.0
    %379 = vmatprep.subr.mxu0 0.0
    %380 = vmatpush1.xpose.msra.mxu0 0.0
    %381 = vmatprep.subr.mxu0 0.0
    %382 = vmatpush1.xpose.msra.mxu0 0.0
    %383 = vmatprep.subr.mxu0 0.0
    %384 = vmatpush1.xpose.msra.mxu0 0.0
    %385 = vmatprep.subr.mxu0 0.0
    %386 = vmatpush1.xpose.msra.mxu0 0.0
    %387 = vmatprep.subr.mxu0 0.0
    %388 = vmatpush1.xpose.msra.mxu0 0.0
    %389 = vmatprep.subr.mxu0 0.0
    %390 = vmatpush1.xpose.msra.mxu0 0.0
    %391 = vmatprep.subr.mxu0 0.0
    %392 = vmatpush1.xpose.msra.mxu0 0.0
    %393 = vmatprep.subr.mxu0 0.0
    %394 = vmatpush1.xpose.msra.mxu0 0.0
    %395 = vmatprep.subr.mxu0 0.0
    %396 = vmatpush1.xpose.msra.mxu0 0.0
    %397 = vmatprep.subr.mxu0 0.0
    %398 = vmatpush1.xpose.msra.mxu0 0.0
    %399 = vmatprep.subr.mxu0 0.0
    %400 = vmatpush1.xpose.msra.mxu0 0.0
    %401 = vmatprep.subr.mxu0 0.0
    %402 = vmatpush1.xpose.msra.mxu0 0.0
    %403 = vmatprep.subr.mxu0 0.0
    %404 = vmatpush1.xpose.msra.mxu0 0.0
    %405 = vmatprep.subr.mxu0 0.0
    %406 = vmatpush1.xpose.msra.mxu0 0.0
    %407 = vmatprep.subr.mxu0 0.0
    %408 = vmatpush1.xpose.msra.mxu0 0.0
    %409 = vmatprep.subr.mxu0 0.0
    %410 = vmatpush1.xpose.msra.mxu0 0.0
    %411 = vmatprep.subr.mxu0 0.0
    %412 = vmatpush1.xpose.msra.mxu0 0.0
    %413 = vmatprep.mubr.f32.mxu0 0.0
    %414 = vmatmul.mubr.f32.gmra.mrb[0].mxu0 %v341
    %v415 = vpop.f32.mrb[0].mxu0
    %v416 = vadd.f32 %v331, %v415
    %v417 = vpop.f32.mrb[0].mxu0
    %418 = vmatprep.mubr.f32.mxu0 0.0
    %419 = vmatmul.mubr.f32.gmra.mrb[0].mxu0 %v343
    %v420 = vpop.f32.mrb[0].mxu0
    %v421 = vadd.f32 %v332, %v420
    %v422 = vpop.f32.mrb[0].mxu0
    %423 = vdwg.mxu0
    %424 = vrot.lane.b32.xlu0 %v270, 120
    %v425 = vpop.permute.xlu0 %424
    %426 = vrot.lane.b32.xlu0 %v272, 120
    %v427 = vpop.permute.xlu0 %426
    %v428 = vsel %vm295, %v270, 0
    %v430 = vsel %vm295, %v272, 0
    %v432 = vsel %vm295, %v425, 0
    %v434 = vsel %vm295, %v427, 0
    %436 = vmatprep.subr.mxu0 0.0
    %437 = vmatpush1.xpose.msra.mxu0 %v432
    %438 = vmatprep.subr.mxu0 0.0
    %439 = vmatpush1.xpose.msra.mxu0 %v434
    %440 = vmatprep.subr.mxu0 0.0
    %441 = vmatpush1.xpose.msra.mxu0 0.0
    %442 = vmatprep.subr.mxu0 0.0
    %443 = vmatpush1.xpose.msra.mxu0 0.0
    %444 = vmatprep.subr.mxu0 0.0
    %445 = vmatpush1.xpose.msra.mxu0 0.0
    %446 = vmatprep.subr.mxu0 0.0
    %447 = vmatpush1.xpose.msra.mxu0 0.0
    %448 = vmatprep.subr.mxu0 0.0
    %449 = vmatpush1.xpose.msra.mxu0 0.0
    %450 = vmatprep.subr.mxu0 0.0
    %451 = vmatpush1.xpose.msra.mxu0 0.0
    %452 = vmatprep.subr.mxu0 0.0
    %453 = vmatpush1.xpose.msra.mxu0 0.0
    %454 = vmatprep.subr.mxu0 0.0
    %455 = vmatpush1.xpose.msra.mxu0 0.0
    %456 = vmatprep.subr.mxu0 0.0
    %457 = vmatpush1.xpose.msra.mxu0 0.0
    %458 = vmatprep.subr.mxu0 0.0
    %459 = vmatpush1.xpose.msra.mxu0 0.0
    %460 = vmatprep.subr.mxu0 0.0
    %461 = vmatpush1.xpose.msra.mxu0 0.0
    %462 = vmatprep.subr.mxu0 0.0
    %463 = vmatpush1.xpose.msra.mxu0 0.0
    %464 = vmatprep.subr.mxu0 0.0
    %465 = vmatpush1.xpose.msra.mxu0 0.0
    %466 = vmatprep.subr.mxu0 0.0
    %467 = vmatpush1.xpose.msra.mxu0 0.0
    %468 = vmatprep.subr.mxu0 0.0
    %469 = vmatpush1.xpose.msra.mxu0 0.0
    %470 = vmatprep.subr.mxu0 0.0
    %471 = vmatpush1.xpose.msra.mxu0 0.0
    %472 = vmatprep.subr.mxu0 0.0
    %473 = vmatpush1.xpose.msra.mxu0 0.0
    %474 = vmatprep.subr.mxu0 0.0
    %475 = vmatpush1.xpose.msra.mxu0 0.0
    %476 = vmatprep.subr.mxu0 0.0
    %477 = vmatpush1.xpose.msra.mxu0 0.0
    %478 = vmatprep.subr.mxu0 0.0
    %479 = vmatpush1.xpose.msra.mxu0 0.0
    %480 = vmatprep.subr.mxu0 0.0
    %481 = vmatpush1.xpose.msra.mxu0 0.0
    %482 = vmatprep.subr.mxu0 0.0
    %483 = vmatpush1.xpose.msra.mxu0 0.0
    %484 = vmatprep.subr.mxu0 0.0
    %485 = vmatpush1.xpose.msra.mxu0 0.0
    %486 = vmatprep.subr.mxu0 0.0
    %487 = vmatpush1.xpose.msra.mxu0 0.0
    %488 = vmatprep.subr.mxu0 0.0
    %489 = vmatpush1.xpose.msra.mxu0 0.0
    %490 = vmatprep.subr.mxu0 0.0
    %491 = vmatpush1.xpose.msra.mxu0 0.0
    %492 = vmatprep.subr.mxu0 0.0
    %493 = vmatpush1.xpose.msra.mxu0 0.0
    %494 = vmatprep.subr.mxu0 0.0
    %495 = vmatpush1.xpose.msra.mxu0 0.0
    %496 = vmatprep.subr.mxu0 0.0
    %497 = vmatpush1.xpose.msra.mxu0 0.0
    %498 = vmatprep.subr.mxu0 0.0
    %499 = vmatpush1.xpose.msra.mxu0 0.0
    %500 = vmatprep.mubr.f32.mxu0 0.0
    %501 = vmatmul.mubr.f32.gmra.mrb[0].mxu0 %v428
    %v502 = vpop.f32.mrb[0].mxu0
    %v503 = vadd.f32 %v331, %v502
    %v504 = vpop.f32.mrb[0].mxu0
    %505 = vmatprep.mubr.f32.mxu0 0.0
    %506 = vmatmul.mubr.f32.gmra.mrb[0].mxu0 %v430
    %v507 = vpop.f32.mrb[0].mxu0
    %v508 = vadd.f32 %v332, %v507
    %v509 = vpop.f32.mrb[0].mxu0
    %510 = vdwg.mxu0
    %511 = vrot.lane.b32.xlu0 %v274, 120
    %v512 = vpop.permute.xlu0 %511
    %513 = vrot.lane.b32.xlu0 %v276, 120
    %v514 = vpop.permute.xlu0 %513
    %v515 = vsel %vm295, %v274, 0
    %v517 = vsel %vm295, %v276, 0
    %v519 = vsel %vm295, %v512, 0
    %v521 = vsel %vm295, %v514, 0
    %523 = vmatprep.subr.mxu0 0.0
    %524 = vmatpush1.xpose.msra.mxu0 %v519
    %525 = vmatprep.subr.mxu0 0.0
    %526 = vmatpush1.xpose.msra.mxu0 %v521
    %527 = vmatprep.subr.mxu0 0.0
    %528 = vmatpush1.xpose.msra.mxu0 0.0
    %529 = vmatprep.subr.mxu0 0.0
    %530 = vmatpush1.xpose.msra.mxu0 0.0
    %531 = vmatprep.subr.mxu0 0.0
    %532 = vmatpush1.xpose.msra.mxu0 0.0
    %533 = vmatprep.subr.mxu0 0.0
    %534 = vmatpush1.xpose.msra.mxu0 0.0
    %535 = vmatprep.subr.mxu0 0.0
    %536 = vmatpush1.xpose.msra.mxu0 0.0
    %537 = vmatprep.subr.mxu0 0.0
    %538 = vmatpush1.xpose.msra.mxu0 0.0
    %539 = vmatprep.subr.mxu0 0.0
    %540 = vmatpush1.xpose.msra.mxu0 0.0
    %541 = vmatprep.subr.mxu0 0.0
    %542 = vmatpush1.xpose.msra.mxu0 0.0
    %543 = vmatprep.subr.mxu0 0.0
    %544 = vmatpush1.xpose.msra.mxu0 0.0
    %545 = vmatprep.subr.mxu0 0.0
    %546 = vmatpush1.xpose.msra.mxu0 0.0
    %547 = vmatprep.subr.mxu0 0.0
    %548 = vmatpush1.xpose.msra.mxu0 0.0
    %549 = vmatprep.subr.mxu0 0.0
    %550 = vmatpush1.xpose.msra.mxu0 0.0
    %551 = vmatprep.subr.mxu0 0.0
    %552 = vmatpush1.xpose.msra.mxu0 0.0
    %553 = vmatprep.subr.mxu0 0.0
    %554 = vmatpush1.xpose.msra.mxu0 0.0
    %555 = vmatprep.subr.mxu0 0.0
    %556 = vmatpush1.xpose.msra.mxu0 0.0
    %557 = vmatprep.subr.mxu0 0.0
    %558 = vmatpush1.xpose.msra.mxu0 0.0
    %559 = vmatprep.subr.mxu0 0.0
    %560 = vmatpush1.xpose.msra.mxu0 0.0
    %561 = vmatprep.subr.mxu0 0.0
    %562 = vmatpush1.xpose.msra.mxu0 0.0
    %563 = vmatprep.subr.mxu0 0.0
    %564 = vmatpush1.xpose.msra.mxu0 0.0
    %565 = vmatprep.subr.mxu0 0.0
    %566 = vmatpush1.xpose.msra.mxu0 0.0
    %567 = vmatprep.subr.mxu0 0.0
    %568 = vmatpush1.xpose.msra.mxu0 0.0
    %569 = vmatprep.subr.mxu0 0.0
    %570 = vmatpush1.xpose.msra.mxu0 0.0
    %571 = vmatprep.subr.mxu0 0.0
    %572 = vmatpush1.xpose.msra.mxu0 0.0
    %573 = vmatprep.subr.mxu0 0.0
    %574 = vmatpush1.xpose.msra.mxu0 0.0
    %575 = vmatprep.subr.mxu0 0.0
    %576 = vmatpush1.xpose.msra.mxu0 0.0
    %577 = vmatprep.subr.mxu0 0.0
    %578 = vmatpush1.xpose.msra.mxu0 0.0
    %579 = vmatprep.subr.mxu0 0.0
    %580 = vmatpush1.xpose.msra.mxu0 0.0
    %581 = vmatprep.subr.mxu0 0.0
    %582 = vmatpush1.xpose.msra.mxu0 0.0
    %583 = vmatprep.subr.mxu0 0.0
    %584 = vmatpush1.xpose.msra.mxu0 0.0
    %585 = vmatprep.subr.mxu0 0.0
    %586 = vmatpush1.xpose.msra.mxu0 0.0
    %587 = vmatprep.mubr.f32.mxu0 0.0
    %588 = vmatmul.mubr.f32.gmra.mrb[0].mxu0 %v515
    %v589 = vpop.f32.mrb[0].mxu0
    %v590 = vadd.f32 %v331, %v589
    %v591 = vpop.f32.mrb[0].mxu0
    %592 = vmatprep.mubr.f32.mxu0 0.0
    %593 = vmatmul.mubr.f32.gmra.mrb[0].mxu0 %v517
    %v594 = vpop.f32.mrb[0].mxu0
    %v595 = vadd.f32 %v332, %v594
    %v596 = vpop.f32.mrb[0].mxu0
    %597 = vdwg.mxu0
    %598 = vrot.lane.b32.xlu0 %v278, 120
    %v599 = vpop.permute.xlu0 %598
    %600 = vrot.lane.b32.xlu0 %v280, 120
    %v601 = vpop.permute.xlu0 %600
    %v602 = vsel %vm295, %v278, 0
    %v604 = vsel %vm295, %v280, 0
    %v606 = vsel %vm295, %v599, 0
    %v608 = vsel %vm295, %v601, 0
    %610 = vmatprep.subr.mxu0 0.0
    %611 = vmatpush1.xpose.msra.mxu0 %v606
    %612 = vmatprep.subr.mxu0 0.0
    %613 = vmatpush1.xpose.msra.mxu0 %v608
    %614 = vmatprep.subr.mxu0 0.0
    %615 = vmatpush1.xpose.msra.mxu0 0.0
    %616 = vmatprep.subr.mxu0 0.0
    %617 = vmatpush1.xpose.msra.mxu0 0.0
    %618 = vmatprep.subr.mxu0 0.0
    %619 = vmatpush1.xpose.msra.mxu0 0.0
    %620 = vmatprep.subr.mxu0 0.0
    %621 = vmatpush1.xpose.msra.mxu0 0.0
    %622 = vmatprep.subr.mxu0 0.0
    %623 = vmatpush1.xpose.msra.mxu0 0.0
    %624 = vmatprep.subr.mxu0 0.0
    %625 = vmatpush1.xpose.msra.mxu0 0.0
    %626 = vmatprep.subr.mxu0 0.0
    %627 = vmatpush1.xpose.msra.mxu0 0.0
    %628 = vmatprep.subr.mxu0 0.0
    %629 = vmatpush1.xpose.msra.mxu0 0.0
    %630 = vmatprep.subr.mxu0 0.0
    %631 = vmatpush1.xpose.msra.mxu0 0.0
    %632 = vmatprep.subr.mxu0 0.0
    %633 = vmatpush1.xpose.msra.mxu0 0.0
    %634 = vmatprep.subr.mxu0 0.0
    %635 = vmatpush1.xpose.msra.mxu0 0.0
    %636 = vmatprep.subr.mxu0 0.0
    %637 = vmatpush1.xpose.msra.mxu0 0.0
    %638 = vmatprep.subr.mxu0 0.0
    %639 = vmatpush1.xpose.msra.mxu0 0.0
    %640 = vmatprep.subr.mxu0 0.0
    %641 = vmatpush1.xpose.msra.mxu0 0.0
    %642 = vmatprep.subr.mxu0 0.0
    %643 = vmatpush1.xpose.msra.mxu0 0.0
    %644 = vmatprep.subr.mxu0 0.0
    %645 = vmatpush1.xpose.msra.mxu0 0.0
    %646 = vmatprep.subr.mxu0 0.0
    %647 = vmatpush1.xpose.msra.mxu0 0.0
    %648 = vmatprep.subr.mxu0 0.0
    %649 = vmatpush1.xpose.msra.mxu0 0.0
    %650 = vmatprep.subr.mxu0 0.0
    %651 = vmatpush1.xpose.msra.mxu0 0.0
    %652 = vmatprep.subr.mxu0 0.0
    %653 = vmatpush1.xpose.msra.mxu0 0.0
    %654 = vmatprep.subr.mxu0 0.0
    %655 = vmatpush1.xpose.msra.mxu0 0.0
    %656 = vmatprep.subr.mxu0 0.0
    %657 = vmatpush1.xpose.msra.mxu0 0.0
    %658 = vmatprep.subr.mxu0 0.0
    %659 = vmatpush1.xpose.msra.mxu0 0.0
    %660 = vmatprep.subr.mxu0 0.0
    %661 = vmatpush1.xpose.msra.mxu0 0.0
    %662 = vmatprep.subr.mxu0 0.0
    %663 = vmatpush1.xpose.msra.mxu0 0.0
    %664 = vmatprep.subr.mxu0 0.0
    %665 = vmatpush1.xpose.msra.mxu0 0.0
    %666 = vmatprep.subr.mxu0 0.0
    %667 = vmatpush1.xpose.msra.mxu0 0.0
    %668 = vmatprep.subr.mxu0 0.0
    %669 = vmatpush1.xpose.msra.mxu0 0.0
    %670 = vmatprep.subr.mxu0 0.0
    %671 = vmatpush1.xpose.msra.mxu0 0.0
    %672 = vmatprep.subr.mxu0 0.0
    %673 = vmatpush1.xpose.msra.mxu0 0.0
    %674 = vmatprep.mubr.f32.mxu0 0.0
    %675 = vmatmul.mubr.f32.gmra.mrb[0].mxu0 %v602
    %v676 = vpop.f32.mrb[0].mxu0
    %v677 = vadd.f32 %v331, %v676
    %v678 = vpop.f32.mrb[0].mxu0
    %679 = vmatprep.mubr.f32.mxu0 0.0
    %680 = vmatmul.mubr.f32.gmra.mrb[0].mxu0 %v604
    %v681 = vpop.f32.mrb[0].mxu0
    %v682 = vadd.f32 %v332, %v681
    %v683 = vpop.f32.mrb[0].mxu0
    %684 = vdwg.mxu0
    %685 = vrot.lane.b32.xlu0 %v282, 120
    %v686 = vpop.permute.xlu0 %685
    %687 = vrot.lane.b32.xlu0 %v284, 120
    %v688 = vpop.permute.xlu0 %687
    %v689 = vsel %vm295, %v282, 0
    %v691 = vsel %vm295, %v284, 0
    %v693 = vsel %vm295, %v686, 0
    %v695 = vsel %vm295, %v688, 0
    %697 = vmatprep.subr.mxu0 0.0
    %698 = vmatpush1.xpose.msra.mxu0 %v693
    %699 = vmatprep.subr.mxu0 0.0
    %700 = vmatpush1.xpose.msra.mxu0 %v695
    %701 = vmatprep.subr.mxu0 0.0
    %702 = vmatpush1.xpose.msra.mxu0 0.0
    %703 = vmatprep.subr.mxu0 0.0
    %704 = vmatpush1.xpose.msra.mxu0 0.0
    %705 = vmatprep.subr.mxu0 0.0
    %706 = vmatpush1.xpose.msra.mxu0 0.0
    %707 = vmatprep.subr.mxu0 0.0
    %708 = vmatpush1.xpose.msra.mxu0 0.0
    %709 = vmatprep.subr.mxu0 0.0
    %710 = vmatpush1.xpose.msra.mxu0 0.0
    %711 = vmatprep.subr.mxu0 0.0
    %712 = vmatpush1.xpose.msra.mxu0 0.0
    %713 = vmatprep.subr.mxu0 0.0
    %714 = vmatpush1.xpose.msra.mxu0 0.0
    %715 = vmatprep.subr.mxu0 0.0
    %716 = vmatpush1.xpose.msra.mxu0 0.0
    %717 = vmatprep.subr.mxu0 0.0
    %718 = vmatpush1.xpose.msra.mxu0 0.0
    %719 = vmatprep.subr.mxu0 0.0
    %720 = vmatpush1.xpose.msra.mxu0 0.0
    %721 = vmatprep.subr.mxu0 0.0
    %722 = vmatpush1.xpose.msra.mxu0 0.0
    %723 = vmatprep.subr.mxu0 0.0
    %724 = vmatpush1.xpose.msra.mxu0 0.0
    %725 = vmatprep.subr.mxu0 0.0
    %726 = vmatpush1.xpose.msra.mxu0 0.0
    %727 = vmatprep.subr.mxu0 0.0
    %728 = vmatpush1.xpose.msra.mxu0 0.0
    %729 = vmatprep.subr.mxu0 0.0
    %730 = vmatpush1.xpose.msra.mxu0 0.0
    %731 = vmatprep.subr.mxu0 0.0
    %732 = vmatpush1.xpose.msra.mxu0 0.0
    %733 = vmatprep.subr.mxu0 0.0
    %734 = vmatpush1.xpose.msra.mxu0 0.0
    %735 = vmatprep.subr.mxu0 0.0
    %736 = vmatpush1.xpose.msra.mxu0 0.0
    %737 = vmatprep.subr.mxu0 0.0
    %738 = vmatpush1.xpose.msra.mxu0 0.0
    %739 = vmatprep.subr.mxu0 0.0
    %740 = vmatpush1.xpose.msra.mxu0 0.0
    %741 = vmatprep.subr.mxu0 0.0
    %742 = vmatpush1.xpose.msra.mxu0 0.0
    %743 = vmatprep.subr.mxu0 0.0
    %744 = vmatpush1.xpose.msra.mxu0 0.0
    %745 = vmatprep.subr.mxu0 0.0
    %746 = vmatpush1.xpose.msra.mxu0 0.0
    %747 = vmatprep.subr.mxu0 0.0
    %748 = vmatpush1.xpose.msra.mxu0 0.0
    %749 = vmatprep.subr.mxu0 0.0
    %750 = vmatpush1.xpose.msra.mxu0 0.0
    %751 = vmatprep.subr.mxu0 0.0
    %752 = vmatpush1.xpose.msra.mxu0 0.0
    %753 = vmatprep.subr.mxu0 0.0
    %754 = vmatpush1.xpose.msra.mxu0 0.0
    %755 = vmatprep.subr.mxu0 0.0
    %756 = vmatpush1.xpose.msra.mxu0 0.0
    %757 = vmatprep.subr.mxu0 0.0
    %758 = vmatpush1.xpose.msra.mxu0 0.0
    %759 = vmatprep.subr.mxu0 0.0
    %760 = vmatpush1.xpose.msra.mxu0 0.0
    %761 = vmatprep.mubr.f32.mxu0 0.0
    %762 = vmatmul.mubr.f32.gmra.mrb[0].mxu0 %v689
    %v763 = vpop.f32.mrb[0].mxu0
    %v764 = vadd.f32 %v333, %v763
    %v765 = vpop.f32.mrb[0].mxu0
    %766 = vmatprep.mubr.f32.mxu0 0.0
    %767 = vmatmul.mubr.f32.gmra.mrb[0].mxu0 %v691
    %v768 = vpop.f32.mrb[0].mxu0
    %v769 = vadd.f32 %v334, %v768
    %v770 = vpop.f32.mrb[0].mxu0
    %771 = vdwg.mxu0
    %772 = vrot.lane.b32.xlu0 %v296, 120
    %v773 = vpop.permute.xlu0 %772
    %774 = vrot.lane.b32.xlu0 %v297, 120
    %v775 = vpop.permute.xlu0 %774
    %v776 = vsel %vm295, %v296, 0
    %v778 = vsel %vm295, %v297, 0
    %v780 = vsel %vm295, %v773, 0
    %v782 = vsel %vm295, %v775, 0
    %784 = vmatprep.subr.mxu0 0.0
    %785 = vmatpush1.xpose.msra.mxu0 %v780
    %786 = vmatprep.subr.mxu0 0.0
    %787 = vmatpush1.xpose.msra.mxu0 %v782
    %788 = vmatprep.subr.mxu0 0.0
    %789 = vmatpush1.xpose.msra.mxu0 0.0
    %790 = vmatprep.subr.mxu0 0.0
    %791 = vmatpush1.xpose.msra.mxu0 0.0
    %792 = vmatprep.subr.mxu0 0.0
    %793 = vmatpush1.xpose.msra.mxu0 0.0
    %794 = vmatprep.subr.mxu0 0.0
    %795 = vmatpush1.xpose.msra.mxu0 0.0
    %796 = vmatprep.subr.mxu0 0.0
    %797 = vmatpush1.xpose.msra.mxu0 0.0
    %798 = vmatprep.subr.mxu0 0.0
    %799 = vmatpush1.xpose.msra.mxu0 0.0
    %800 = vmatprep.subr.mxu0 0.0
    %801 = vmatpush1.xpose.msra.mxu0 0.0
    %802 = vmatprep.subr.mxu0 0.0
    %803 = vmatpush1.xpose.msra.mxu0 0.0
    %804 = vmatprep.subr.mxu0 0.0
    %805 = vmatpush1.xpose.msra.mxu0 0.0
    %806 = vmatprep.subr.mxu0 0.0
    %807 = vmatpush1.xpose.msra.mxu0 0.0
    %808 = vmatprep.subr.mxu0 0.0
    %809 = vmatpush1.xpose.msra.mxu0 0.0
    %810 = vmatprep.subr.mxu0 0.0
    %811 = vmatpush1.xpose.msra.mxu0 0.0
    %812 = vmatprep.subr.mxu0 0.0
    %813 = vmatpush1.xpose.msra.mxu0 0.0
    %814 = vmatprep.subr.mxu0 0.0
    %815 = vmatpush1.xpose.msra.mxu0 0.0
    %816 = vmatprep.subr.mxu0 0.0
    %817 = vmatpush1.xpose.msra.mxu0 0.0
    %818 = vmatprep.subr.mxu0 0.0
    %819 = vmatpush1.xpose.msra.mxu0 0.0
    %820 = vmatprep.subr.mxu0 0.0
    %821 = vmatpush1.xpose.msra.mxu0 0.0
    %822 = vmatprep.subr.mxu0 0.0
    %823 = vmatpush1.xpose.msra.mxu0 0.0
    %824 = vmatprep.subr.mxu0 0.0
    %825 = vmatpush1.xpose.msra.mxu0 0.0
    %826 = vmatprep.subr.mxu0 0.0
    %827 = vmatpush1.xpose.msra.mxu0 0.0
    %828 = vmatprep.subr.mxu0 0.0
    %829 = vmatpush1.xpose.msra.mxu0 0.0
    %830 = vmatprep.subr.mxu0 0.0
    %831 = vmatpush1.xpose.msra.mxu0 0.0
    %832 = vmatprep.subr.mxu0 0.0
    %833 = vmatpush1.xpose.msra.mxu0 0.0
    %834 = vmatprep.subr.mxu0 0.0
    %835 = vmatpush1.xpose.msra.mxu0 0.0
    %836 = vmatprep.subr.mxu0 0.0
    %837 = vmatpush1.xpose.msra.mxu0 0.0
    %838 = vmatprep.subr.mxu0 0.0
    %839 = vmatpush1.xpose.msra.mxu0 0.0
    %840 = vmatprep.subr.mxu0 0.0
    %841 = vmatpush1.xpose.msra.mxu0 0.0
    %842 = vmatprep.subr.mxu0 0.0
    %843 = vmatpush1.xpose.msra.mxu0 0.0
    %844 = vmatprep.subr.mxu0 0.0
    %845 = vmatpush1.xpose.msra.mxu0 0.0
    %846 = vmatprep.subr.mxu0 0.0
    %847 = vmatpush1.xpose.msra.mxu0 0.0
    %848 = vmatprep.mubr.f32.mxu0 0.0
    %849 = vmatmul.mubr.f32.gmra.mrb[0].mxu0 %v776
    %v850 = vpop.f32.mrb[0].mxu0
    %v851 = vadd.f32 %v333, %v850
    %v852 = vpop.f32.mrb[0].mxu0
    %853 = vmatprep.mubr.f32.mxu0 0.0
    %854 = vmatmul.mubr.f32.gmra.mrb[0].mxu0 %v778
    %v855 = vpop.f32.mrb[0].mxu0
    %v856 = vadd.f32 %v334, %v855
    %v857 = vpop.f32.mrb[0].mxu0
    %858 = vdwg.mxu0
    %859 = vrot.lane.b32.xlu0 %v299, 120
    %v860 = vpop.permute.xlu0 %859
    %861 = vrot.lane.b32.xlu0 %v301, 120
    %v862 = vpop.permute.xlu0 %861
    %v863 = vsel %vm295, %v299, 0
    %v865 = vsel %vm295, %v301, 0
    %v867 = vsel %vm295, %v860, 0
    %v869 = vsel %vm295, %v862, 0
    %871 = vmatprep.subr.mxu0 0.0
    %872 = vmatpush1.xpose.msra.mxu0 %v867
    %873 = vmatprep.subr.mxu0 0.0
    %874 = vmatpush1.xpose.msra.mxu0 %v869
    %875 = vmatprep.subr.mxu0 0.0
    %876 = vmatpush1.xpose.msra.mxu0 0.0
    %877 = vmatprep.subr.mxu0 0.0
    %878 = vmatpush1.xpose.msra.mxu0 0.0
    %879 = vmatprep.subr.mxu0 0.0
    %880 = vmatpush1.xpose.msra.mxu0 0.0
    %881 = vmatprep.subr.mxu0 0.0
    %882 = vmatpush1.xpose.msra.mxu0 0.0
    %883 = vmatprep.subr.mxu0 0.0
    %884 = vmatpush1.xpose.msra.mxu0 0.0
    %885 = vmatprep.subr.mxu0 0.0
    %886 = vmatpush1.xpose.msra.mxu0 0.0
    %887 = vmatprep.subr.mxu0 0.0
    %888 = vmatpush1.xpose.msra.mxu0 0.0
    %889 = vmatprep.subr.mxu0 0.0
    %890 = vmatpush1.xpose.msra.mxu0 0.0
    %891 = vmatprep.subr.mxu0 0.0
    %892 = vmatpush1.xpose.msra.mxu0 0.0
    %893 = vmatprep.subr.mxu0 0.0
    %894 = vmatpush1.xpose.msra.mxu0 0.0
    %895 = vmatprep.subr.mxu0 0.0
    %896 = vmatpush1.xpose.msra.mxu0 0.0
    %897 = vmatprep.subr.mxu0 0.0
    %898 = vmatpush1.xpose.msra.mxu0 0.0
    %899 = vmatprep.subr.mxu0 0.0
    %900 = vmatpush1.xpose.msra.mxu0 0.0
    %901 = vmatprep.subr.mxu0 0.0
    %902 = vmatpush1.xpose.msra.mxu0 0.0
    %903 = vmatprep.subr.mxu0 0.0
    %904 = vmatpush1.xpose.msra.mxu0 0.0
    %905 = vmatprep.subr.mxu0 0.0
    %906 = vmatpush1.xpose.msra.mxu0 0.0
    %907 = vmatprep.subr.mxu0 0.0
    %908 = vmatpush1.xpose.msra.mxu0 0.0
    %909 = vmatprep.subr.mxu0 0.0
    %910 = vmatpush1.xpose.msra.mxu0 0.0
    %911 = vmatprep.subr.mxu0 0.0
    %912 = vmatpush1.xpose.msra.mxu0 0.0
    %913 = vmatprep.subr.mxu0 0.0
    %914 = vmatpush1.xpose.msra.mxu0 0.0
    %915 = vmatprep.subr.mxu0 0.0
    %916 = vmatpush1.xpose.msra.mxu0 0.0
    %917 = vmatprep.subr.mxu0 0.0
    %918 = vmatpush1.xpose.msra.mxu0 0.0
    %919 = vmatprep.subr.mxu0 0.0
    %920 = vmatpush1.xpose.msra.mxu0 0.0
    %921 = vmatprep.subr.mxu0 0.0
    %922 = vmatpush1.xpose.msra.mxu0 0.0
    %923 = vmatprep.subr.mxu0 0.0
    %924 = vmatpush1.xpose.msra.mxu0 0.0
    %925 = vmatprep.subr.mxu0 0.0
    %926 = vmatpush1.xpose.msra.mxu0 0.0
    %927 = vmatprep.subr.mxu0 0.0
    %928 = vmatpush1.xpose.msra.mxu0 0.0
    %929 = vmatprep.subr.mxu0 0.0
    %930 = vmatpush1.xpose.msra.mxu0 0.0
    %931 = vmatprep.subr.mxu0 0.0
    %932 = vmatpush1.xpose.msra.mxu0 0.0
    %933 = vmatprep.subr.mxu0 0.0
    %934 = vmatpush1.xpose.msra.mxu0 0.0
    %935 = vmatprep.mubr.f32.mxu0 0.0
    %936 = vmatmul.mubr.f32.gmra.mrb[0].mxu0 %v863
    %v937 = vpop.f32.mrb[0].mxu0
    %v938 = vadd.f32 %v333, %v937
    %v939 = vpop.f32.mrb[0].mxu0
    %940 = vmatprep.mubr.f32.mxu0 0.0
    %941 = vmatmul.mubr.f32.gmra.mrb[0].mxu0 %v865
    %v942 = vpop.f32.mrb[0].mxu0
    %v943 = vadd.f32 %v334, %v942
    %v944 = vpop.f32.mrb[0].mxu0
    %945 = vdwg.mxu0
    %946 = vrot.lane.b32.xlu0 %v303, 120
    %v947 = vpop.permute.xlu0 %946
    %948 = vrot.lane.b32.xlu0 %v305, 120
    %v949 = vpop.permute.xlu0 %948
    %v950 = vsel %vm295, %v303, 0
    %v952 = vsel %vm295, %v305, 0
    %v954 = vsel %vm295, %v947, 0
    %v956 = vsel %vm295, %v949, 0
    %958 = vmatprep.subr.mxu0 0.0
    %959 = vmatpush1.xpose.msra.mxu0 %v954
    %960 = vmatprep.subr.mxu0 0.0
    %961 = vmatpush1.xpose.msra.mxu0 %v956
    %962 = vmatprep.subr.mxu0 0.0
    %963 = vmatpush1.xpose.msra.mxu0 0.0
    %964 = vmatprep.subr.mxu0 0.0
    %965 = vmatpush1.xpose.msra.mxu0 0.0
    %966 = vmatprep.subr.mxu0 0.0
    %967 = vmatpush1.xpose.msra.mxu0 0.0
    %968 = vmatprep.subr.mxu0 0.0
    %969 = vmatpush1.xpose.msra.mxu0 0.0
    %970 = vmatprep.subr.mxu0 0.0
    %971 = vmatpush1.xpose.msra.mxu0 0.0
    %972 = vmatprep.subr.mxu0 0.0
    %973 = vmatpush1.xpose.msra.mxu0 0.0
    %974 = vmatprep.subr.mxu0 0.0
    %975 = vmatpush1.xpose.msra.mxu0 0.0
    %976 = vmatprep.subr.mxu0 0.0
    %977 = vmatpush1.xpose.msra.mxu0 0.0
    %978 = vmatprep.subr.mxu0 0.0
    %979 = vmatpush1.xpose.msra.mxu0 0.0
    %980 = vmatprep.subr.mxu0 0.0
    %981 = vmatpush1.xpose.msra.mxu0 0.0
    %982 = vmatprep.subr.mxu0 0.0
    %983 = vmatpush1.xpose.msra.mxu0 0.0
    %984 = vmatprep.subr.mxu0 0.0
    %985 = vmatpush1.xpose.msra.mxu0 0.0
    %986 = vmatprep.subr.mxu0 0.0
    %987 = vmatpush1.xpose.msra.mxu0 0.0
    %988 = vmatprep.subr.mxu0 0.0
    %989 = vmatpush1.xpose.msra.mxu0 0.0
    %990 = vmatprep.subr.mxu0 0.0
    %991 = vmatpush1.xpose.msra.mxu0 0.0
    %992 = vmatprep.subr.mxu0 0.0
    %993 = vmatpush1.xpose.msra.mxu0 0.0
    %994 = vmatprep.subr.mxu0 0.0
    %995 = vmatpush1.xpose.msra.mxu0 0.0
    %996 = vmatprep.subr.mxu0 0.0
    %997 = vmatpush1.xpose.msra.mxu0 0.0
    %998 = vmatprep.subr.mxu0 0.0
    %999 = vmatpush1.xpose.msra.mxu0 0.0
    %1000 = vmatprep.subr.mxu0 0.0
    %1001 = vmatpush1.xpose.msra.mxu0 0.0
    %1002 = vmatprep.subr.mxu0 0.0
    %1003 = vmatpush1.xpose.msra.mxu0 0.0
    %1004 = vmatprep.subr.mxu0 0.0
    %1005 = vmatpush1.xpose.msra.mxu0 0.0
    %1006 = vmatprep.subr.mxu0 0.0
    %1007 = vmatpush1.xpose.msra.mxu0 0.0
    %1008 = vmatprep.subr.mxu0 0.0
    %1009 = vmatpush1.xpose.msra.mxu0 0.0
    %1010 = vmatprep.subr.mxu0 0.0
    %1011 = vmatpush1.xpose.msra.mxu0 0.0
    %1012 = vmatprep.subr.mxu0 0.0
    %1013 = vmatpush1.xpose.msra.mxu0 0.0
    %1014 = vmatprep.subr.mxu0 0.0
    %1015 = vmatpush1.xpose.msra.mxu0 0.0
    %1016 = vmatprep.subr.mxu0 0.0
    %1017 = vmatpush1.xpose.msra.mxu0 0.0
    %1018 = vmatprep.subr.mxu0 0.0
    %1019 = vmatpush1.xpose.msra.mxu0 0.0
    %1020 = vmatprep.subr.mxu0 0.0
    %1021 = vmatpush1.xpose.msra.mxu0 0.0
    %1022 = vmatprep.mubr.f32.mxu0 0.0
    %1023 = vmatmul.mubr.f32.gmra.mrb[0].mxu0 %v950
    %v1024 = vpop.f32.mrb[0].mxu0
    %v1025 = vadd.f32 %v333, %v1024
    %v1026 = vpop.f32.mrb[0].mxu0
    %1027 = vmatprep.mubr.f32.mxu0 0.0
    %1028 = vmatmul.mubr.f32.gmra.mrb[0].mxu0 %v952
    %v1029 = vpop.f32.mrb[0].mxu0
    %v1030 = vadd.f32 %v334, %v1029
    %v1031 = vpop.f32.mrb[0].mxu0
    %1032 = vdwg.mxu0
    %1033 = vrot.lane.b32.xlu0 %v307, 120
    %v1034 = vpop.permute.xlu0 %1033
    %1035 = vrot.lane.b32.xlu0 %v309, 120
    %v1036 = vpop.permute.xlu0 %1035
    %v1037 = vsel %vm295, %v307, 0
    %v1039 = vsel %vm295, %v309, 0
    %v1041 = vsel %vm295, %v1034, 0
    %v1043 = vsel %vm295, %v1036, 0
    %1045 = vmatprep.subr.mxu0 0.0
    %1046 = vmatpush1.xpose.msra.mxu0 %v1041
    %1047 = vmatprep.subr.mxu0 0.0
    %1048 = vmatpush1.xpose.msra.mxu0 %v1043
    %1049 = vmatprep.subr.mxu0 0.0
    %1050 = vmatpush1.xpose.msra.mxu0 0.0
    %1051 = vmatprep.subr.mxu0 0.0
    %1052 = vmatpush1.xpose.msra.mxu0 0.0
    %1053 = vmatprep.subr.mxu0 0.0
    %1054 = vmatpush1.xpose.msra.mxu0 0.0
    %1055 = vmatprep.subr.mxu0 0.0
    %1056 = vmatpush1.xpose.msra.mxu0 0.0
    %1057 = vmatprep.subr.mxu0 0.0
    %1058 = vmatpush1.xpose.msra.mxu0 0.0
    %1059 = vmatprep.subr.mxu0 0.0
    %1060 = vmatpush1.xpose.msra.mxu0 0.0
    %1061 = vmatprep.subr.mxu0 0.0
    %1062 = vmatpush1.xpose.msra.mxu0 0.0
    %1063 = vmatprep.subr.mxu0 0.0
    %1064 = vmatpush1.xpose.msra.mxu0 0.0
    %1065 = vmatprep.subr.mxu0 0.0
    %1066 = vmatpush1.xpose.msra.mxu0 0.0
    %1067 = vmatprep.subr.mxu0 0.0
    %1068 = vmatpush1.xpose.msra.mxu0 0.0
    %1069 = vmatprep.subr.mxu0 0.0
    %1070 = vmatpush1.xpose.msra.mxu0 0.0
    %1071 = vmatprep.subr.mxu0 0.0
    %1072 = vmatpush1.xpose.msra.mxu0 0.0
    %1073 = vmatprep.subr.mxu0 0.0
    %1074 = vmatpush1.xpose.msra.mxu0 0.0
    %1075 = vmatprep.subr.mxu0 0.0
    %1076 = vmatpush1.xpose.msra.mxu0 0.0
    %1077 = vmatprep.subr.mxu0 0.0
    %1078 = vmatpush1.xpose.msra.mxu0 0.0
    %1079 = vmatprep.subr.mxu0 0.0
    %1080 = vmatpush1.xpose.msra.mxu0 0.0
    %1081 = vmatprep.subr.mxu0 0.0
    %1082 = vmatpush1.xpose.msra.mxu0 0.0
    %1083 = vmatprep.subr.mxu0 0.0
    %1084 = vmatpush1.xpose.msra.mxu0 0.0
    %1085 = vmatprep.subr.mxu0 0.0
    %1086 = vmatpush1.xpose.msra.mxu0 0.0
    %1087 = vmatprep.subr.mxu0 0.0
    %1088 = vmatpush1.xpose.msra.mxu0 0.0
    %1089 = vmatprep.subr.mxu0 0.0
    %1090 = vmatpush1.xpose.msra.mxu0 0.0
    %1091 = vmatprep.subr.mxu0 0.0
    %1092 = vmatpush1.xpose.msra.mxu0 0.0
    %1093 = vmatprep.subr.mxu0 0.0
    %1094 = vmatpush1.xpose.msra.mxu0 0.0
    %1095 = vmatprep.subr.mxu0 0.0
    %1096 = vmatpush1.xpose.msra.mxu0 0.0
    %1097 = vmatprep.subr.mxu0 0.0
    %1098 = vmatpush1.xpose.msra.mxu0 0.0
    %1099 = vmatprep.subr.mxu0 0.0
    %1100 = vmatpush1.xpose.msra.mxu0 0.0
    %1101 = vmatprep.subr.mxu0 0.0
    %1102 = vmatpush1.xpose.msra.mxu0 0.0
    %1103 = vmatprep.subr.mxu0 0.0
    %1104 = vmatpush1.xpose.msra.mxu0 0.0
    %1105 = vmatprep.subr.mxu0 0.0
    %1106 = vmatpush1.xpose.msra.mxu0 0.0
    %1107 = vmatprep.subr.mxu0 0.0
    %1108 = vmatpush1.xpose.msra.mxu0 0.0
    %1109 = vmatprep.mubr.f32.mxu0 0.0
    %1110 = vmatmul.mubr.f32.gmra.mrb[0].mxu0 %v1037
    %v1111 = vpop.f32.mrb[0].mxu0
    %v1112 = vadd.f32 %v335, %v1111
    %v1113 = vpop.f32.mrb[0].mxu0
    %1114 = vmatprep.mubr.f32.mxu0 0.0
    %1115 = vmatmul.mubr.f32.gmra.mrb[0].mxu0 %v1039
    %v1116 = vpop.f32.mrb[0].mxu0
    %v1117 = vadd.f32 %v336, %v1116
    %v1118 = vpop.f32.mrb[0].mxu0
    %1119 = vdwg.mxu0
    %1120 = vrot.lane.b32.xlu0 %v311, 120
    %v1121 = vpop.permute.xlu0 %1120
    %1122 = vrot.lane.b32.xlu0 %v313, 120
    %v1123 = vpop.permute.xlu0 %1122
    %v1124 = vsel %vm295, %v311, 0
    %v1126 = vsel %vm295, %v313, 0
    %v1128 = vsel %vm295, %v1121, 0
    %v1130 = vsel %vm295, %v1123, 0
    %1132 = vmatprep.subr.mxu0 0.0
    %1133 = vmatpush1.xpose.msra.mxu0 %v1128
    %1134 = vmatprep.subr.mxu0 0.0
    %1135 = vmatpush1.xpose.msra.mxu0 %v1130
    %1136 = vmatprep.subr.mxu0 0.0
    %1137 = vmatpush1.xpose.msra.mxu0 0.0
    %1138 = vmatprep.subr.mxu0 0.0
    %1139 = vmatpush1.xpose.msra.mxu0 0.0
    %1140 = vmatprep.subr.mxu0 0.0
    %1141 = vmatpush1.xpose.msra.mxu0 0.0
    %1142 = vmatprep.subr.mxu0 0.0
    %1143 = vmatpush1.xpose.msra.mxu0 0.0
    %1144 = vmatprep.subr.mxu0 0.0
    %1145 = vmatpush1.xpose.msra.mxu0 0.0
    %1146 = vmatprep.subr.mxu0 0.0
    %1147 = vmatpush1.xpose.msra.mxu0 0.0
    %1148 = vmatprep.subr.mxu0 0.0
    %1149 = vmatpush1.xpose.msra.mxu0 0.0
    %1150 = vmatprep.subr.mxu0 0.0
    %1151 = vmatpush1.xpose.msra.mxu0 0.0
    %1152 = vmatprep.subr.mxu0 0.0
    %1153 = vmatpush1.xpose.msra.mxu0 0.0
    %1154 = vmatprep.subr.mxu0 0.0
    %1155 = vmatpush1.xpose.msra.mxu0 0.0
    %1156 = vmatprep.subr.mxu0 0.0
    %1157 = vmatpush1.xpose.msra.mxu0 0.0
    %1158 = vmatprep.subr.mxu0 0.0
    %1159 = vmatpush1.xpose.msra.mxu0 0.0
    %1160 = vmatprep.subr.mxu0 0.0
    %1161 = vmatpush1.xpose.msra.mxu0 0.0
    %1162 = vmatprep.subr.mxu0 0.0
    %1163 = vmatpush1.xpose.msra.mxu0 0.0
    %1164 = vmatprep.subr.mxu0 0.0
    %1165 = vmatpush1.xpose.msra.mxu0 0.0
    %1166 = vmatprep.subr.mxu0 0.0
    %1167 = vmatpush1.xpose.msra.mxu0 0.0
    %1168 = vmatprep.subr.mxu0 0.0
    %1169 = vmatpush1.xpose.msra.mxu0 0.0
    %1170 = vmatprep.subr.mxu0 0.0
    %1171 = vmatpush1.xpose.msra.mxu0 0.0
    %1172 = vmatprep.subr.mxu0 0.0
    %1173 = vmatpush1.xpose.msra.mxu0 0.0
    %1174 = vmatprep.subr.mxu0 0.0
    %1175 = vmatpush1.xpose.msra.mxu0 0.0
    %1176 = vmatprep.subr.mxu0 0.0
    %1177 = vmatpush1.xpose.msra.mxu0 0.0
    %1178 = vmatprep.subr.mxu0 0.0
    %1179 = vmatpush1.xpose.msra.mxu0 0.0
    %1180 = vmatprep.subr.mxu0 0.0
    %1181 = vmatpush1.xpose.msra.mxu0 0.0
    %1182 = vmatprep.subr.mxu0 0.0
    %1183 = vmatpush1.xpose.msra.mxu0 0.0
    %1184 = vmatprep.subr.mxu0 0.0
    %1185 = vmatpush1.xpose.msra.mxu0 0.0
    %1186 = vmatprep.subr.mxu0 0.0
    %1187 = vmatpush1.xpose.msra.mxu0 0.0
    %1188 = vmatprep.subr.mxu0 0.0
    %1189 = vmatpush1.xpose.msra.mxu0 0.0
    %1190 = vmatprep.subr.mxu0 0.0
    %1191 = vmatpush1.xpose.msra.mxu0 0.0
    %1192 = vmatprep.subr.mxu0 0.0
    %1193 = vmatpush1.xpose.msra.mxu0 0.0
    %1194 = vmatprep.subr.mxu0 0.0
    %1195 = vmatpush1.xpose.msra.mxu0 0.0
    %1196 = vmatprep.mubr.f32.mxu0 0.0
    %1197 = vmatmul.mubr.f32.gmra.mrb[0].mxu0 %v1124
    %v1198 = vpop.f32.mrb[0].mxu0
    %v1199 = vadd.f32 %v335, %v1198
    %v1200 = vpop.f32.mrb[0].mxu0
    %1201 = vmatprep.mubr.f32.mxu0 0.0
    %1202 = vmatmul.mubr.f32.gmra.mrb[0].mxu0 %v1126
    %v1203 = vpop.f32.mrb[0].mxu0
    %v1204 = vadd.f32 %v336, %v1203
    %v1205 = vpop.f32.mrb[0].mxu0
    %1206 = vdwg.mxu0
    %1207 = vrot.lane.b32.xlu0 %v325, 120
    %v1208 = vpop.permute.xlu0 %1207
    %1209 = vrot.lane.b32.xlu0 %v326, 120
    %v1210 = vpop.permute.xlu0 %1209
    %v1211 = vsel %vm295, %v325, 0
    %v1213 = vsel %vm295, %v326, 0
    %v1215 = vsel %vm295, %v1208, 0
    %v1217 = vsel %vm295, %v1210, 0
    %1219 = vmatprep.subr.mxu0 0.0
    %1220 = vmatpush1.xpose.msra.mxu0 %v1215
    %1221 = vmatprep.subr.mxu0 0.0
    %1222 = vmatpush1.xpose.msra.mxu0 %v1217
    %1223 = vmatprep.subr.mxu0 0.0
    %1224 = vmatpush1.xpose.msra.mxu0 0.0
    %1225 = vmatprep.subr.mxu0 0.0
    %1226 = vmatpush1.xpose.msra.mxu0 0.0
    %1227 = vmatprep.subr.mxu0 0.0
    %1228 = vmatpush1.xpose.msra.mxu0 0.0
    %1229 = vmatprep.subr.mxu0 0.0
    %1230 = vmatpush1.xpose.msra.mxu0 0.0
    %1231 = vmatprep.subr.mxu0 0.0
    %1232 = vmatpush1.xpose.msra.mxu0 0.0
    %1233 = vmatprep.subr.mxu0 0.0
    %1234 = vmatpush1.xpose.msra.mxu0 0.0
    %1235 = vmatprep.subr.mxu0 0.0
    %1236 = vmatpush1.xpose.msra.mxu0 0.0
    %1237 = vmatprep.subr.mxu0 0.0
    %1238 = vmatpush1.xpose.msra.mxu0 0.0
    %1239 = vmatprep.subr.mxu0 0.0
    %1240 = vmatpush1.xpose.msra.mxu0 0.0
    %1241 = vmatprep.subr.mxu0 0.0
    %1242 = vmatpush1.xpose.msra.mxu0 0.0
    %1243 = vmatprep.subr.mxu0 0.0
    %1244 = vmatpush1.xpose.msra.mxu0 0.0
    %1245 = vmatprep.subr.mxu0 0.0
    %1246 = vmatpush1.xpose.msra.mxu0 0.0
    %1247 = vmatprep.subr.mxu0 0.0
    %1248 = vmatpush1.xpose.msra.mxu0 0.0
    %1249 = vmatprep.subr.mxu0 0.0
    %1250 = vmatpush1.xpose.msra.mxu0 0.0
    %1251 = vmatprep.subr.mxu0 0.0
    %1252 = vmatpush1.xpose.msra.mxu0 0.0
    %1253 = vmatprep.subr.mxu0 0.0
    %1254 = vmatpush1.xpose.msra.mxu0 0.0
    %1255 = vmatprep.subr.mxu0 0.0
    %1256 = vmatpush1.xpose.msra.mxu0 0.0
    %1257 = vmatprep.subr.mxu0 0.0
    %1258 = vmatpush1.xpose.msra.mxu0 0.0
    %1259 = vmatprep.subr.mxu0 0.0
    %1260 = vmatpush1.xpose.msra.mxu0 0.0
    %1261 = vmatprep.subr.mxu0 0.0
    %1262 = vmatpush1.xpose.msra.mxu0 0.0
    %1263 = vmatprep.subr.mxu0 0.0
    %1264 = vmatpush1.xpose.msra.mxu0 0.0
    %1265 = vmatprep.subr.mxu0 0.0
    %1266 = vmatpush1.xpose.msra.mxu0 0.0
    %1267 = vmatprep.subr.mxu0 0.0
    %1268 = vmatpush1.xpose.msra.mxu0 0.0
    %1269 = vmatprep.subr.mxu0 0.0
    %1270 = vmatpush1.xpose.msra.mxu0 0.0
    %1271 = vmatprep.subr.mxu0 0.0
    %1272 = vmatpush1.xpose.msra.mxu0 0.0
    %1273 = vmatprep.subr.mxu0 0.0
    %1274 = vmatpush1.xpose.msra.mxu0 0.0
    %1275 = vmatprep.subr.mxu0 0.0
    %1276 = vmatpush1.xpose.msra.mxu0 0.0
    %1277 = vmatprep.subr.mxu0 0.0
    %1278 = vmatpush1.xpose.msra.mxu0 0.0
    %1279 = vmatprep.subr.mxu0 0.0
    %1280 = vmatpush1.xpose.msra.mxu0 0.0
    %1281 = vmatprep.subr.mxu0 0.0
    %1282 = vmatpush1.xpose.msra.mxu0 0.0
    %1283 = vmatprep.mubr.f32.mxu0 0.0
    %1284 = vmatmul.mubr.f32.gmra.mrb[0].mxu0 %v1211
    %v1285 = vpop.f32.mrb[0].mxu0
    %v1286 = vadd.f32 %v335, %v1285
    %v1287 = vpop.f32.mrb[0].mxu0
    %1288 = vmatprep.mubr.f32.mxu0 0.0
    %1289 = vmatmul.mubr.f32.gmra.mrb[0].mxu0 %v1213
    %v1290 = vpop.f32.mrb[0].mxu0
    %v1291 = vadd.f32 %v336, %v1290
    %v1292 = vpop.f32.mrb[0].mxu0
    %1293 = vdwg.mxu0
    %1294 = vrot.lane.b32.xlu0 %v328, 120
    %v1295 = vpop.permute.xlu0 %1294
    %1296 = vrot.lane.b32.xlu0 %v330, 120
    %v1297 = vpop.permute.xlu0 %1296
    %v1298 = vsel %vm295, %v328, 0
    %v1300 = vsel %vm295, %v330, 0
    %v1302 = vsel %vm295, %v1295, 0
    %v1304 = vsel %vm295, %v1297, 0
    %1306 = vmatprep.subr.mxu0 0.0
    %1307 = vmatpush1.xpose.msra.mxu0 %v1302
    %1308 = vmatprep.subr.mxu0 0.0
    %1309 = vmatpush1.xpose.msra.mxu0 %v1304
    %1310 = vmatprep.subr.mxu0 0.0
    %1311 = vmatpush1.xpose.msra.mxu0 0.0
    %1312 = vmatprep.subr.mxu0 0.0
    %1313 = vmatpush1.xpose.msra.mxu0 0.0
    %1314 = vmatprep.subr.mxu0 0.0
    %1315 = vmatpush1.xpose.msra.mxu0 0.0
    %1316 = vmatprep.subr.mxu0 0.0
    %1317 = vmatpush1.xpose.msra.mxu0 0.0
    %1318 = vmatprep.subr.mxu0 0.0
    %1319 = vmatpush1.xpose.msra.mxu0 0.0
    %1320 = vmatprep.subr.mxu0 0.0
    %1321 = vmatpush1.xpose.msra.mxu0 0.0
    %1322 = vmatprep.subr.mxu0 0.0
    %1323 = vmatpush1.xpose.msra.mxu0 0.0
    %1324 = vmatprep.subr.mxu0 0.0
    %1325 = vmatpush1.xpose.msra.mxu0 0.0
    %1326 = vmatprep.subr.mxu0 0.0
    %1327 = vmatpush1.xpose.msra.mxu0 0.0
    %1328 = vmatprep.subr.mxu0 0.0
    %1329 = vmatpush1.xpose.msra.mxu0 0.0
    %1330 = vmatprep.subr.mxu0 0.0
    %1331 = vmatpush1.xpose.msra.mxu0 0.0
    %1332 = vmatprep.subr.mxu0 0.0
    %1333 = vmatpush1.xpose.msra.mxu0 0.0
    %1334 = vmatprep.subr.mxu0 0.0
    %1335 = vmatpush1.xpose.msra.mxu0 0.0
    %1336 = vmatprep.subr.mxu0 0.0
    %1337 = vmatpush1.xpose.msra.mxu0 0.0
    %1338 = vmatprep.subr.mxu0 0.0
    %1339 = vmatpush1.xpose.msra.mxu0 0.0
    %1340 = vmatprep.subr.mxu0 0.0
    %1341 = vmatpush1.xpose.msra.mxu0 0.0
    %1342 = vmatprep.subr.mxu0 0.0
    %1343 = vmatpush1.xpose.msra.mxu0 0.0
    %1344 = vmatprep.subr.mxu0 0.0
    %1345 = vmatpush1.xpose.msra.mxu0 0.0
    %1346 = vmatprep.subr.mxu0 0.0
    %1347 = vmatpush1.xpose.msra.mxu0 0.0
    %1348 = vmatprep.subr.mxu0 0.0
    %1349 = vmatpush1.xpose.msra.mxu0 0.0
    %1350 = vmatprep.subr.mxu0 0.0
    %1351 = vmatpush1.xpose.msra.mxu0 0.0
    %1352 = vmatprep.subr.mxu0 0.0
    %1353 = vmatpush1.xpose.msra.mxu0 0.0
    %1354 = vmatprep.subr.mxu0 0.0
    %1355 = vmatpush1.xpose.msra.mxu0 0.0
    %1356 = vmatprep.subr.mxu0 0.0
    %1357 = vmatpush1.xpose.msra.mxu0 0.0
    %1358 = vmatprep.subr.mxu0 0.0
    %1359 = vmatpush1.xpose.msra.mxu0 0.0
    %1360 = vmatprep.subr.mxu0 0.0
    %1361 = vmatpush1.xpose.msra.mxu0 0.0
    %1362 = vmatprep.subr.mxu0 0.0
    %1363 = vmatpush1.xpose.msra.mxu0 0.0
    %1364 = vmatprep.subr.mxu0 0.0
    %1365 = vmatpush1.xpose.msra.mxu0 0.0
    %1366 = vmatprep.subr.mxu0 0.0
    %1367 = vmatpush1.xpose.msra.mxu0 0.0
    %1368 = vmatprep.subr.mxu0 0.0
    %1369 = vmatpush1.xpose.msra.mxu0 0.0
    %1370 = vmatprep.mubr.f32.mxu0 0.0
    %1371 = vmatmul.mubr.f32.gmra.mrb[0].mxu0 %v1298
    %v1372 = vpop.f32.mrb[0].mxu0
    %v1373 = vadd.f32 %v335, %v1372
    %v1374 = vpop.f32.mrb[0].mxu0
    %1375 = vmatprep.mubr.f32.mxu0 0.0
    %1376 = vmatmul.mubr.f32.gmra.mrb[0].mxu0 %v1300
    %v1377 = vpop.f32.mrb[0].mxu0
    %v1378 = vadd.f32 %v336, %v1377
    %v1379 = vpop.f32.mrb[0].mxu0
    %1380 = vdwg.mxu0
    %v1381 = vsel %vm324, %v416, -inf
    %1382 = vmax.xlane.f32.xlu0 %v1381
    %v1383 = vpop.xlane.xlu0 %1382
    %v1384 = vsel %vm324, %v421, -inf
    %1385 = vmax.xlane.f32.xlu0 %v1384
    %v1386 = vpop.xlane.xlu0 %1385
    %v1387 = vsel %vm324, %v503, -inf
    %1388 = vmax.xlane.f32.xlu0 %v1387
    %v1389 = vpop.xlane.xlu0 %1388
    %v1390 = vsel %vm324, %v508, -inf
    %1391 = vmax.xlane.f32.xlu0 %v1390
    %v1392 = vpop.xlane.xlu0 %1391
    %v1393 = vsel %vm324, %v590, -inf
    %1394 = vmax.xlane.f32.xlu0 %v1393
    %v1395 = vpop.xlane.xlu0 %1394
    %v1396 = vsel %vm324, %v595, -inf
    %1397 = vmax.xlane.f32.xlu0 %v1396
    %v1398 = vpop.xlane.xlu0 %1397
    %v1399 = vsel %vm324, %v677, -inf
    %1400 = vmax.xlane.f32.xlu0 %v1399
    %v1401 = vpop.xlane.xlu0 %1400
    %v1402 = vsel %vm324, %v682, -inf
    %1403 = vmax.xlane.f32.xlu0 %v1402
    %v1404 = vpop.xlane.xlu0 %1403
    %v1405 = vsel %vm324, %v764, -inf
    %1406 = vmax.xlane.f32.xlu0 %v1405
    %v1407 = vpop.xlane.xlu0 %1406
    %v1408 = vsel %vm324, %v769, -inf
    %1409 = vmax.xlane.f32.xlu0 %v1408
    %v1410 = vpop.xlane.xlu0 %1409
    %v1411 = vsel %vm324, %v851, -inf
    %1412 = vmax.xlane.f32.xlu0 %v1411
    %v1413 = vpop.xlane.xlu0 %1412
    %v1414 = vsel %vm324, %v856, -inf
    %1415 = vmax.xlane.f32.xlu0 %v1414
    %v1416 = vpop.xlane.xlu0 %1415
    %v1417 = vsel %vm324, %v938, -inf
    %1418 = vmax.xlane.f32.xlu0 %v1417
    %v1419 = vpop.xlane.xlu0 %1418
    %v1420 = vsel %vm324, %v943, -inf
    %1421 = vmax.xlane.f32.xlu0 %v1420
    %v1422 = vpop.xlane.xlu0 %1421
    %v1423 = vsel %vm324, %v1025, -inf
    %1424 = vmax.xlane.f32.xlu0 %v1423
    %v1425 = vpop.xlane.xlu0 %1424
    %v1426 = vsel %vm324, %v1030, -inf
    %1427 = vmax.xlane.f32.xlu0 %v1426
    %v1428 = vpop.xlane.xlu0 %1427
    %v1429 = vsel %vm324, %v1112, -inf
    %1430 = vmax.xlane.f32.xlu0 %v1429
    %v1431 = vpop.xlane.xlu0 %1430
    %v1432 = vsel %vm324, %v1117, -inf
    %1433 = vmax.xlane.f32.xlu0 %v1432
    %v1434 = vpop.xlane.xlu0 %1433
    %v1435 = vsel %vm324, %v1199, -inf
    %1436 = vmax.xlane.f32.xlu0 %v1435
    %v1437 = vpop.xlane.xlu0 %1436
    %v1438 = vsel %vm324, %v1204, -inf
    %1439 = vmax.xlane.f32.xlu0 %v1438
    %v1440 = vpop.xlane.xlu0 %1439
    %v1441 = vsel %vm324, %v1286, -inf
    %1442 = vmax.xlane.f32.xlu0 %v1441
    %v1443 = vpop.xlane.xlu0 %1442
    %v1444 = vsel %vm324, %v1291, -inf
    %1445 = vmax.xlane.f32.xlu0 %v1444
    %v1446 = vpop.xlane.xlu0 %1445
    %v1447 = vsel %vm324, %v1373, -inf
    %1448 = vmax.xlane.f32.xlu0 %v1447
    %v1449 = vpop.xlane.xlu0 %1448
    %v1450 = vsel %vm324, %v1378, -inf
    %1451 = vmax.xlane.f32.xlu0 %v1450
    %v1452 = vpop.xlane.xlu0 %1451
    %v1453 = vsub.f32 %v416, %v1383
    %v1454 = vsub.f32 %v421, %v1386
    %v1455 = vsub.f32 %v503, %v1389
    %v1456 = vsub.f32 %v508, %v1392
    %v1457 = vsub.f32 %v590, %v1395
    %v1458 = vsub.f32 %v595, %v1398
    %v1459 = vsub.f32 %v677, %v1401
    %v1460 = vsub.f32 %v682, %v1404
    %v1461 = vsub.f32 %v764, %v1407
    %v1462 = vsub.f32 %v769, %v1410
    %v1463 = vsub.f32 %v851, %v1413
    %v1464 = vsub.f32 %v856, %v1416
    %v1465 = vsub.f32 %v938, %v1419
    %v1466 = vsub.f32 %v943, %v1422
    %v1467 = vsub.f32 %v1025, %v1425
    %v1468 = vsub.f32 %v1030, %v1428
    %v1469 = vsub.f32 %v1112, %v1431
    %v1470 = vsub.f32 %v1117, %v1434
    %v1471 = vsub.f32 %v1199, %v1437
    %v1472 = vsub.f32 %v1204, %v1440
    %v1473 = vsub.f32 %v1286, %v1443
    %v1474 = vsub.f32 %v1291, %v1446
    %v1475 = vsub.f32 %v1373, %v1449
    %v1476 = vsub.f32 %v1378, %v1452
    %v1477 = vmul.f32 %v1453, 1.442695
    %v1478 = vpow.pop %v1477
    %v1479 = vmul.f32 %v1454, 1.442695
    %v1480 = vpow.pop %v1479
    %v1481 = vmul.f32 %v1455, 1.442695
    %v1482 = vpow.pop %v1481
    %v1483 = vmul.f32 %v1456, 1.442695
    %v1484 = vpow.pop %v1483
    %v1485 = vmul.f32 %v1457, 1.442695
    %v1486 = vpow.pop %v1485
    %v1487 = vmul.f32 %v1458, 1.442695
    %v1488 = vpow.pop %v1487
    %v1489 = vmul.f32 %v1459, 1.442695
    %v1490 = vpow.pop %v1489
    %v1491 = vmul.f32 %v1460, 1.442695
    %v1492 = vpow.pop %v1491
    %v1493 = vmul.f32 %v1461, 1.442695
    %v1494 = vpow.pop %v1493
    %v1495 = vmul.f32 %v1462, 1.442695
    %v1496 = vpow.pop %v1495
    %v1497 = vmul.f32 %v1463, 1.442695
    %v1498 = vpow.pop %v1497
    %v1499 = vmul.f32 %v1464, 1.442695
    %v1500 = vpow.pop %v1499
    %v1501 = vmul.f32 %v1465, 1.442695
    %v1502 = vpow.pop %v1501
    %v1503 = vmul.f32 %v1466, 1.442695
    %v1504 = vpow.pop %v1503
    %v1505 = vmul.f32 %v1467, 1.442695
    %v1506 = vpow.pop %v1505
    %v1507 = vmul.f32 %v1468, 1.442695
    %v1508 = vpow.pop %v1507
    %v1509 = vmul.f32 %v1469, 1.442695
    %v1510 = vpow.pop %v1509
    %v1511 = vmul.f32 %v1470, 1.442695
    %v1512 = vpow.pop %v1511
    %v1513 = vmul.f32 %v1471, 1.442695
    %v1514 = vpow.pop %v1513
    %v1515 = vmul.f32 %v1472, 1.442695
    %v1516 = vpow.pop %v1515
    %v1517 = vmul.f32 %v1473, 1.442695
    %v1518 = vpow.pop %v1517
    %v1519 = vmul.f32 %v1474, 1.442695
    %v1520 = vpow.pop %v1519
    %v1521 = vmul.f32 %v1475, 1.442695
    %v1522 = vpow.pop %v1521
    %v1523 = vmul.f32 %v1476, 1.442695
    %v1524 = vpow.pop %v1523
    %v1525 = vsel %vm324, %v1478, 0.0
    %1526 = vadd.xlane.f32.xlu0 %v1525
    %v1527 = vpop.xlane.xlu0 %1526
    %v1528 = vsel %vm324, %v1480, 0.0
    %1529 = vadd.xlane.f32.xlu0 %v1528
    %v1530 = vpop.xlane.xlu0 %1529
    %v1531 = vsel %vm324, %v1482, 0.0
    %1532 = vadd.xlane.f32.xlu0 %v1531
    %v1533 = vpop.xlane.xlu0 %1532
    %v1534 = vsel %vm324, %v1484, 0.0
    %1535 = vadd.xlane.f32.xlu0 %v1534
    %v1536 = vpop.xlane.xlu0 %1535
    %v1537 = vsel %vm324, %v1486, 0.0
    %1538 = vadd.xlane.f32.xlu0 %v1537
    %v1539 = vpop.xlane.xlu0 %1538
    %v1540 = vsel %vm324, %v1488, 0.0
    %1541 = vadd.xlane.f32.xlu0 %v1540
    %v1542 = vpop.xlane.xlu0 %1541
    %v1543 = vsel %vm324, %v1490, 0.0
    %1544 = vadd.xlane.f32.xlu0 %v1543
    %v1545 = vpop.xlane.xlu0 %1544
    %v1546 = vsel %vm324, %v1492, 0.0
    %1547 = vadd.xlane.f32.xlu0 %v1546
    %v1548 = vpop.xlane.xlu0 %1547
    %v1549 = vsel %vm324, %v1494, 0.0
    %1550 = vadd.xlane.f32.xlu0 %v1549
    %v1551 = vpop.xlane.xlu0 %1550
    %v1552 = vsel %vm324, %v1496, 0.0
    %1553 = vadd.xlane.f32.xlu0 %v1552
    %v1554 = vpop.xlane.xlu0 %1553
    %v1555 = vsel %vm324, %v1498, 0.0
    %1556 = vadd.xlane.f32.xlu0 %v1555
    %v1557 = vpop.xlane.xlu0 %1556
    %v1558 = vsel %vm324, %v1500, 0.0
    %1559 = vadd.xlane.f32.xlu0 %v1558
    %v1560 = vpop.xlane.xlu0 %1559
    %v1561 = vsel %vm324, %v1502, 0.0
    %1562 = vadd.xlane.f32.xlu0 %v1561
    %v1563 = vpop.xlane.xlu0 %1562
    %v1564 = vsel %vm324, %v1504, 0.0
    %1565 = vadd.xlane.f32.xlu0 %v1564
    %v1566 = vpop.xlane.xlu0 %1565
    %v1567 = vsel %vm324, %v1506, 0.0
    %1568 = vadd.xlane.f32.xlu0 %v1567
    %v1569 = vpop.xlane.xlu0 %1568
    %v1570 = vsel %vm324, %v1508, 0.0
    %1571 = vadd.xlane.f32.xlu0 %v1570
    %v1572 = vpop.xlane.xlu0 %1571
    %v1573 = vsel %vm324, %v1510, 0.0
    %1574 = vadd.xlane.f32.xlu0 %v1573
    %v1575 = vpop.xlane.xlu0 %1574
    %v1576 = vsel %vm324, %v1512, 0.0
    %1577 = vadd.xlane.f32.xlu0 %v1576
    %v1578 = vpop.xlane.xlu0 %1577
    %v1579 = vsel %vm324, %v1514, 0.0
    %1580 = vadd.xlane.f32.xlu0 %v1579
    %v1581 = vpop.xlane.xlu0 %1580
    %v1582 = vsel %vm324, %v1516, 0.0
    %1583 = vadd.xlane.f32.xlu0 %v1582
    %v1584 = vpop.xlane.xlu0 %1583
    %v1585 = vsel %vm324, %v1518, 0.0
    %1586 = vadd.xlane.f32.xlu0 %v1585
    %v1587 = vpop.xlane.xlu0 %1586
    %v1588 = vsel %vm324, %v1520, 0.0
    %1589 = vadd.xlane.f32.xlu0 %v1588
    %v1590 = vpop.xlane.xlu0 %1589
    %v1591 = vsel %vm324, %v1522, 0.0
    %1592 = vadd.xlane.f32.xlu0 %v1591
    %v1593 = vpop.xlane.xlu0 %1592
    %v1594 = vsel %vm324, %v1524, 0.0
    %1595 = vadd.xlane.f32.xlu0 %v1594
    %v1596 = vpop.xlane.xlu0 %1595
    %v1597 = vrcp.pop %v1527
    %v1598 = vmul.f32 %v1478, %v1597
    %v1599 = vrcp.pop %v1530
    %v1600 = vmul.f32 %v1480, %v1599
    %v1601 = vrcp.pop %v1533
    %v1602 = vmul.f32 %v1482, %v1601
    %v1603 = vrcp.pop %v1536
    %v1604 = vmul.f32 %v1484, %v1603
    %v1605 = vrcp.pop %v1539
    %v1606 = vmul.f32 %v1486, %v1605
    %v1607 = vrcp.pop %v1542
    %v1608 = vmul.f32 %v1488, %v1607
    %v1609 = vrcp.pop %v1545
    %v1610 = vmul.f32 %v1490, %v1609
    %v1611 = vrcp.pop %v1548
    %v1612 = vmul.f32 %v1492, %v1611
    %v1613 = vrcp.pop %v1551
    %v1614 = vmul.f32 %v1494, %v1613
    %v1615 = vrcp.pop %v1554
    %v1616 = vmul.f32 %v1496, %v1615
    %v1617 = vrcp.pop %v1557
    %v1618 = vmul.f32 %v1498, %v1617
    %v1619 = vrcp.pop %v1560
    %v1620 = vmul.f32 %v1500, %v1619
    %v1621 = vrcp.pop %v1563
    %v1622 = vmul.f32 %v1502, %v1621
    %v1623 = vrcp.pop %v1566
    %v1624 = vmul.f32 %v1504, %v1623
    %v1625 = vrcp.pop %v1569
    %v1626 = vmul.f32 %v1506, %v1625
    %v1627 = vrcp.pop %v1572
    %v1628 = vmul.f32 %v1508, %v1627
    %v1629 = vrcp.pop %v1575
    %v1630 = vmul.f32 %v1510, %v1629
    %v1631 = vrcp.pop %v1578
    %v1632 = vmul.f32 %v1512, %v1631
    %v1633 = vrcp.pop %v1581
    %v1634 = vmul.f32 %v1514, %v1633
    %v1635 = vrcp.pop %v1584
    %v1636 = vmul.f32 %v1516, %v1635
    %v1637 = vrcp.pop %v1587
    %v1638 = vmul.f32 %v1518, %v1637
    %v1639 = vrcp.pop %v1590
    %v1640 = vmul.f32 %v1520, %v1639
    %v1641 = vrcp.pop %v1593
    %v1642 = vmul.f32 %v1522, %v1641
    %v1643 = vrcp.pop %v1596
    %v1644 = vmul.f32 %v1524, %v1643
    %1645 = vrot.lane.b32.xlu0 %v182, 112
    %v1646 = vpop.permute.xlu0 %1645
    %1647 = vrot.lane.b32.xlu0 %v188, 112
    %v1648 = vpop.permute.xlu0 %1647
    %v1652 = vsel %vm324, %v1598, 0
    %v1655 = vsel %vm324, %v1600, 0
    %1657 = vmatprep.subr.mxu0 0.0
    %1658 = vmatpush1.msra.mxu0 %v1646
    %1659 = vmatprep.subr.mxu0 0.0
    %1660 = vmatpush1.msra.mxu0 %v1648
    %1661 = vmatprep.subr.mxu0 0.0
    %1662 = vmatpush1.msra.mxu0 0.0
    %1663 = vmatprep.subr.mxu0 0.0
    %1664 = vmatpush1.msra.mxu0 0.0
    %1665 = vmatprep.subr.mxu0 0.0
    %1666 = vmatpush1.msra.mxu0 0.0
    %1667 = vmatprep.subr.mxu0 0.0
    %1668 = vmatpush1.msra.mxu0 0.0
    %1669 = vmatprep.subr.mxu0 0.0
    %1670 = vmatpush1.msra.mxu0 0.0
    %1671 = vmatprep.subr.mxu0 0.0
    %1672 = vmatpush1.msra.mxu0 0.0
    %1673 = vmatprep.subr.mxu0 0.0
    %1674 = vmatpush1.msra.mxu0 0.0
    %1675 = vmatprep.subr.mxu0 0.0
    %1676 = vmatpush1.msra.mxu0 0.0
    %1677 = vmatprep.subr.mxu0 0.0
    %1678 = vmatpush1.msra.mxu0 0.0
    %1679 = vmatprep.subr.mxu0 0.0
    %1680 = vmatpush1.msra.mxu0 0.0
    %1681 = vmatprep.subr.mxu0 0.0
    %1682 = vmatpush1.msra.mxu0 0.0
    %1683 = vmatprep.subr.mxu0 0.0
    %1684 = vmatpush1.msra.mxu0 0.0
    %1685 = vmatprep.subr.mxu0 0.0
    %1686 = vmatpush1.msra.mxu0 0.0
    %1687 = vmatprep.subr.mxu0 0.0
    %1688 = vmatpush1.msra.mxu0 0.0
    %1689 = vmatprep.subr.mxu0 0.0
    %1690 = vmatpush1.msra.mxu0 0.0
    %1691 = vmatprep.subr.mxu0 0.0
    %1692 = vmatpush1.msra.mxu0 0.0
    %1693 = vmatprep.subr.mxu0 0.0
    %1694 = vmatpush1.msra.mxu0 0.0
    %1695 = vmatprep.subr.mxu0 0.0
    %1696 = vmatpush1.msra.mxu0 0.0
    %1697 = vmatprep.subr.mxu0 0.0
    %1698 = vmatpush1.msra.mxu0 0.0
    %1699 = vmatprep.subr.mxu0 0.0
    %1700 = vmatpush1.msra.mxu0 0.0
    %1701 = vmatprep.subr.mxu0 0.0
    %1702 = vmatpush1.msra.mxu0 0.0
    %1703 = vmatprep.subr.mxu0 0.0
    %1704 = vmatpush1.msra.mxu0 0.0
    %1705 = vmatprep.subr.mxu0 0.0
    %1706 = vmatpush1.msra.mxu0 0.0
    %1707 = vmatprep.subr.mxu0 0.0
    %1708 = vmatpush1.msra.mxu0 0.0
    %1709 = vmatprep.subr.mxu0 0.0
    %1710 = vmatpush1.msra.mxu0 0.0
    %1711 = vmatprep.subr.mxu0 0.0
    %1712 = vmatpush1.msra.mxu0 0.0
    %1713 = vmatprep.subr.mxu0 0.0
    %1714 = vmatpush1.msra.mxu0 0.0
    %1715 = vmatprep.subr.mxu0 0.0
    %1716 = vmatpush1.msra.mxu0 0.0
    %1717 = vmatprep.subr.mxu0 0.0
    %1718 = vmatpush1.msra.mxu0 0.0
    %1719 = vmatprep.subr.mxu0 0.0
    %1720 = vmatpush1.msra.mxu0 0.0
    %1721 = vmatprep.mubr.f32.mxu0 0.0
    %1722 = vmatmul.mubr.f32.gmra.mrb[0].mxu0 %v1652
    %v1723 = vpop.f32.mrb[0].mxu0
    %v1724 = vadd.f32 0.0, %v1723
    %v1725 = vpop.f32.mrb[0].mxu0
    %1726 = vmatprep.mubr.f32.mxu0 0.0
    %1727 = vmatmul.mubr.f32.gmra.mrb[0].mxu0 %v1655
    %v1728 = vpop.f32.mrb[0].mxu0
    %v1729 = vadd.f32 0.0, %v1728
    %v1730 = vpop.f32.mrb[0].mxu0
    %1731 = vdwg.mxu0
    %1732 = vrot.lane.b32.xlu0 %v270, 112
    %v1733 = vpop.permute.xlu0 %1732
    %1734 = vrot.lane.b32.xlu0 %v272, 112
    %v1735 = vpop.permute.xlu0 %1734
    %v1739 = vsel %vm324, %v1602, 0
    %v1742 = vsel %vm324, %v1604, 0
    %1744 = vmatprep.subr.mxu0 0.0
    %1745 = vmatpush1.msra.mxu0 %v1733
    %1746 = vmatprep.subr.mxu0 0.0
    %1747 = vmatpush1.msra.mxu0 %v1735
    %1748 = vmatprep.subr.mxu0 0.0
    %1749 = vmatpush1.msra.mxu0 0.0
    %1750 = vmatprep.subr.mxu0 0.0
    %1751 = vmatpush1.msra.mxu0 0.0
    %1752 = vmatprep.subr.mxu0 0.0
    %1753 = vmatpush1.msra.mxu0 0.0
    %1754 = vmatprep.subr.mxu0 0.0
    %1755 = vmatpush1.msra.mxu0 0.0
    %1756 = vmatprep.subr.mxu0 0.0
    %1757 = vmatpush1.msra.mxu0 0.0
    %1758 = vmatprep.subr.mxu0 0.0
    %1759 = vmatpush1.msra.mxu0 0.0
    %1760 = vmatprep.subr.mxu0 0.0
    %1761 = vmatpush1.msra.mxu0 0.0
    %1762 = vmatprep.subr.mxu0 0.0
    %1763 = vmatpush1.msra.mxu0 0.0
    %1764 = vmatprep.subr.mxu0 0.0
    %1765 = vmatpush1.msra.mxu0 0.0
    %1766 = vmatprep.subr.mxu0 0.0
    %1767 = vmatpush1.msra.mxu0 0.0
    %1768 = vmatprep.subr.mxu0 0.0
    %1769 = vmatpush1.msra.mxu0 0.0
    %1770 = vmatprep.subr.mxu0 0.0
    %1771 = vmatpush1.msra.mxu0 0.0
    %1772 = vmatprep.subr.mxu0 0.0
    %1773 = vmatpush1.msra.mxu0 0.0
    %1774 = vmatprep.subr.mxu0 0.0
    %1775 = vmatpush1.msra.mxu0 0.0
    %1776 = vmatprep.subr.mxu0 0.0
    %1777 = vmatpush1.msra.mxu0 0.0
    %1778 = vmatprep.subr.mxu0 0.0
    %1779 = vmatpush1.msra.mxu0 0.0
    %1780 = vmatprep.subr.mxu0 0.0
    %1781 = vmatpush1.msra.mxu0 0.0
    %1782 = vmatprep.subr.mxu0 0.0
    %1783 = vmatpush1.msra.mxu0 0.0
    %1784 = vmatprep.subr.mxu0 0.0
    %1785 = vmatpush1.msra.mxu0 0.0
    %1786 = vmatprep.subr.mxu0 0.0
    %1787 = vmatpush1.msra.mxu0 0.0
    %1788 = vmatprep.subr.mxu0 0.0
    %1789 = vmatpush1.msra.mxu0 0.0
    %1790 = vmatprep.subr.mxu0 0.0
    %1791 = vmatpush1.msra.mxu0 0.0
    %1792 = vmatprep.subr.mxu0 0.0
    %1793 = vmatpush1.msra.mxu0 0.0
    %1794 = vmatprep.subr.mxu0 0.0
    %1795 = vmatpush1.msra.mxu0 0.0
    %1796 = vmatprep.subr.mxu0 0.0
    %1797 = vmatpush1.msra.mxu0 0.0
    %1798 = vmatprep.subr.mxu0 0.0
    %1799 = vmatpush1.msra.mxu0 0.0
    %1800 = vmatprep.subr.mxu0 0.0
    %1801 = vmatpush1.msra.mxu0 0.0
    %1802 = vmatprep.subr.mxu0 0.0
    %1803 = vmatpush1.msra.mxu0 0.0
    %1804 = vmatprep.subr.mxu0 0.0
    %1805 = vmatpush1.msra.mxu0 0.0
    %1806 = vmatprep.subr.mxu0 0.0
    %1807 = vmatpush1.msra.mxu0 0.0
    %1808 = vmatprep.mubr.f32.mxu0 0.0
    %1809 = vmatmul.mubr.f32.gmra.mrb[0].mxu0 %v1739
    %v1810 = vpop.f32.mrb[0].mxu0
    %v1811 = vadd.f32 0.0, %v1810
    %v1812 = vpop.f32.mrb[0].mxu0
    %1813 = vmatprep.mubr.f32.mxu0 0.0
    %1814 = vmatmul.mubr.f32.gmra.mrb[0].mxu0 %v1742
    %v1815 = vpop.f32.mrb[0].mxu0
    %v1816 = vadd.f32 0.0, %v1815
    %v1817 = vpop.f32.mrb[0].mxu0
    %1818 = vdwg.mxu0
    %1819 = vrot.lane.b32.xlu0 %v274, 112
    %v1820 = vpop.permute.xlu0 %1819
    %1821 = vrot.lane.b32.xlu0 %v276, 112
    %v1822 = vpop.permute.xlu0 %1821
    %v1826 = vsel %vm324, %v1606, 0
    %v1829 = vsel %vm324, %v1608, 0
    %1831 = vmatprep.subr.mxu0 0.0
    %1832 = vmatpush1.msra.mxu0 %v1820
    %1833 = vmatprep.subr.mxu0 0.0
    %1834 = vmatpush1.msra.mxu0 %v1822
    %1835 = vmatprep.subr.mxu0 0.0
    %1836 = vmatpush1.msra.mxu0 0.0
    %1837 = vmatprep.subr.mxu0 0.0
    %1838 = vmatpush1.msra.mxu0 0.0
    %1839 = vmatprep.subr.mxu0 0.0
    %1840 = vmatpush1.msra.mxu0 0.0
    %1841 = vmatprep.subr.mxu0 0.0
    %1842 = vmatpush1.msra.mxu0 0.0
    %1843 = vmatprep.subr.mxu0 0.0
    %1844 = vmatpush1.msra.mxu0 0.0
    %1845 = vmatprep.subr.mxu0 0.0
    %1846 = vmatpush1.msra.mxu0 0.0
    %1847 = vmatprep.subr.mxu0 0.0
    %1848 = vmatpush1.msra.mxu0 0.0
    %1849 = vmatprep.subr.mxu0 0.0
    %1850 = vmatpush1.msra.mxu0 0.0
    %1851 = vmatprep.subr.mxu0 0.0
    %1852 = vmatpush1.msra.mxu0 0.0
    %1853 = vmatprep.subr.mxu0 0.0
    %1854 = vmatpush1.msra.mxu0 0.0
    %1855 = vmatprep.subr.mxu0 0.0
    %1856 = vmatpush1.msra.mxu0 0.0
    %1857 = vmatprep.subr.mxu0 0.0
    %1858 = vmatpush1.msra.mxu0 0.0
    %1859 = vmatprep.subr.mxu0 0.0
    %1860 = vmatpush1.msra.mxu0 0.0
    %1861 = vmatprep.subr.mxu0 0.0
    %1862 = vmatpush1.msra.mxu0 0.0
    %1863 = vmatprep.subr.mxu0 0.0
    %1864 = vmatpush1.msra.mxu0 0.0
    %1865 = vmatprep.subr.mxu0 0.0
    %1866 = vmatpush1.msra.mxu0 0.0
    %1867 = vmatprep.subr.mxu0 0.0
    %1868 = vmatpush1.msra.mxu0 0.0
    %1869 = vmatprep.subr.mxu0 0.0
    %1870 = vmatpush1.msra.mxu0 0.0
    %1871 = vmatprep.subr.mxu0 0.0
    %1872 = vmatpush1.msra.mxu0 0.0
    %1873 = vmatprep.subr.mxu0 0.0
    %1874 = vmatpush1.msra.mxu0 0.0
    %1875 = vmatprep.subr.mxu0 0.0
    %1876 = vmatpush1.msra.mxu0 0.0
    %1877 = vmatprep.subr.mxu0 0.0
    %1878 = vmatpush1.msra.mxu0 0.0
    %1879 = vmatprep.subr.mxu0 0.0
    %1880 = vmatpush1.msra.mxu0 0.0
    %1881 = vmatprep.subr.mxu0 0.0
    %1882 = vmatpush1.msra.mxu0 0.0
    %1883 = vmatprep.subr.mxu0 0.0
    %1884 = vmatpush1.msra.mxu0 0.0
    %1885 = vmatprep.subr.mxu0 0.0
    %1886 = vmatpush1.msra.mxu0 0.0
    %1887 = vmatprep.subr.mxu0 0.0
    %1888 = vmatpush1.msra.mxu0 0.0
    %1889 = vmatprep.subr.mxu0 0.0
    %1890 = vmatpush1.msra.mxu0 0.0
    %1891 = vmatprep.subr.mxu0 0.0
    %1892 = vmatpush1.msra.mxu0 0.0
    %1893 = vmatprep.subr.mxu0 0.0
    %1894 = vmatpush1.msra.mxu0 0.0
    %1895 = vmatprep.mubr.f32.mxu0 0.0
    %1896 = vmatmul.mubr.f32.gmra.mrb[0].mxu0 %v1826
    %v1897 = vpop.f32.mrb[0].mxu0
    %v1898 = vadd.f32 0.0, %v1897
    %v1899 = vpop.f32.mrb[0].mxu0
    %1900 = vmatprep.mubr.f32.mxu0 0.0
    %1901 = vmatmul.mubr.f32.gmra.mrb[0].mxu0 %v1829
    %v1902 = vpop.f32.mrb[0].mxu0
    %v1903 = vadd.f32 0.0, %v1902
    %v1904 = vpop.f32.mrb[0].mxu0
    %1905 = vdwg.mxu0
    %1906 = vrot.lane.b32.xlu0 %v278, 112
    %v1907 = vpop.permute.xlu0 %1906
    %1908 = vrot.lane.b32.xlu0 %v280, 112
    %v1909 = vpop.permute.xlu0 %1908
    %v1913 = vsel %vm324, %v1610, 0
    %v1916 = vsel %vm324, %v1612, 0
    %1918 = vmatprep.subr.mxu0 0.0
    %1919 = vmatpush1.msra.mxu0 %v1907
    %1920 = vmatprep.subr.mxu0 0.0
    %1921 = vmatpush1.msra.mxu0 %v1909
    %1922 = vmatprep.subr.mxu0 0.0
    %1923 = vmatpush1.msra.mxu0 0.0
    %1924 = vmatprep.subr.mxu0 0.0
    %1925 = vmatpush1.msra.mxu0 0.0
    %1926 = vmatprep.subr.mxu0 0.0
    %1927 = vmatpush1.msra.mxu0 0.0
    %1928 = vmatprep.subr.mxu0 0.0
    %1929 = vmatpush1.msra.mxu0 0.0
    %1930 = vmatprep.subr.mxu0 0.0
    %1931 = vmatpush1.msra.mxu0 0.0
    %1932 = vmatprep.subr.mxu0 0.0
    %1933 = vmatpush1.msra.mxu0 0.0
    %1934 = vmatprep.subr.mxu0 0.0
    %1935 = vmatpush1.msra.mxu0 0.0
    %1936 = vmatprep.subr.mxu0 0.0
    %1937 = vmatpush1.msra.mxu0 0.0
    %1938 = vmatprep.subr.mxu0 0.0
    %1939 = vmatpush1.msra.mxu0 0.0
    %1940 = vmatprep.subr.mxu0 0.0
    %1941 = vmatpush1.msra.mxu0 0.0
    %1942 = vmatprep.subr.mxu0 0.0
    %1943 = vmatpush1.msra.mxu0 0.0
    %1944 = vmatprep.subr.mxu0 0.0
    %1945 = vmatpush1.msra.mxu0 0.0
    %1946 = vmatprep.subr.mxu0 0.0
    %1947 = vmatpush1.msra.mxu0 0.0
    %1948 = vmatprep.subr.mxu0 0.0
    %1949 = vmatpush1.msra.mxu0 0.0
    %1950 = vmatprep.subr.mxu0 0.0
    %1951 = vmatpush1.msra.mxu0 0.0
    %1952 = vmatprep.subr.mxu0 0.0
    %1953 = vmatpush1.msra.mxu0 0.0
    %1954 = vmatprep.subr.mxu0 0.0
    %1955 = vmatpush1.msra.mxu0 0.0
    %1956 = vmatprep.subr.mxu0 0.0
    %1957 = vmatpush1.msra.mxu0 0.0
    %1958 = vmatprep.subr.mxu0 0.0
    %1959 = vmatpush1.msra.mxu0 0.0
    %1960 = vmatprep.subr.mxu0 0.0
    %1961 = vmatpush1.msra.mxu0 0.0
    %1962 = vmatprep.subr.mxu0 0.0
    %1963 = vmatpush1.msra.mxu0 0.0
    %1964 = vmatprep.subr.mxu0 0.0
    %1965 = vmatpush1.msra.mxu0 0.0
    %1966 = vmatprep.subr.mxu0 0.0
    %1967 = vmatpush1.msra.mxu0 0.0
    %1968 = vmatprep.subr.mxu0 0.0
    %1969 = vmatpush1.msra.mxu0 0.0
    %1970 = vmatprep.subr.mxu0 0.0
    %1971 = vmatpush1.msra.mxu0 0.0
    %1972 = vmatprep.subr.mxu0 0.0
    %1973 = vmatpush1.msra.mxu0 0.0
    %1974 = vmatprep.subr.mxu0 0.0
    %1975 = vmatpush1.msra.mxu0 0.0
    %1976 = vmatprep.subr.mxu0 0.0
    %1977 = vmatpush1.msra.mxu0 0.0
    %1978 = vmatprep.subr.mxu0 0.0
    %1979 = vmatpush1.msra.mxu0 0.0
    %1980 = vmatprep.subr.mxu0 0.0
    %1981 = vmatpush1.msra.mxu0 0.0
    %1982 = vmatprep.mubr.f32.mxu0 0.0
    %1983 = vmatmul.mubr.f32.gmra.mrb[0].mxu0 %v1913
    %v1984 = vpop.f32.mrb[0].mxu0
    %v1985 = vadd.f32 0.0, %v1984
    %v1986 = vpop.f32.mrb[0].mxu0
    %1987 = vmatprep.mubr.f32.mxu0 0.0
    %1988 = vmatmul.mubr.f32.gmra.mrb[0].mxu0 %v1916
    %v1989 = vpop.f32.mrb[0].mxu0
    %v1990 = vadd.f32 0.0, %v1989
    %v1991 = vpop.f32.mrb[0].mxu0
    %1992 = vdwg.mxu0
    %1993 = vrot.lane.b32.xlu0 %v282, 112
    %v1994 = vpop.permute.xlu0 %1993
    %1995 = vrot.lane.b32.xlu0 %v284, 112
    %v1996 = vpop.permute.xlu0 %1995
    %v2000 = vsel %vm324, %v1614, 0
    %v2003 = vsel %vm324, %v1616, 0
    %2005 = vmatprep.subr.mxu0 0.0
    %2006 = vmatpush1.msra.mxu0 %v1994
    %2007 = vmatprep.subr.mxu0 0.0
    %2008 = vmatpush1.msra.mxu0 %v1996
    %2009 = vmatprep.subr.mxu0 0.0
    %2010 = vmatpush1.msra.mxu0 0.0
    %2011 = vmatprep.subr.mxu0 0.0
    %2012 = vmatpush1.msra.mxu0 0.0
    %2013 = vmatprep.subr.mxu0 0.0
    %2014 = vmatpush1.msra.mxu0 0.0
    %2015 = vmatprep.subr.mxu0 0.0
    %2016 = vmatpush1.msra.mxu0 0.0
    %2017 = vmatprep.subr.mxu0 0.0
    %2018 = vmatpush1.msra.mxu0 0.0
    %2019 = vmatprep.subr.mxu0 0.0
    %2020 = vmatpush1.msra.mxu0 0.0
    %2021 = vmatprep.subr.mxu0 0.0
    %2022 = vmatpush1.msra.mxu0 0.0
    %2023 = vmatprep.subr.mxu0 0.0
    %2024 = vmatpush1.msra.mxu0 0.0
    %2025 = vmatprep.subr.mxu0 0.0
    %2026 = vmatpush1.msra.mxu0 0.0
    %2027 = vmatprep.subr.mxu0 0.0
    %2028 = vmatpush1.msra.mxu0 0.0
    %2029 = vmatprep.subr.mxu0 0.0
    %2030 = vmatpush1.msra.mxu0 0.0
    %2031 = vmatprep.subr.mxu0 0.0
    %2032 = vmatpush1.msra.mxu0 0.0
    %2033 = vmatprep.subr.mxu0 0.0
    %2034 = vmatpush1.msra.mxu0 0.0
    %2035 = vmatprep.subr.mxu0 0.0
    %2036 = vmatpush1.msra.mxu0 0.0
    %2037 = vmatprep.subr.mxu0 0.0
    %2038 = vmatpush1.msra.mxu0 0.0
    %2039 = vmatprep.subr.mxu0 0.0
    %2040 = vmatpush1.msra.mxu0 0.0
    %2041 = vmatprep.subr.mxu0 0.0
    %2042 = vmatpush1.msra.mxu0 0.0
    %2043 = vmatprep.subr.mxu0 0.0
    %2044 = vmatpush1.msra.mxu0 0.0
    %2045 = vmatprep.subr.mxu0 0.0
    %2046 = vmatpush1.msra.mxu0 0.0
    %2047 = vmatprep.subr.mxu0 0.0
    %2048 = vmatpush1.msra.mxu0 0.0
    %2049 = vmatprep.subr.mxu0 0.0
    %2050 = vmatpush1.msra.mxu0 0.0
    %2051 = vmatprep.subr.mxu0 0.0
    %2052 = vmatpush1.msra.mxu0 0.0
    %2053 = vmatprep.subr.mxu0 0.0
    %2054 = vmatpush1.msra.mxu0 0.0
    %2055 = vmatprep.subr.mxu0 0.0
    %2056 = vmatpush1.msra.mxu0 0.0
    %2057 = vmatprep.subr.mxu0 0.0
    %2058 = vmatpush1.msra.mxu0 0.0
    %2059 = vmatprep.subr.mxu0 0.0
    %2060 = vmatpush1.msra.mxu0 0.0
    %2061 = vmatprep.subr.mxu0 0.0
    %2062 = vmatpush1.msra.mxu0 0.0
    %2063 = vmatprep.subr.mxu0 0.0
    %2064 = vmatpush1.msra.mxu0 0.0
    %2065 = vmatprep.subr.mxu0 0.0
    %2066 = vmatpush1.msra.mxu0 0.0
    %2067 = vmatprep.subr.mxu0 0.0
    %2068 = vmatpush1.msra.mxu0 0.0
    %2069 = vmatprep.mubr.f32.mxu0 0.0
    %2070 = vmatmul.mubr.f32.gmra.mrb[0].mxu0 %v2000
    %v2071 = vpop.f32.mrb[0].mxu0
    %v2072 = vadd.f32 0.0, %v2071
    %v2073 = vpop.f32.mrb[0].mxu0
    %2074 = vmatprep.mubr.f32.mxu0 0.0
    %2075 = vmatmul.mubr.f32.gmra.mrb[0].mxu0 %v2003
    %v2076 = vpop.f32.mrb[0].mxu0
    %v2077 = vadd.f32 0.0, %v2076
    %v2078 = vpop.f32.mrb[0].mxu0
    %2079 = vdwg.mxu0
    %2080 = vrot.lane.b32.xlu0 %v296, 112
    %v2081 = vpop.permute.xlu0 %2080
    %2082 = vrot.lane.b32.xlu0 %v297, 112
    %v2083 = vpop.permute.xlu0 %2082
    %v2087 = vsel %vm324, %v1618, 0
    %v2090 = vsel %vm324, %v1620, 0
    %2092 = vmatprep.subr.mxu0 0.0
    %2093 = vmatpush1.msra.mxu0 %v2081
    %2094 = vmatprep.subr.mxu0 0.0
    %2095 = vmatpush1.msra.mxu0 %v2083
    %2096 = vmatprep.subr.mxu0 0.0
    %2097 = vmatpush1.msra.mxu0 0.0
    %2098 = vmatprep.subr.mxu0 0.0
    %2099 = vmatpush1.msra.mxu0 0.0
    %2100 = vmatprep.subr.mxu0 0.0
    %2101 = vmatpush1.msra.mxu0 0.0
    %2102 = vmatprep.subr.mxu0 0.0
    %2103 = vmatpush1.msra.mxu0 0.0
    %2104 = vmatprep.subr.mxu0 0.0
    %2105 = vmatpush1.msra.mxu0 0.0
    %2106 = vmatprep.subr.mxu0 0.0
    %2107 = vmatpush1.msra.mxu0 0.0
    %2108 = vmatprep.subr.mxu0 0.0
    %2109 = vmatpush1.msra.mxu0 0.0
    %2110 = vmatprep.subr.mxu0 0.0
    %2111 = vmatpush1.msra.mxu0 0.0
    %2112 = vmatprep.subr.mxu0 0.0
    %2113 = vmatpush1.msra.mxu0 0.0
    %2114 = vmatprep.subr.mxu0 0.0
    %2115 = vmatpush1.msra.mxu0 0.0
    %2116 = vmatprep.subr.mxu0 0.0
    %2117 = vmatpush1.msra.mxu0 0.0
    %2118 = vmatprep.subr.mxu0 0.0
    %2119 = vmatpush1.msra.mxu0 0.0
    %2120 = vmatprep.subr.mxu0 0.0
    %2121 = vmatpush1.msra.mxu0 0.0
    %2122 = vmatprep.subr.mxu0 0.0
    %2123 = vmatpush1.msra.mxu0 0.0
    %2124 = vmatprep.subr.mxu0 0.0
    %2125 = vmatpush1.msra.mxu0 0.0
    %2126 = vmatprep.subr.mxu0 0.0
    %2127 = vmatpush1.msra.mxu0 0.0
    %2128 = vmatprep.subr.mxu0 0.0
    %2129 = vmatpush1.msra.mxu0 0.0
    %2130 = vmatprep.subr.mxu0 0.0
    %2131 = vmatpush1.msra.mxu0 0.0
    %2132 = vmatprep.subr.mxu0 0.0
    %2133 = vmatpush1.msra.mxu0 0.0
    %2134 = vmatprep.subr.mxu0 0.0
    %2135 = vmatpush1.msra.mxu0 0.0
    %2136 = vmatprep.subr.mxu0 0.0
    %2137 = vmatpush1.msra.mxu0 0.0
    %2138 = vmatprep.subr.mxu0 0.0
    %2139 = vmatpush1.msra.mxu0 0.0
    %2140 = vmatprep.subr.mxu0 0.0
    %2141 = vmatpush1.msra.mxu0 0.0
    %2142 = vmatprep.subr.mxu0 0.0
    %2143 = vmatpush1.msra.mxu0 0.0
    %2144 = vmatprep.subr.mxu0 0.0
    %2145 = vmatpush1.msra.mxu0 0.0
    %2146 = vmatprep.subr.mxu0 0.0
    %2147 = vmatpush1.msra.mxu0 0.0
    %2148 = vmatprep.subr.mxu0 0.0
    %2149 = vmatpush1.msra.mxu0 0.0
    %2150 = vmatprep.subr.mxu0 0.0
    %2151 = vmatpush1.msra.mxu0 0.0
    %2152 = vmatprep.subr.mxu0 0.0
    %2153 = vmatpush1.msra.mxu0 0.0
    %2154 = vmatprep.subr.mxu0 0.0
    %2155 = vmatpush1.msra.mxu0 0.0
    %2156 = vmatprep.mubr.f32.mxu0 0.0
    %2157 = vmatmul.mubr.f32.gmra.mrb[0].mxu0 %v2087
    %v2158 = vpop.f32.mrb[0].mxu0
    %v2159 = vadd.f32 0.0, %v2158
    %v2160 = vpop.f32.mrb[0].mxu0
    %2161 = vmatprep.mubr.f32.mxu0 0.0
    %2162 = vmatmul.mubr.f32.gmra.mrb[0].mxu0 %v2090
    %v2163 = vpop.f32.mrb[0].mxu0
    %v2164 = vadd.f32 0.0, %v2163
    %v2165 = vpop.f32.mrb[0].mxu0
    %2166 = vdwg.mxu0
    %2167 = vrot.lane.b32.xlu0 %v299, 112
    %v2168 = vpop.permute.xlu0 %2167
    %2169 = vrot.lane.b32.xlu0 %v301, 112
    %v2170 = vpop.permute.xlu0 %2169
    %v2174 = vsel %vm324, %v1622, 0
    %v2177 = vsel %vm324, %v1624, 0
    %2179 = vmatprep.subr.mxu0 0.0
    %2180 = vmatpush1.msra.mxu0 %v2168
    %2181 = vmatprep.subr.mxu0 0.0
    %2182 = vmatpush1.msra.mxu0 %v2170
    %2183 = vmatprep.subr.mxu0 0.0
    %2184 = vmatpush1.msra.mxu0 0.0
    %2185 = vmatprep.subr.mxu0 0.0
    %2186 = vmatpush1.msra.mxu0 0.0
    %2187 = vmatprep.subr.mxu0 0.0
    %2188 = vmatpush1.msra.mxu0 0.0
    %2189 = vmatprep.subr.mxu0 0.0
    %2190 = vmatpush1.msra.mxu0 0.0
    %2191 = vmatprep.subr.mxu0 0.0
    %2192 = vmatpush1.msra.mxu0 0.0
    %2193 = vmatprep.subr.mxu0 0.0
    %2194 = vmatpush1.msra.mxu0 0.0
    %2195 = vmatprep.subr.mxu0 0.0
    %2196 = vmatpush1.msra.mxu0 0.0
    %2197 = vmatprep.subr.mxu0 0.0
    %2198 = vmatpush1.msra.mxu0 0.0
    %2199 = vmatprep.subr.mxu0 0.0
    %2200 = vmatpush1.msra.mxu0 0.0
    %2201 = vmatprep.subr.mxu0 0.0
    %2202 = vmatpush1.msra.mxu0 0.0
    %2203 = vmatprep.subr.mxu0 0.0
    %2204 = vmatpush1.msra.mxu0 0.0
    %2205 = vmatprep.subr.mxu0 0.0
    %2206 = vmatpush1.msra.mxu0 0.0
    %2207 = vmatprep.subr.mxu0 0.0
    %2208 = vmatpush1.msra.mxu0 0.0
    %2209 = vmatprep.subr.mxu0 0.0
    %2210 = vmatpush1.msra.mxu0 0.0
    %2211 = vmatprep.subr.mxu0 0.0
    %2212 = vmatpush1.msra.mxu0 0.0
    %2213 = vmatprep.subr.mxu0 0.0
    %2214 = vmatpush1.msra.mxu0 0.0
    %2215 = vmatprep.subr.mxu0 0.0
    %2216 = vmatpush1.msra.mxu0 0.0
    %2217 = vmatprep.subr.mxu0 0.0
    %2218 = vmatpush1.msra.mxu0 0.0
    %2219 = vmatprep.subr.mxu0 0.0
    %2220 = vmatpush1.msra.mxu0 0.0
    %2221 = vmatprep.subr.mxu0 0.0
    %2222 = vmatpush1.msra.mxu0 0.0
    %2223 = vmatprep.subr.mxu0 0.0
    %2224 = vmatpush1.msra.mxu0 0.0
    %2225 = vmatprep.subr.mxu0 0.0
    %2226 = vmatpush1.msra.mxu0 0.0
    %2227 = vmatprep.subr.mxu0 0.0
    %2228 = vmatpush1.msra.mxu0 0.0
    %2229 = vmatprep.subr.mxu0 0.0
    %2230 = vmatpush1.msra.mxu0 0.0
    %2231 = vmatprep.subr.mxu0 0.0
    %2232 = vmatpush1.msra.mxu0 0.0
    %2233 = vmatprep.subr.mxu0 0.0
    %2234 = vmatpush1.msra.mxu0 0.0
    %2235 = vmatprep.subr.mxu0 0.0
    %2236 = vmatpush1.msra.mxu0 0.0
    %2237 = vmatprep.subr.mxu0 0.0
    %2238 = vmatpush1.msra.mxu0 0.0
    %2239 = vmatprep.subr.mxu0 0.0
    %2240 = vmatpush1.msra.mxu0 0.0
    %2241 = vmatprep.subr.mxu0 0.0
    %2242 = vmatpush1.msra.mxu0 0.0
    %2243 = vmatprep.mubr.f32.mxu0 0.0
    %2244 = vmatmul.mubr.f32.gmra.mrb[0].mxu0 %v2174
    %v2245 = vpop.f32.mrb[0].mxu0
    %v2246 = vadd.f32 0.0, %v2245
    %v2247 = vpop.f32.mrb[0].mxu0
    %2248 = vmatprep.mubr.f32.mxu0 0.0
    %2249 = vmatmul.mubr.f32.gmra.mrb[0].mxu0 %v2177
    %v2250 = vpop.f32.mrb[0].mxu0
    %v2251 = vadd.f32 0.0, %v2250
    %v2252 = vpop.f32.mrb[0].mxu0
    %2253 = vdwg.mxu0
    %2254 = vrot.lane.b32.xlu0 %v303, 112
    %v2255 = vpop.permute.xlu0 %2254
    %2256 = vrot.lane.b32.xlu0 %v305, 112
    %v2257 = vpop.permute.xlu0 %2256
    %v2261 = vsel %vm324, %v1626, 0
    %v2264 = vsel %vm324, %v1628, 0
    %2266 = vmatprep.subr.mxu0 0.0
    %2267 = vmatpush1.msra.mxu0 %v2255
    %2268 = vmatprep.subr.mxu0 0.0
    %2269 = vmatpush1.msra.mxu0 %v2257
    %2270 = vmatprep.subr.mxu0 0.0
    %2271 = vmatpush1.msra.mxu0 0.0
    %2272 = vmatprep.subr.mxu0 0.0
    %2273 = vmatpush1.msra.mxu0 0.0
    %2274 = vmatprep.subr.mxu0 0.0
    %2275 = vmatpush1.msra.mxu0 0.0
    %2276 = vmatprep.subr.mxu0 0.0
    %2277 = vmatpush1.msra.mxu0 0.0
    %2278 = vmatprep.subr.mxu0 0.0
    %2279 = vmatpush1.msra.mxu0 0.0
    %2280 = vmatprep.subr.mxu0 0.0
    %2281 = vmatpush1.msra.mxu0 0.0
    %2282 = vmatprep.subr.mxu0 0.0
    %2283 = vmatpush1.msra.mxu0 0.0
    %2284 = vmatprep.subr.mxu0 0.0
    %2285 = vmatpush1.msra.mxu0 0.0
    %2286 = vmatprep.subr.mxu0 0.0
    %2287 = vmatpush1.msra.mxu0 0.0
    %2288 = vmatprep.subr.mxu0 0.0
    %2289 = vmatpush1.msra.mxu0 0.0
    %2290 = vmatprep.subr.mxu0 0.0
    %2291 = vmatpush1.msra.mxu0 0.0
    %2292 = vmatprep.subr.mxu0 0.0
    %2293 = vmatpush1.msra.mxu0 0.0
    %2294 = vmatprep.subr.mxu0 0.0
    %2295 = vmatpush1.msra.mxu0 0.0
    %2296 = vmatprep.subr.mxu0 0.0
    %2297 = vmatpush1.msra.mxu0 0.0
    %2298 = vmatprep.subr.mxu0 0.0
    %2299 = vmatpush1.msra.mxu0 0.0
    %2300 = vmatprep.subr.mxu0 0.0
    %2301 = vmatpush1.msra.mxu0 0.0
    %2302 = vmatprep.subr.mxu0 0.0
    %2303 = vmatpush1.msra.mxu0 0.0
    %2304 = vmatprep.subr.mxu0 0.0
    %2305 = vmatpush1.msra.mxu0 0.0
    %2306 = vmatprep.subr.mxu0 0.0
    %2307 = vmatpush1.msra.mxu0 0.0
    %2308 = vmatprep.subr.mxu0 0.0
    %2309 = vmatpush1.msra.mxu0 0.0
    %2310 = vmatprep.subr.mxu0 0.0
    %2311 = vmatpush1.msra.mxu0 0.0
    %2312 = vmatprep.subr.mxu0 0.0
    %2313 = vmatpush1.msra.mxu0 0.0
    %2314 = vmatprep.subr.mxu0 0.0
    %2315 = vmatpush1.msra.mxu0 0.0
    %2316 = vmatprep.subr.mxu0 0.0
    %2317 = vmatpush1.msra.mxu0 0.0
    %2318 = vmatprep.subr.mxu0 0.0
    %2319 = vmatpush1.msra.mxu0 0.0
    %2320 = vmatprep.subr.mxu0 0.0
    %2321 = vmatpush1.msra.mxu0 0.0
    %2322 = vmatprep.subr.mxu0 0.0
    %2323 = vmatpush1.msra.mxu0 0.0
    %2324 = vmatprep.subr.mxu0 0.0
    %2325 = vmatpush1.msra.mxu0 0.0
    %2326 = vmatprep.subr.mxu0 0.0
    %2327 = vmatpush1.msra.mxu0 0.0
    %2328 = vmatprep.subr.mxu0 0.0
    %2329 = vmatpush1.msra.mxu0 0.0
    %2330 = vmatprep.mubr.f32.mxu0 0.0
    %2331 = vmatmul.mubr.f32.gmra.mrb[0].mxu0 %v2261
    %v2332 = vpop.f32.mrb[0].mxu0
    %v2333 = vadd.f32 0.0, %v2332
    %v2334 = vpop.f32.mrb[0].mxu0
    %2335 = vmatprep.mubr.f32.mxu0 0.0
    %2336 = vmatmul.mubr.f32.gmra.mrb[0].mxu0 %v2264
    %v2337 = vpop.f32.mrb[0].mxu0
    %v2338 = vadd.f32 0.0, %v2337
    %v2339 = vpop.f32.mrb[0].mxu0
    %2340 = vdwg.mxu0
    %2341 = vrot.lane.b32.xlu0 %v307, 112
    %v2342 = vpop.permute.xlu0 %2341
    %2343 = vrot.lane.b32.xlu0 %v309, 112
    %v2344 = vpop.permute.xlu0 %2343
    %v2348 = vsel %vm324, %v1630, 0
    %v2351 = vsel %vm324, %v1632, 0
    %2353 = vmatprep.subr.mxu0 0.0
    %2354 = vmatpush1.msra.mxu0 %v2342
    %2355 = vmatprep.subr.mxu0 0.0
    %2356 = vmatpush1.msra.mxu0 %v2344
    %2357 = vmatprep.subr.mxu0 0.0
    %2358 = vmatpush1.msra.mxu0 0.0
    %2359 = vmatprep.subr.mxu0 0.0
    %2360 = vmatpush1.msra.mxu0 0.0
    %2361 = vmatprep.subr.mxu0 0.0
    %2362 = vmatpush1.msra.mxu0 0.0
    %2363 = vmatprep.subr.mxu0 0.0
    %2364 = vmatpush1.msra.mxu0 0.0
    %2365 = vmatprep.subr.mxu0 0.0
    %2366 = vmatpush1.msra.mxu0 0.0
    %2367 = vmatprep.subr.mxu0 0.0
    %2368 = vmatpush1.msra.mxu0 0.0
    %2369 = vmatprep.subr.mxu0 0.0
    %2370 = vmatpush1.msra.mxu0 0.0
    %2371 = vmatprep.subr.mxu0 0.0
    %2372 = vmatpush1.msra.mxu0 0.0
    %2373 = vmatprep.subr.mxu0 0.0
    %2374 = vmatpush1.msra.mxu0 0.0
    %2375 = vmatprep.subr.mxu0 0.0
    %2376 = vmatpush1.msra.mxu0 0.0
    %2377 = vmatprep.subr.mxu0 0.0
    %2378 = vmatpush1.msra.mxu0 0.0
    %2379 = vmatprep.subr.mxu0 0.0
    %2380 = vmatpush1.msra.mxu0 0.0
    %2381 = vmatprep.subr.mxu0 0.0
    %2382 = vmatpush1.msra.mxu0 0.0
    %2383 = vmatprep.subr.mxu0 0.0
    %2384 = vmatpush1.msra.mxu0 0.0
    %2385 = vmatprep.subr.mxu0 0.0
    %2386 = vmatpush1.msra.mxu0 0.0
    %2387 = vmatprep.subr.mxu0 0.0
    %2388 = vmatpush1.msra.mxu0 0.0
    %2389 = vmatprep.subr.mxu0 0.0
    %2390 = vmatpush1.msra.mxu0 0.0
    %2391 = vmatprep.subr.mxu0 0.0
    %2392 = vmatpush1.msra.mxu0 0.0
    %2393 = vmatprep.subr.mxu0 0.0
    %2394 = vmatpush1.msra.mxu0 0.0
    %2395 = vmatprep.subr.mxu0 0.0
    %2396 = vmatpush1.msra.mxu0 0.0
    %2397 = vmatprep.subr.mxu0 0.0
    %2398 = vmatpush1.msra.mxu0 0.0
    %2399 = vmatprep.subr.mxu0 0.0
    %2400 = vmatpush1.msra.mxu0 0.0
    %2401 = vmatprep.subr.mxu0 0.0
    %2402 = vmatpush1.msra.mxu0 0.0
    %2403 = vmatprep.subr.mxu0 0.0
    %2404 = vmatpush1.msra.mxu0 0.0
    %2405 = vmatprep.subr.mxu0 0.0
    %2406 = vmatpush1.msra.mxu0 0.0
    %2407 = vmatprep.subr.mxu0 0.0
    %2408 = vmatpush1.msra.mxu0 0.0
    %2409 = vmatprep.subr.mxu0 0.0
    %2410 = vmatpush1.msra.mxu0 0.0
    %2411 = vmatprep.subr.mxu0 0.0
    %2412 = vmatpush1.msra.mxu0 0.0
    %2413 = vmatprep.subr.mxu0 0.0
    %2414 = vmatpush1.msra.mxu0 0.0
    %2415 = vmatprep.subr.mxu0 0.0
    %2416 = vmatpush1.msra.mxu0 0.0
    %2417 = vmatprep.mubr.f32.mxu0 0.0
    %2418 = vmatmul.mubr.f32.gmra.mrb[0].mxu0 %v2348
    %v2419 = vpop.f32.mrb[0].mxu0
    %v2420 = vadd.f32 0.0, %v2419
    %v2421 = vpop.f32.mrb[0].mxu0
    %2422 = vmatprep.mubr.f32.mxu0 0.0
    %2423 = vmatmul.mubr.f32.gmra.mrb[0].mxu0 %v2351
    %v2424 = vpop.f32.mrb[0].mxu0
    %v2425 = vadd.f32 0.0, %v2424
    %v2426 = vpop.f32.mrb[0].mxu0
    %2427 = vdwg.mxu0
    %2428 = vrot.lane.b32.xlu0 %v311, 112
    %v2429 = vpop.permute.xlu0 %2428
    %2430 = vrot.lane.b32.xlu0 %v313, 112
    %v2431 = vpop.permute.xlu0 %2430
    %v2435 = vsel %vm324, %v1634, 0
    %v2438 = vsel %vm324, %v1636, 0
    %2440 = vmatprep.subr.mxu0 0.0
    %2441 = vmatpush1.msra.mxu0 %v2429
    %2442 = vmatprep.subr.mxu0 0.0
    %2443 = vmatpush1.msra.mxu0 %v2431
    %2444 = vmatprep.subr.mxu0 0.0
    %2445 = vmatpush1.msra.mxu0 0.0
    %2446 = vmatprep.subr.mxu0 0.0
    %2447 = vmatpush1.msra.mxu0 0.0
    %2448 = vmatprep.subr.mxu0 0.0
    %2449 = vmatpush1.msra.mxu0 0.0
    %2450 = vmatprep.subr.mxu0 0.0
    %2451 = vmatpush1.msra.mxu0 0.0
    %2452 = vmatprep.subr.mxu0 0.0
    %2453 = vmatpush1.msra.mxu0 0.0
    %2454 = vmatprep.subr.mxu0 0.0
    %2455 = vmatpush1.msra.mxu0 0.0
    %2456 = vmatprep.subr.mxu0 0.0
    %2457 = vmatpush1.msra.mxu0 0.0
    %2458 = vmatprep.subr.mxu0 0.0
    %2459 = vmatpush1.msra.mxu0 0.0
    %2460 = vmatprep.subr.mxu0 0.0
    %2461 = vmatpush1.msra.mxu0 0.0
    %2462 = vmatprep.subr.mxu0 0.0
    %2463 = vmatpush1.msra.mxu0 0.0
    %2464 = vmatprep.subr.mxu0 0.0
    %2465 = vmatpush1.msra.mxu0 0.0
    %2466 = vmatprep.subr.mxu0 0.0
    %2467 = vmatpush1.msra.mxu0 0.0
    %2468 = vmatprep.subr.mxu0 0.0
    %2469 = vmatpush1.msra.mxu0 0.0
    %2470 = vmatprep.subr.mxu0 0.0
    %2471 = vmatpush1.msra.mxu0 0.0
    %2472 = vmatprep.subr.mxu0 0.0
    %2473 = vmatpush1.msra.mxu0 0.0
    %2474 = vmatprep.subr.mxu0 0.0
    %2475 = vmatpush1.msra.mxu0 0.0
    %2476 = vmatprep.subr.mxu0 0.0
    %2477 = vmatpush1.msra.mxu0 0.0
    %2478 = vmatprep.subr.mxu0 0.0
    %2479 = vmatpush1.msra.mxu0 0.0
    %2480 = vmatprep.subr.mxu0 0.0
    %2481 = vmatpush1.msra.mxu0 0.0
    %2482 = vmatprep.subr.mxu0 0.0
    %2483 = vmatpush1.msra.mxu0 0.0
    %2484 = vmatprep.subr.mxu0 0.0
    %2485 = vmatpush1.msra.mxu0 0.0
    %2486 = vmatprep.subr.mxu0 0.0
    %2487 = vmatpush1.msra.mxu0 0.0
    %2488 = vmatprep.subr.mxu0 0.0
    %2489 = vmatpush1.msra.mxu0 0.0
    %2490 = vmatprep.subr.mxu0 0.0
    %2491 = vmatpush1.msra.mxu0 0.0
    %2492 = vmatprep.subr.mxu0 0.0
    %2493 = vmatpush1.msra.mxu0 0.0
    %2494 = vmatprep.subr.mxu0 0.0
    %2495 = vmatpush1.msra.mxu0 0.0
    %2496 = vmatprep.subr.mxu0 0.0
    %2497 = vmatpush1.msra.mxu0 0.0
    %2498 = vmatprep.subr.mxu0 0.0
    %2499 = vmatpush1.msra.mxu0 0.0
    %2500 = vmatprep.subr.mxu0 0.0
    %2501 = vmatpush1.msra.mxu0 0.0
    %2502 = vmatprep.subr.mxu0 0.0
    %2503 = vmatpush1.msra.mxu0 0.0
    %2504 = vmatprep.mubr.f32.mxu0 0.0
    %2505 = vmatmul.mubr.f32.gmra.mrb[0].mxu0 %v2435
    %v2506 = vpop.f32.mrb[0].mxu0
    %v2507 = vadd.f32 0.0, %v2506
    %v2508 = vpop.f32.mrb[0].mxu0
    %2509 = vmatprep.mubr.f32.mxu0 0.0
    %2510 = vmatmul.mubr.f32.gmra.mrb[0].mxu0 %v2438
    %v2511 = vpop.f32.mrb[0].mxu0
    %v2512 = vadd.f32 0.0, %v2511
    %v2513 = vpop.f32.mrb[0].mxu0
    %2514 = vdwg.mxu0
    %2515 = vrot.lane.b32.xlu0 %v325, 112
    %v2516 = vpop.permute.xlu0 %2515
    %2517 = vrot.lane.b32.xlu0 %v326, 112
    %v2518 = vpop.permute.xlu0 %2517
    %v2522 = vsel %vm324, %v1638, 0
    %v2525 = vsel %vm324, %v1640, 0
    %2527 = vmatprep.subr.mxu0 0.0
    %2528 = vmatpush1.msra.mxu0 %v2516
    %2529 = vmatprep.subr.mxu0 0.0
    %2530 = vmatpush1.msra.mxu0 %v2518
    %2531 = vmatprep.subr.mxu0 0.0
    %2532 = vmatpush1.msra.mxu0 0.0
    %2533 = vmatprep.subr.mxu0 0.0
    %2534 = vmatpush1.msra.mxu0 0.0
    %2535 = vmatprep.subr.mxu0 0.0
    %2536 = vmatpush1.msra.mxu0 0.0
    %2537 = vmatprep.subr.mxu0 0.0
    %2538 = vmatpush1.msra.mxu0 0.0
    %2539 = vmatprep.subr.mxu0 0.0
    %2540 = vmatpush1.msra.mxu0 0.0
    %2541 = vmatprep.subr.mxu0 0.0
    %2542 = vmatpush1.msra.mxu0 0.0
    %2543 = vmatprep.subr.mxu0 0.0
    %2544 = vmatpush1.msra.mxu0 0.0
    %2545 = vmatprep.subr.mxu0 0.0
    %2546 = vmatpush1.msra.mxu0 0.0
    %2547 = vmatprep.subr.mxu0 0.0
    %2548 = vmatpush1.msra.mxu0 0.0
    %2549 = vmatprep.subr.mxu0 0.0
    %2550 = vmatpush1.msra.mxu0 0.0
    %2551 = vmatprep.subr.mxu0 0.0
    %2552 = vmatpush1.msra.mxu0 0.0
    %2553 = vmatprep.subr.mxu0 0.0
    %2554 = vmatpush1.msra.mxu0 0.0
    %2555 = vmatprep.subr.mxu0 0.0
    %2556 = vmatpush1.msra.mxu0 0.0
    %2557 = vmatprep.subr.mxu0 0.0
    %2558 = vmatpush1.msra.mxu0 0.0
    %2559 = vmatprep.subr.mxu0 0.0
    %2560 = vmatpush1.msra.mxu0 0.0
    %2561 = vmatprep.subr.mxu0 0.0
    %2562 = vmatpush1.msra.mxu0 0.0
    %2563 = vmatprep.subr.mxu0 0.0
    %2564 = vmatpush1.msra.mxu0 0.0
    %2565 = vmatprep.subr.mxu0 0.0
    %2566 = vmatpush1.msra.mxu0 0.0
    %2567 = vmatprep.subr.mxu0 0.0
    %2568 = vmatpush1.msra.mxu0 0.0
    %2569 = vmatprep.subr.mxu0 0.0
    %2570 = vmatpush1.msra.mxu0 0.0
    %2571 = vmatprep.subr.mxu0 0.0
    %2572 = vmatpush1.msra.mxu0 0.0
    %2573 = vmatprep.subr.mxu0 0.0
    %2574 = vmatpush1.msra.mxu0 0.0
    %2575 = vmatprep.subr.mxu0 0.0
    %2576 = vmatpush1.msra.mxu0 0.0
    %2577 = vmatprep.subr.mxu0 0.0
    %2578 = vmatpush1.msra.mxu0 0.0
    %2579 = vmatprep.subr.mxu0 0.0
    %2580 = vmatpush1.msra.mxu0 0.0
    %2581 = vmatprep.subr.mxu0 0.0
    %2582 = vmatpush1.msra.mxu0 0.0
    %2583 = vmatprep.subr.mxu0 0.0
    %2584 = vmatpush1.msra.mxu0 0.0
    %2585 = vmatprep.subr.mxu0 0.0
    %2586 = vmatpush1.msra.mxu0 0.0
    %2587 = vmatprep.subr.mxu0 0.0
    %2588 = vmatpush1.msra.mxu0 0.0
    %2589 = vmatprep.subr.mxu0 0.0
    %2590 = vmatpush1.msra.mxu0 0.0
    %2591 = vmatprep.mubr.f32.mxu0 0.0
    %2592 = vmatmul.mubr.f32.gmra.mrb[0].mxu0 %v2522
    %v2593 = vpop.f32.mrb[0].mxu0
    %v2594 = vadd.f32 0.0, %v2593
    %v2595 = vpop.f32.mrb[0].mxu0
    %2596 = vmatprep.mubr.f32.mxu0 0.0
    %2597 = vmatmul.mubr.f32.gmra.mrb[0].mxu0 %v2525
    %v2598 = vpop.f32.mrb[0].mxu0
    %v2599 = vadd.f32 0.0, %v2598
    %v2600 = vpop.f32.mrb[0].mxu0
    %2601 = vdwg.mxu0
    %2602 = vrot.lane.b32.xlu0 %v328, 112
    %v2603 = vpop.permute.xlu0 %2602
    %2604 = vrot.lane.b32.xlu0 %v330, 112
    %v2605 = vpop.permute.xlu0 %2604
    %v2609 = vsel %vm324, %v1642, 0
    %v2612 = vsel %vm324, %v1644, 0
    %2614 = vmatprep.subr.mxu0 0.0
    %2615 = vmatpush1.msra.mxu0 %v2603
    %2616 = vmatprep.subr.mxu0 0.0
    %2617 = vmatpush1.msra.mxu0 %v2605
    %2618 = vmatprep.subr.mxu0 0.0
    %2619 = vmatpush1.msra.mxu0 0.0
    %2620 = vmatprep.subr.mxu0 0.0
    %2621 = vmatpush1.msra.mxu0 0.0
    %2622 = vmatprep.subr.mxu0 0.0
    %2623 = vmatpush1.msra.mxu0 0.0
    %2624 = vmatprep.subr.mxu0 0.0
    %2625 = vmatpush1.msra.mxu0 0.0
    %2626 = vmatprep.subr.mxu0 0.0
    %2627 = vmatpush1.msra.mxu0 0.0
    %2628 = vmatprep.subr.mxu0 0.0
    %2629 = vmatpush1.msra.mxu0 0.0
    %2630 = vmatprep.subr.mxu0 0.0
    %2631 = vmatpush1.msra.mxu0 0.0
    %2632 = vmatprep.subr.mxu0 0.0
    %2633 = vmatpush1.msra.mxu0 0.0
    %2634 = vmatprep.subr.mxu0 0.0
    %2635 = vmatpush1.msra.mxu0 0.0
    %2636 = vmatprep.subr.mxu0 0.0
    %2637 = vmatpush1.msra.mxu0 0.0
    %2638 = vmatprep.subr.mxu0 0.0
    %2639 = vmatpush1.msra.mxu0 0.0
    %2640 = vmatprep.subr.mxu0 0.0
    %2641 = vmatpush1.msra.mxu0 0.0
    %2642 = vmatprep.subr.mxu0 0.0
    %2643 = vmatpush1.msra.mxu0 0.0
    %2644 = vmatprep.subr.mxu0 0.0
    %2645 = vmatpush1.msra.mxu0 0.0
    %2646 = vmatprep.subr.mxu0 0.0
    %2647 = vmatpush1.msra.mxu0 0.0
    %2648 = vmatprep.subr.mxu0 0.0
    %2649 = vmatpush1.msra.mxu0 0.0
    %2650 = vmatprep.subr.mxu0 0.0
    %2651 = vmatpush1.msra.mxu0 0.0
    %2652 = vmatprep.subr.mxu0 0.0
    %2653 = vmatpush1.msra.mxu0 0.0
    %2654 = vmatprep.subr.mxu0 0.0
    %2655 = vmatpush1.msra.mxu0 0.0
    %2656 = vmatprep.subr.mxu0 0.0
    %2657 = vmatpush1.msra.mxu0 0.0
    %2658 = vmatprep.subr.mxu0 0.0
    %2659 = vmatpush1.msra.mxu0 0.0
    %2660 = vmatprep.subr.mxu0 0.0
    %2661 = vmatpush1.msra.mxu0 0.0
    %2662 = vmatprep.subr.mxu0 0.0
    %2663 = vmatpush1.msra.mxu0 0.0
    %2664 = vmatprep.subr.mxu0 0.0
    %2665 = vmatpush1.msra.mxu0 0.0
    %2666 = vmatprep.subr.mxu0 0.0
    %2667 = vmatpush1.msra.mxu0 0.0
    %2668 = vmatprep.subr.mxu0 0.0
    %2669 = vmatpush1.msra.mxu0 0.0
    %2670 = vmatprep.subr.mxu0 0.0
    %2671 = vmatpush1.msra.mxu0 0.0
    %2672 = vmatprep.subr.mxu0 0.0
    %2673 = vmatpush1.msra.mxu0 0.0
    %2674 = vmatprep.subr.mxu0 0.0
    %2675 = vmatpush1.msra.mxu0 0.0
    %2676 = vmatprep.subr.mxu0 0.0
    %2677 = vmatpush1.msra.mxu0 0.0
    %2678 = vmatprep.mubr.f32.mxu0 0.0
    %2679 = vmatmul.mubr.f32.gmra.mrb[0].mxu0 %v2609
    %v2680 = vpop.f32.mrb[0].mxu0
    %v2681 = vadd.f32 0.0, %v2680
    %v2682 = vpop.f32.mrb[0].mxu0
    %2683 = vmatprep.mubr.f32.mxu0 0.0
    %2684 = vmatmul.mubr.f32.gmra.mrb[0].mxu0 %v2612
    %v2685 = vpop.f32.mrb[0].mxu0
    %v2686 = vadd.f32 0.0, %v2685
    %v2687 = vpop.f32.mrb[0].mxu0
    %2688 = vdwg.mxu0
    %2691 = vrot.lane.b32.xlu0 %v1811, 8
    %v2692 = vpop.permute.xlu0 %2691
    %2693 = vrot.lane.b32.xlu0 %v1816, 8
    %v2694 = vpop.permute.xlu0 %2693
    %2699 = vrot.lane.b32.xlu0 %v1898, 16
    %v2700 = vpop.permute.xlu0 %2699
    %2701 = vrot.lane.b32.xlu0 %v1903, 16
    %v2702 = vpop.permute.xlu0 %2701
    %2707 = vrot.lane.b32.xlu0 %v1985, 24
    %v2708 = vpop.permute.xlu0 %2707
    %2709 = vrot.lane.b32.xlu0 %v1990, 24
    %v2710 = vpop.permute.xlu0 %2709
    %2715 = vrot.lane.b32.xlu0 %v2072, 32
    %v2716 = vpop.permute.xlu0 %2715
    %2717 = vrot.lane.b32.xlu0 %v2077, 32
    %v2718 = vpop.permute.xlu0 %2717
    %2723 = vrot.lane.b32.xlu0 %v2159, 40
    %v2724 = vpop.permute.xlu0 %2723
    %2725 = vrot.lane.b32.xlu0 %v2164, 40
    %v2726 = vpop.permute.xlu0 %2725
    %2731 = vrot.lane.b32.xlu0 %v2246, 48
    %v2732 = vpop.permute.xlu0 %2731
    %2733 = vrot.lane.b32.xlu0 %v2251, 48
    %v2734 = vpop.permute.xlu0 %2733
    %2739 = vrot.lane.b32.xlu0 %v2333, 56
    %v2740 = vpop.permute.xlu0 %2739
    %2741 = vrot.lane.b32.xlu0 %v2338, 56
    %v2742 = vpop.permute.xlu0 %2741
    %2747 = vrot.lane.b32.xlu0 %v2420, 64
    %v2748 = vpop.permute.xlu0 %2747
    %2749 = vrot.lane.b32.xlu0 %v2425, 64
    %v2750 = vpop.permute.xlu0 %2749
    %2755 = vrot.lane.b32.xlu0 %v2507, 72
    %v2756 = vpop.permute.xlu0 %2755
    %2757 = vrot.lane.b32.xlu0 %v2512, 72
    %v2758 = vpop.permute.xlu0 %2757
    %2763 = vrot.lane.b32.xlu0 %v2594, 80
    %v2764 = vpop.permute.xlu0 %2763
    %2765 = vrot.lane.b32.xlu0 %v2599, 80
    %v2766 = vpop.permute.xlu0 %2765
    %2771 = vrot.lane.b32.xlu0 %v2681, 88
    %v2772 = vpop.permute.xlu0 %2771
    %2773 = vrot.lane.b32.xlu0 %v2686, 88
    %v2774 = vpop.permute.xlu0 %2773
    %v2777 = vsel %vm295, %v1724, %v2692
    %v2778 = vsel %vm295, %v1729, %v2694
    %v2779 = vsel %vm324, %v2777, %v2700
    %v2780 = vsel %vm324, %v2778, %v2702
    %vm2781 = vcmask 195584
    %v2782 = vsel %vm2781, %v2779, %v2708
    %v2783 = vsel %vm2781, %v2780, %v2710
    %v2784 = vsel %vm38, %v2782, %v2716
    %v2785 = vsel %vm38, %v2783, %v2718
    %vm2786 = vcmask 326656
    %v2787 = vsel %vm2786, %v2784, %v2724
    %v2788 = vsel %vm2786, %v2785, %v2726
    %vm2789 = vcmask 392192
    %v2790 = vsel %vm2789, %v2787, %v2732
    %v2791 = vsel %vm2789, %v2788, %v2734
    %vm2792 = vcmask 457728
    %v2793 = vsel %vm2792, %v2790, %v2740
    %v2794 = vsel %vm2792, %v2791, %v2742
    %vm2795 = vcmask 523264
    %v2796 = vsel %vm2795, %v2793, %v2748
    %v2797 = vsel %vm2795, %v2794, %v2750
    %vm2798 = vcmask 588800
    %v2799 = vsel %vm2798, %v2796, %v2756
    %v2800 = vsel %vm2798, %v2797, %v2758
    %vm2801 = vcmask 654336
    %v2802 = vsel %vm2801, %v2799, %v2764
    %v2803 = vsel %vm2801, %v2800, %v2766
    %vm2804 = vcmask 719872
    %v2805 = vsel %vm2804, %v2802, %v2772
    %v2806 = vsel %vm2804, %v2803, %v2774
    %v2807 = vld [vmem:[%s4] sm:$0xff]
    %v2808 = vld [vmem:[%s4 + $0x8] sm:$0xff]
    %v2809 = vld [vmem:[%s4 + $0x10] sm:$0xff]
    %v2810 = vld [vmem:[%s4 + $0x18] sm:$0xff]
    %v2811 = vld [vmem:[%s4 + $0x20] sm:$0xff]
    %v2812 = vld [vmem:[%s4 + $0x28] sm:$0xff]
    %v2813 = vld [vmem:[%s4 + $0x30] sm:$0xff]
    %v2814 = vld [vmem:[%s4 + $0x38] sm:$0xff]
    %v2815 = vld [vmem:[%s4 + $0x40] sm:$0xff]
    %v2816 = vld [vmem:[%s4 + $0x48] sm:$0xff]
    %v2817 = vld [vmem:[%s4 + $0x50] sm:$0xff]
    %v2818 = vld [vmem:[%s4 + $0x58] sm:$0xff]
    %vm2819 = vcmask 785408
    %v2821 = vsel %vm2819, %v2805, 0
    %v2824 = vsel %vm2819, %v2806, 0
    %2826 = vmatprep.subr.mxu0 0.0
    %2827 = vmatpush1.msra.mxu0 %v2807
    %2828 = vmatprep.subr.mxu0 0.0
    %2829 = vmatpush1.msra.mxu0 %v2808
    %2830 = vmatprep.subr.mxu0 0.0
    %2831 = vmatpush1.msra.mxu0 %v2809
    %2832 = vmatprep.subr.mxu0 0.0
    %2833 = vmatpush1.msra.mxu0 %v2810
    %2834 = vmatprep.subr.mxu0 0.0
    %2835 = vmatpush1.msra.mxu0 %v2811
    %2836 = vmatprep.subr.mxu0 0.0
    %2837 = vmatpush1.msra.mxu0 %v2812
    %2838 = vmatprep.subr.mxu0 0.0
    %2839 = vmatpush1.msra.mxu0 %v2813
    %2840 = vmatprep.subr.mxu0 0.0
    %2841 = vmatpush1.msra.mxu0 %v2814
    %2842 = vmatprep.subr.mxu0 0.0
    %2843 = vmatpush1.msra.mxu0 %v2815
    %2844 = vmatprep.subr.mxu0 0.0
    %2845 = vmatpush1.msra.mxu0 %v2816
    %2846 = vmatprep.subr.mxu0 0.0
    %2847 = vmatpush1.msra.mxu0 %v2817
    %2848 = vmatprep.subr.mxu0 0.0
    %2849 = vmatpush1.msra.mxu0 %v2818
    %2850 = vmatprep.subr.mxu0 0.0
    %2851 = vmatpush1.msra.mxu0 0.0
    %2852 = vmatprep.subr.mxu0 0.0
    %2853 = vmatpush1.msra.mxu0 0.0
    %2854 = vmatprep.subr.mxu0 0.0
    %2855 = vmatpush1.msra.mxu0 0.0
    %2856 = vmatprep.subr.mxu0 0.0
    %2857 = vmatpush1.msra.mxu0 0.0
    %2858 = vmatprep.subr.mxu0 0.0
    %2859 = vmatpush1.msra.mxu0 0.0
    %2860 = vmatprep.subr.mxu0 0.0
    %2861 = vmatpush1.msra.mxu0 0.0
    %2862 = vmatprep.subr.mxu0 0.0
    %2863 = vmatpush1.msra.mxu0 0.0
    %2864 = vmatprep.subr.mxu0 0.0
    %2865 = vmatpush1.msra.mxu0 0.0
    %2866 = vmatprep.subr.mxu0 0.0
    %2867 = vmatpush1.msra.mxu0 0.0
    %2868 = vmatprep.subr.mxu0 0.0
    %2869 = vmatpush1.msra.mxu0 0.0
    %2870 = vmatprep.subr.mxu0 0.0
    %2871 = vmatpush1.msra.mxu0 0.0
    %2872 = vmatprep.subr.mxu0 0.0
    %2873 = vmatpush1.msra.mxu0 0.0
    %2874 = vmatprep.subr.mxu0 0.0
    %2875 = vmatpush1.msra.mxu0 0.0
    %2876 = vmatprep.subr.mxu0 0.0
    %2877 = vmatpush1.msra.mxu0 0.0
    %2878 = vmatprep.subr.mxu0 0.0
    %2879 = vmatpush1.msra.mxu0 0.0
    %2880 = vmatprep.subr.mxu0 0.0
    %2881 = vmatpush1.msra.mxu0 0.0
    %2882 = vmatprep.subr.mxu0 0.0
    %2883 = vmatpush1.msra.mxu0 0.0
    %2884 = vmatprep.subr.mxu0 0.0
    %2885 = vmatpush1.msra.mxu0 0.0
    %2886 = vmatprep.subr.mxu0 0.0
    %2887 = vmatpush1.msra.mxu0 0.0
    %2888 = vmatprep.subr.mxu0 0.0
    %2889 = vmatpush1.msra.mxu0 0.0
    %2890 = vmatprep.mubr.f32.mxu0 0.0
    %2891 = vmatmul.mubr.f32.gmra.mrb[0].mxu0 %v2821
    %v2892 = vpop.f32.mrb[0].mxu0
    %v2893 = vadd.f32 0.0, %v2892
    %v2894 = vpop.f32.mrb[0].mxu0
    %2895 = vmatprep.mubr.f32.mxu0 0.0
    %2896 = vmatmul.mubr.f32.gmra.mrb[0].mxu0 %v2824
    %v2897 = vpop.f32.mrb[0].mxu0
    %v2898 = vadd.f32 0.0, %v2897
    %v2899 = vpop.f32.mrb[0].mxu0
    %2900 = vdwg.mxu0
    %v2901 = vadd.f32 %v36, %v2893
    %v2902 = vadd.f32 %v37, %v2898
    %v2903 = vld [vmem:[%s5] sm:$0x1]
    %v2905 = vlaneseq
    %v2906 = vshrl.u32 %v2905, 7
    %v2907 = vsub.s32 0, %v2906
    %v2908 = vrot.slane %v2903, %v2907
    %v2910 = vadd.f32 %v2901, %v2908
    %v2911 = vadd.f32 %v2902, %v2908
    %v2912 = vsel %vm38, %v2910, 0.0
    %2913 = vadd.xlane.f32.xlu0 %v2912
    %v2914 = vpop.xlane.xlu0 %2913
    %v2915 = vsel %vm38, %v2911, 0.0
    %2916 = vadd.xlane.f32.xlu0 %v2915
    %v2917 = vpop.xlane.xlu0 %2916
    %v2918 = vmul.f32 %v2914, %v45
    %v2919 = vmul.f32 %v2917, %v45
    %v2920 = vsub.f32 %v2910, %v2918
    %v2921 = vsub.f32 %v2911, %v2919
    %v2922 = vmul.f32 %v2920, %v2920
    %v2923 = vmul.f32 %v2921, %v2921
    %v2924 = vsel %vm38, %v2922, 0.0
    %2925 = vadd.xlane.f32.xlu0 %v2924
    %v2926 = vpop.xlane.xlu0 %2925
    %v2927 = vsel %vm38, %v2923, 0.0
    %2928 = vadd.xlane.f32.xlu0 %v2927
    %v2929 = vpop.xlane.xlu0 %2928
    %v2930 = vmul.f32 %v2926, %v45
    %v2931 = vmul.f32 %v2929, %v45
    %v2932 = vadd.f32 %v2930, 1e-05
    %v2933 = vadd.f32 %v2931, 1e-05
    %v2934 = vrsqrt.pop %v2932
    %v2935 = vmul.f32 %v2932, %v2934
    %vm2936 = vcmp.eq.f32.partialorder %v2932, inf
    %v2937 = vsel %vm2936, %v2932, %v2935
    %vm2938 = vcmp.eq.f32.partialorder %v2932, 0.0
    %v2939 = vand.u32 %v2932, 2147483648
    %v2940 = vsel %vm2938, %v2939, %v2937
    %v2941 = vrsqrt.pop %v2933
    %v2942 = vmul.f32 %v2933, %v2941
    %vm2943 = vcmp.eq.f32.partialorder %v2933, inf
    %v2944 = vsel %vm2943, %v2933, %v2942
    %vm2945 = vcmp.eq.f32.partialorder %v2933, 0.0
    %v2946 = vand.u32 %v2933, 2147483648
    %v2947 = vsel %vm2945, %v2946, %v2944
    %v2948 = vrcp.pop %v2940
    %v2949 = vmul.f32 %v2920, %v2948
    %v2950 = vrcp.pop %v2947
    %v2951 = vmul.f32 %v2921, %v2950
    %v2952 = vld [vmem:[%s6] sm:$0xff]
    %v2953 = vld [vmem:[%s6 + $0x8] sm:$0xff]
    %v2954 = vld [vmem:[%s6 + $0x10] sm:$0xff]
    %v2955 = vld [vmem:[%s6 + $0x18] sm:$0xff]
    %v2956 = vld [vmem:[%s6 + $0x20] sm:$0xff]
    %v2957 = vld [vmem:[%s6 + $0x28] sm:$0xff]
    %v2958 = vld [vmem:[%s6 + $0x30] sm:$0xff]
    %v2959 = vld [vmem:[%s6 + $0x38] sm:$0xff]
    %v2960 = vld [vmem:[%s6 + $0x40] sm:$0xff]
    %v2961 = vld [vmem:[%s6 + $0x48] sm:$0xff]
    %v2962 = vld [vmem:[%s6 + $0x50] sm:$0xff]
    %v2963 = vld [vmem:[%s6 + $0x58] sm:$0xff]
    %v2964 = vld [vmem:[%s6 + $0x60] sm:$0xff]
    %v2965 = vld [vmem:[%s6 + $0x68] sm:$0xff]
    %v2966 = vld [vmem:[%s6 + $0x70] sm:$0xff]
    %v2967 = vld [vmem:[%s6 + $0x78] sm:$0xff]
    %v2968 = vld [vmem:[%s7] sm:$0xf]
    %v2970 = vlaneseq
    %v2971 = vshrl.u32 %v2970, 7
    %v2972 = vsub.s32 0, %v2971
    %v2973 = vrot.slane %v2968, %v2972
    %v2974 = vlaneseq
    %v2975 = vshrl.u32 %v2974, 7
    %v2976 = vsub.s32 1, %v2975
    %v2977 = vrot.slane %v2968, %v2976
    %v2978 = vlaneseq
    %v2979 = vshrl.u32 %v2978, 7
    %v2980 = vsub.s32 2, %v2979
    %v2981 = vrot.slane %v2968, %v2980
    %v2982 = vlaneseq
    %v2983 = vshrl.u32 %v2982, 7
    %v2984 = vsub.s32 3, %v2983
    %v2985 = vrot.slane %v2968, %v2984
    %v2991 = vsel %vm38, %v2949, 0
    %v2994 = vsel %vm38, %v2951, 0
    %2996 = vmatprep.subr.mxu0 %v2953
    %2997 = vmatpush1.msra.mxu0 %v2952
    %2998 = vmatprep.subr.mxu0 %v2957
    %2999 = vmatpush1.msra.mxu0 %v2956
    %3000 = vmatprep.subr.mxu0 %v2961
    %3001 = vmatpush1.msra.mxu0 %v2960
    %3002 = vmatprep.subr.mxu0 %v2965
    %3003 = vmatpush1.msra.mxu0 %v2964
    %3004 = vmatprep.subr.mxu0 0.0
    %3005 = vmatpush1.msra.mxu0 0.0
    %3006 = vmatprep.subr.mxu0 0.0
    %3007 = vmatpush1.msra.mxu0 0.0
    %3008 = vmatprep.subr.mxu0 0.0
    %3009 = vmatpush1.msra.mxu0 0.0
    %3010 = vmatprep.subr.mxu0 0.0
    %3011 = vmatpush1.msra.mxu0 0.0
    %3012 = vmatprep.subr.mxu0 0.0
    %3013 = vmatpush1.msra.mxu0 0.0
    %3014 = vmatprep.subr.mxu0 0.0
    %3015 = vmatpush1.msra.mxu0 0.0
    %3016 = vmatprep.subr.mxu0 0.0
    %3017 = vmatpush1.msra.mxu0 0.0
    %3018 = vmatprep.subr.mxu0 0.0
    %3019 = vmatpush1.msra.mxu0 0.0
    %3020 = vmatprep.subr.mxu0 0.0
    %3021 = vmatpush1.msra.mxu0 0.0
    %3022 = vmatprep.subr.mxu0 0.0
    %3023 = vmatpush1.msra.mxu0 0.0
    %3024 = vmatprep.subr.mxu0 0.0
    %3025 = vmatpush1.msra.mxu0 0.0
    %3026 = vmatprep.subr.mxu0 0.0
    %3027 = vmatpush1.msra.mxu0 0.0
    %3028 = vmatprep.subr.mxu0 0.0
    %3029 = vmatpush1.msra.mxu0 0.0
    %3030 = vmatprep.subr.mxu0 0.0
    %3031 = vmatpush1.msra.mxu0 0.0
    %3032 = vmatprep.subr.mxu0 0.0
    %3033 = vmatpush1.msra.mxu0 0.0
    %3034 = vmatprep.subr.mxu0 0.0
    %3035 = vmatpush1.msra.mxu0 0.0
    %3036 = vmatprep.subr.mxu0 0.0
    %3037 = vmatpush1.msra.mxu0 0.0
    %3038 = vmatprep.subr.mxu0 0.0
    %3039 = vmatpush1.msra.mxu0 0.0
    %3040 = vmatprep.subr.mxu0 0.0
    %3041 = vmatpush1.msra.mxu0 0.0
    %3042 = vmatprep.subr.mxu0 0.0
    %3043 = vmatpush1.msra.mxu0 0.0
    %3044 = vmatprep.subr.mxu0 0.0
    %3045 = vmatpush1.msra.mxu0 0.0
    %3046 = vmatprep.subr.mxu0 0.0
    %3047 = vmatpush1.msra.mxu0 0.0
    %3048 = vmatprep.subr.mxu0 0.0
    %3049 = vmatpush1.msra.mxu0 0.0
    %3050 = vmatprep.subr.mxu0 0.0
    %3051 = vmatpush1.msra.mxu0 0.0
    %3052 = vmatprep.subr.mxu0 0.0
    %3053 = vmatpush1.msra.mxu0 0.0
    %3054 = vmatprep.subr.mxu0 0.0
    %3055 = vmatpush1.msra.mxu0 0.0
    %3056 = vmatprep.subr.mxu0 0.0
    %3057 = vmatpush1.msra.mxu0 0.0
    %3058 = vmatprep.subr.mxu0 0.0
    %3059 = vmatpush1.msra.mxu0 0.0
    %3060 = vmatprep.mubr.f32.mxu0 0.0
    %3061 = vmatmul.mubr.f32.gmra.mrb[0].mxu0 %v2991
    %v3062 = vpop.f32.mrb[0].mxu0
    %v3063 = vadd.f32 %v2973, %v3062
    %v3064 = vpop.f32.mrb[0].mxu0
    %v3065 = vadd.f32 %v2977, %v3064
    %3066 = vmatprep.mubr.f32.mxu0 0.0
    %3067 = vmatmul.mubr.f32.gmra.mrb[0].mxu0 %v2994
    %v3068 = vpop.f32.mrb[0].mxu0
    %v3069 = vadd.f32 %v2973, %v3068
    %v3070 = vpop.f32.mrb[0].mxu0
    %v3071 = vadd.f32 %v2977, %v3070
    %3072 = vdwg.mxu0
    %3073 = vmatprep.subr.mxu0 %v2955
    %3074 = vmatpush1.msra.mxu0 %v2954
    %3075 = vmatprep.subr.mxu0 %v2959
    %3076 = vmatpush1.msra.mxu0 %v2958
    %3077 = vmatprep.subr.mxu0 %v2963
    %3078 = vmatpush1.msra.mxu0 %v2962
    %3079 = vmatprep.subr.mxu0 %v2967
    %3080 = vmatpush1.msra.mxu0 %v2966
    %3081 = vmatprep.subr.mxu0 0.0
    %3082 = vmatpush1.msra.mxu0 0.0
    %3083 = vmatprep.subr.mxu0 0.0
    %3084 = vmatpush1.msra.mxu0 0.0
    %3085 = vmatprep.subr.mxu0 0.0
    %3086 = vmatpush1.msra.mxu0 0.0
    %3087 = vmatprep.subr.mxu0 0.0
    %3088 = vmatpush1.msra.mxu0 0.0
    %3089 = vmatprep.subr.mxu0 0.0
    %3090 = vmatpush1.msra.mxu0 0.0
    %3091 = vmatprep.subr.mxu0 0.0
    %3092 = vmatpush1.msra.mxu0 0.0
    %3093 = vmatprep.subr.mxu0 0.0
    %3094 = vmatpush1.msra.mxu0 0.0
    %3095 = vmatprep.subr.mxu0 0.0
    %3096 = vmatpush1.msra.mxu0 0.0
    %3097 = vmatprep.subr.mxu0 0.0
    %3098 = vmatpush1.msra.mxu0 0.0
    %3099 = vmatprep.subr.mxu0 0.0
    %3100 = vmatpush1.msra.mxu0 0.0
    %3101 = vmatprep.subr.mxu0 0.0
    %3102 = vmatpush1.msra.mxu0 0.0
    %3103 = vmatprep.subr.mxu0 0.0
    %3104 = vmatpush1.msra.mxu0 0.0
    %3105 = vmatprep.subr.mxu0 0.0
    %3106 = vmatpush1.msra.mxu0 0.0
    %3107 = vmatprep.subr.mxu0 0.0
    %3108 = vmatpush1.msra.mxu0 0.0
    %3109 = vmatprep.subr.mxu0 0.0
    %3110 = vmatpush1.msra.mxu0 0.0
    %3111 = vmatprep.subr.mxu0 0.0
    %3112 = vmatpush1.msra.mxu0 0.0
    %3113 = vmatprep.subr.mxu0 0.0
    %3114 = vmatpush1.msra.mxu0 0.0
    %3115 = vmatprep.subr.mxu0 0.0
    %3116 = vmatpush1.msra.mxu0 0.0
    %3117 = vmatprep.subr.mxu0 0.0
    %3118 = vmatpush1.msra.mxu0 0.0
    %3119 = vmatprep.subr.mxu0 0.0
    %3120 = vmatpush1.msra.mxu0 0.0
    %3121 = vmatprep.subr.mxu0 0.0
    %3122 = vmatpush1.msra.mxu0 0.0
    %3123 = vmatprep.subr.mxu0 0.0
    %3124 = vmatpush1.msra.mxu0 0.0
    %3125 = vmatprep.subr.mxu0 0.0
    %3126 = vmatpush1.msra.mxu0 0.0
    %3127 = vmatprep.subr.mxu0 0.0
    %3128 = vmatpush1.msra.mxu0 0.0
    %3129 = vmatprep.subr.mxu0 0.0
    %3130 = vmatpush1.msra.mxu0 0.0
    %3131 = vmatprep.subr.mxu0 0.0
    %3132 = vmatpush1.msra.mxu0 0.0
    %3133 = vmatprep.subr.mxu0 0.0
    %3134 = vmatpush1.msra.mxu0 0.0
    %3135 = vmatprep.subr.mxu0 0.0
    %3136 = vmatpush1.msra.mxu0 0.0
    %3137 = vmatprep.mubr.f32.mxu0 0.0
    %3138 = vmatmul.mubr.f32.gmra.mrb[0].mxu0 %v2991
    %v3139 = vpop.f32.mrb[0].mxu0
    %v3140 = vadd.f32 %v2981, %v3139
    %v3141 = vpop.f32.mrb[0].mxu0
    %v3142 = vadd.f32 %v2985, %v3141
    %3143 = vmatprep.mubr.f32.mxu0 0.0
    %3144 = vmatmul.mubr.f32.gmra.mrb[0].mxu0 %v2994
    %v3145 = vpop.f32.mrb[0].mxu0
    %v3146 = vadd.f32 %v2981, %v3145
    %v3147 = vpop.f32.mrb[0].mxu0
    %v3148 = vadd.f32 %v2985, %v3147
    %3149 = vdwg.mxu0
    %v3150 = vmax.f32 %v3063, 0.0
    %v3151 = vmax.f32 %v3065, 0.0
    %v3152 = vmax.f32 %v3140, 0.0
    %v3153 = vmax.f32 %v3142, 0.0
    %v3154 = vmax.f32 %v3069, 0.0
    %v3155 = vmax.f32 %v3071, 0.0
    %v3156 = vmax.f32 %v3146, 0.0
    %v3157 = vmax.f32 %v3148, 0.0
    %v3158 = vld [vmem:[%s8] sm:$0xff]
    %v3159 = vld [vmem:[%s8 + $0x8] sm:$0xff]
    %v3160 = vld [vmem:[%s8 + $0x10] sm:$0xff]
    %v3161 = vld [vmem:[%s8 + $0x18] sm:$0xff]
    %v3162 = vld [vmem:[%s8 + $0x20] sm:$0xff]
    %v3163 = vld [vmem:[%s8 + $0x28] sm:$0xff]
    %v3164 = vld [vmem:[%s8 + $0x30] sm:$0xff]
    %v3165 = vld [vmem:[%s8 + $0x38] sm:$0xff]
    %v3166 = vld [vmem:[%s8 + $0x40] sm:$0xff]
    %v3167 = vld [vmem:[%s8 + $0x48] sm:$0xff]
    %v3168 = vld [vmem:[%s8 + $0x50] sm:$0xff]
    %v3169 = vld [vmem:[%s8 + $0x58] sm:$0xff]
    %v3170 = vld [vmem:[%s8 + $0x60] sm:$0xff]
    %v3171 = vld [vmem:[%s8 + $0x68] sm:$0xff]
    %v3172 = vld [vmem:[%s8 + $0x70] sm:$0xff]
    %v3173 = vld [vmem:[%s8 + $0x78] sm:$0xff]
    %v3174 = vld [vmem:[%s8 + $0x80] sm:$0xff]
    %v3175 = vld [vmem:[%s8 + $0x88] sm:$0xff]
    %v3176 = vld [vmem:[%s8 + $0x90] sm:$0xff]
    %v3177 = vld [vmem:[%s8 + $0x98] sm:$0xff]
    %v3178 = vld [vmem:[%s8 + $0xa0] sm:$0xff]
    %v3179 = vld [vmem:[%s8 + $0xa8] sm:$0xff]
    %v3180 = vld [vmem:[%s8 + $0xb0] sm:$0xff]
    %v3181 = vld [vmem:[%s8 + $0xb8] sm:$0xff]
    %v3182 = vld [vmem:[%s8 + $0xc0] sm:$0xff]
    %v3183 = vld [vmem:[%s8 + $0xc8] sm:$0xff]
    %v3184 = vld [vmem:[%s8 + $0xd0] sm:$0xff]
    %v3185 = vld [vmem:[%s8 + $0xd8] sm:$0xff]
    %v3186 = vld [vmem:[%s8 + $0xe0] sm:$0xff]
    %v3187 = vld [vmem:[%s8 + $0xe8] sm:$0xff]
    %v3188 = vld [vmem:[%s8 + $0xf0] sm:$0xff]
    %v3189 = vld [vmem:[%s8 + $0xf8] sm:$0xff]
    %v3190 = vld [vmem:[%s8 + $0x100] sm:$0xff]
    %v3191 = vld [vmem:[%s8 + $0x108] sm:$0xff]
    %v3192 = vld [vmem:[%s8 + $0x110] sm:$0xff]
    %v3193 = vld [vmem:[%s8 + $0x118] sm:$0xff]
    %v3194 = vld [vmem:[%s8 + $0x120] sm:$0xff]
    %v3195 = vld [vmem:[%s8 + $0x128] sm:$0xff]
    %v3196 = vld [vmem:[%s8 + $0x130] sm:$0xff]
    %v3197 = vld [vmem:[%s8 + $0x138] sm:$0xff]
    %v3198 = vld [vmem:[%s8 + $0x140] sm:$0xff]
    %v3199 = vld [vmem:[%s8 + $0x148] sm:$0xff]
    %v3200 = vld [vmem:[%s8 + $0x150] sm:$0xff]
    %v3201 = vld [vmem:[%s8 + $0x158] sm:$0xff]
    %v3202 = vld [vmem:[%s8 + $0x160] sm:$0xff]
    %v3203 = vld [vmem:[%s8 + $0x168] sm:$0xff]
    %v3204 = vld [vmem:[%s8 + $0x170] sm:$0xff]
    %v3205 = vld [vmem:[%s8 + $0x178] sm:$0xff]
    %v3206 = vld [vmem:[%s8 + $0x180] sm:$0xff]
    %v3207 = vld [vmem:[%s8 + $0x188] sm:$0xff]
    %v3208 = vld [vmem:[%s8 + $0x190] sm:$0xff]
    %v3209 = vld [vmem:[%s8 + $0x198] sm:$0xff]
    %v3210 = vld [vmem:[%s8 + $0x1a0] sm:$0xff]
    %v3211 = vld [vmem:[%s8 + $0x1a8] sm:$0xff]
    %v3212 = vld [vmem:[%s8 + $0x1b0] sm:$0xff]
    %v3213 = vld [vmem:[%s8 + $0x1b8] sm:$0xff]
    %v3214 = vld [vmem:[%s8 + $0x1c0] sm:$0xff]
    %v3215 = vld [vmem:[%s8 + $0x1c8] sm:$0xff]
    %v3216 = vld [vmem:[%s8 + $0x1d0] sm:$0xff]
    %v3217 = vld [vmem:[%s8 + $0x1d8] sm:$0xff]
    %v3218 = vld [vmem:[%s8 + $0x1e0] sm:$0xff]
    %v3219 = vld [vmem:[%s8 + $0x1e8] sm:$0xff]
    %v3220 = vld [vmem:[%s8 + $0x1f0] sm:$0xff]
    %v3221 = vld [vmem:[%s8 + $0x1f8] sm:$0xff]
    %v3222 = vld [vmem:[%s9] sm:$0x1]
    %v3224 = vlaneseq
    %v3225 = vshrl.u32 %v3224, 7
    %v3226 = vsub.s32 0, %v3225
    %v3227 = vrot.slane %v3222, %v3226
    %3229 = vmatprep.subr.mxu0 0.0
    %3230 = vmatpush1.msra.mxu0 %v3158
    %3231 = vmatprep.subr.mxu0 0.0
    %3232 = vmatpush1.msra.mxu0 %v3159
    %3233 = vmatprep.subr.mxu0 0.0
    %3234 = vmatpush1.msra.mxu0 %v3160
    %3235 = vmatprep.subr.mxu0 0.0
    %3236 = vmatpush1.msra.mxu0 %v3161
    %3237 = vmatprep.subr.mxu0 0.0
    %3238 = vmatpush1.msra.mxu0 %v3162
    %3239 = vmatprep.subr.mxu0 0.0
    %3240 = vmatpush1.msra.mxu0 %v3163
    %3241 = vmatprep.subr.mxu0 0.0
    %3242 = vmatpush1.msra.mxu0 %v3164
    %3243 = vmatprep.subr.mxu0 0.0
    %3244 = vmatpush1.msra.mxu0 %v3165
    %3245 = vmatprep.subr.mxu0 0.0
    %3246 = vmatpush1.msra.mxu0 %v3166
    %3247 = vmatprep.subr.mxu0 0.0
    %3248 = vmatpush1.msra.mxu0 %v3167
    %3249 = vmatprep.subr.mxu0 0.0
    %3250 = vmatpush1.msra.mxu0 %v3168
    %3251 = vmatprep.subr.mxu0 0.0
    %3252 = vmatpush1.msra.mxu0 %v3169
    %3253 = vmatprep.subr.mxu0 0.0
    %3254 = vmatpush1.msra.mxu0 %v3170
    %3255 = vmatprep.subr.mxu0 0.0
    %3256 = vmatpush1.msra.mxu0 %v3171
    %3257 = vmatprep.subr.mxu0 0.0
    %3258 = vmatpush1.msra.mxu0 %v3172
    %3259 = vmatprep.subr.mxu0 0.0
    %3260 = vmatpush1.msra.mxu0 %v3173
    %3261 = vmatprep.subr.mxu0 0.0
    %3262 = vmatpush1.msra.mxu0 %v3174
    %3263 = vmatprep.subr.mxu0 0.0
    %3264 = vmatpush1.msra.mxu0 %v3175
    %3265 = vmatprep.subr.mxu0 0.0
    %3266 = vmatpush1.msra.mxu0 %v3176
    %3267 = vmatprep.subr.mxu0 0.0
    %3268 = vmatpush1.msra.mxu0 %v3177
    %3269 = vmatprep.subr.mxu0 0.0
    %3270 = vmatpush1.msra.mxu0 %v3178
    %3271 = vmatprep.subr.mxu0 0.0
    %3272 = vmatpush1.msra.mxu0 %v3179
    %3273 = vmatprep.subr.mxu0 0.0
    %3274 = vmatpush1.msra.mxu0 %v3180
    %3275 = vmatprep.subr.mxu0 0.0
    %3276 = vmatpush1.msra.mxu0 %v3181
    %3277 = vmatprep.subr.mxu0 0.0
    %3278 = vmatpush1.msra.mxu0 %v3182
    %3279 = vmatprep.subr.mxu0 0.0
    %3280 = vmatpush1.msra.mxu0 %v3183
    %3281 = vmatprep.subr.mxu0 0.0
    %3282 = vmatpush1.msra.mxu0 %v3184
    %3283 = vmatprep.subr.mxu0 0.0
    %3284 = vmatpush1.msra.mxu0 %v3185
    %3285 = vmatprep.subr.mxu0 0.0
    %3286 = vmatpush1.msra.mxu0 %v3186
    %3287 = vmatprep.subr.mxu0 0.0
    %3288 = vmatpush1.msra.mxu0 %v3187
    %3289 = vmatprep.subr.mxu0 0.0
    %3290 = vmatpush1.msra.mxu0 %v3188
    %3291 = vmatprep.subr.mxu0 0.0
    %3292 = vmatpush1.msra.mxu0 %v3189
    %3293 = vmatprep.mubr.f32.mxu0 %v3151
    %3294 = vmatmul.mubr.f32.gmra.mrb[0].mxu0 %v3150
    %v3295 = vpop.f32.mrb[0].mxu0
    %v3296 = vadd.f32 %v3227, %v3295
    %v3297 = vpop.f32.mrb[0].mxu0
    %3298 = vmatprep.mubr.f32.mxu0 %v3155
    %3299 = vmatmul.mubr.f32.gmra.mrb[0].mxu0 %v3154
    %v3300 = vpop.f32.mrb[0].mxu0
    %v3301 = vadd.f32 %v3227, %v3300
    %v3302 = vpop.f32.mrb[0].mxu0
    %3303 = vdwg.mxu0
    %3304 = vmatprep.subr.mxu0 0.0
    %3305 = vmatpush1.msra.mxu0 %v3190
    %3306 = vmatprep.subr.mxu0 0.0
    %3307 = vmatpush1.msra.mxu0 %v3191
    %3308 = vmatprep.subr.mxu0 0.0
    %3309 = vmatpush1.msra.mxu0 %v3192
    %3310 = vmatprep.subr.mxu0 0.0
    %3311 = vmatpush1.msra.mxu0 %v3193
    %3312 = vmatprep.subr.mxu0 0.0
    %3313 = vmatpush1.msra.mxu0 %v3194
    %3314 = vmatprep.subr.mxu0 0.0
    %3315 = vmatpush1.msra.mxu0 %v3195
    %3316 = vmatprep.subr.mxu0 0.0
    %3317 = vmatpush1.msra.mxu0 %v3196
    %3318 = vmatprep.subr.mxu0 0.0
    %3319 = vmatpush1.msra.mxu0 %v3197
    %3320 = vmatprep.subr.mxu0 0.0
    %3321 = vmatpush1.msra.mxu0 %v3198
    %3322 = vmatprep.subr.mxu0 0.0
    %3323 = vmatpush1.msra.mxu0 %v3199
    %3324 = vmatprep.subr.mxu0 0.0
    %3325 = vmatpush1.msra.mxu0 %v3200
    %3326 = vmatprep.subr.mxu0 0.0
    %3327 = vmatpush1.msra.mxu0 %v3201
    %3328 = vmatprep.subr.mxu0 0.0
    %3329 = vmatpush1.msra.mxu0 %v3202
    %3330 = vmatprep.subr.mxu0 0.0
    %3331 = vmatpush1.msra.mxu0 %v3203
    %3332 = vmatprep.subr.mxu0 0.0
    %3333 = vmatpush1.msra.mxu0 %v3204
    %3334 = vmatprep.subr.mxu0 0.0
    %3335 = vmatpush1.msra.mxu0 %v3205
    %3336 = vmatprep.subr.mxu0 0.0
    %3337 = vmatpush1.msra.mxu0 %v3206
    %3338 = vmatprep.subr.mxu0 0.0
    %3339 = vmatpush1.msra.mxu0 %v3207
    %3340 = vmatprep.subr.mxu0 0.0
    %3341 = vmatpush1.msra.mxu0 %v3208
    %3342 = vmatprep.subr.mxu0 0.0
    %3343 = vmatpush1.msra.mxu0 %v3209
    %3344 = vmatprep.subr.mxu0 0.0
    %3345 = vmatpush1.msra.mxu0 %v3210
    %3346 = vmatprep.subr.mxu0 0.0
    %3347 = vmatpush1.msra.mxu0 %v3211
    %3348 = vmatprep.subr.mxu0 0.0
    %3349 = vmatpush1.msra.mxu0 %v3212
    %3350 = vmatprep.subr.mxu0 0.0
    %3351 = vmatpush1.msra.mxu0 %v3213
    %3352 = vmatprep.subr.mxu0 0.0
    %3353 = vmatpush1.msra.mxu0 %v3214
    %3354 = vmatprep.subr.mxu0 0.0
    %3355 = vmatpush1.msra.mxu0 %v3215
    %3356 = vmatprep.subr.mxu0 0.0
    %3357 = vmatpush1.msra.mxu0 %v3216
    %3358 = vmatprep.subr.mxu0 0.0
    %3359 = vmatpush1.msra.mxu0 %v3217
    %3360 = vmatprep.subr.mxu0 0.0
    %3361 = vmatpush1.msra.mxu0 %v3218
    %3362 = vmatprep.subr.mxu0 0.0
    %3363 = vmatpush1.msra.mxu0 %v3219
    %3364 = vmatprep.subr.mxu0 0.0
    %3365 = vmatpush1.msra.mxu0 %v3220
    %3366 = vmatprep.subr.mxu0 0.0
    %3367 = vmatpush1.msra.mxu0 %v3221
    %3368 = vmatprep.mubr.f32.mxu0 %v3153
    %3369 = vmatmul.mubr.f32.gmra.mrb[0].mxu0 %v3152
    %v3370 = vpop.f32.mrb[0].mxu0
    %v3371 = vadd.f32 %v3296, %v3370
    %v3372 = vpop.f32.mrb[0].mxu0
    %3373 = vmatprep.mubr.f32.mxu0 %v3157
    %3374 = vmatmul.mubr.f32.gmra.mrb[0].mxu0 %v3156
    %v3375 = vpop.f32.mrb[0].mxu0
    %v3376 = vadd.f32 %v3301, %v3375
    %v3377 = vpop.f32.mrb[0].mxu0
    %3378 = vdwg.mxu0
    %v3379 = vadd.f32 %v2949, %v3371
    %v3380 = vadd.f32 %v2951, %v3376
    %3381 = vst.msk [vmem:[#allocation2] sm:$0xff] %vm38, %v3379
    %3382 = vst.msk [vmem:[#allocation2 + $0x8] sm:$0xff] %vm38, %v3380
    // Predicated region
    $region42: #{tpu_custom_call.1} parent=1 // pred_check
      _
    $region43: #{tpu_custom_call.1} parent=1 // pred_check_branch
      %3384 = sbr.rel (0) target = $region45
    $region44: #{tpu_custom_call.1} parent=1 // pred_region
      %s3386 = ssub.s32 256, 256
      %3387 = vsyncadd [#allocation3], %s3386
      %s3388 = sshll.u32 [#allocation2], 4
      %s3389 = int_to_ptr.vmem [resolvable:$true] %s3388
      %3394 = dma.vmem_to_hbm [thread:$0]  %s3389, 256, %s10, [#allocation3], 128, 128, 8
    $region45: #{tpu_custom_call.1} parent=1 // pred_fallthru
      _
    // Predicated region
    $region46: #{tpu_custom_call.1} parent=1 // pred_check
      _
    $region47: #{tpu_custom_call.1} parent=1 // pred_check_branch
      %3396 = sbr.rel (0) target = $region49
    $region48: #{tpu_custom_call.1} parent=1 // pred_region
      %3397 = dma.done [#allocation3], 256
    $region49: #{tpu_custom_call.1} parent=1 // pred_fallthru
      _
    %3398 = vsyncpa [#allocation3], 1

</llo_original>
